<compile_context>
chip_gen: v7x
topology: tpu7x:2x2x1
jax: 0.10.0
libtpu: 0.0.40
codegen_flags: <defaults>
</compile_context>

<pallas_src>
import numpy as np
import jax
import jax.numpy as jnp
from jax import lax
from jax.experimental import pallas as pl
from jax.experimental.pallas import tpu as pltpu

# ---- geometry implied by the module (fc1 expects 16*5*5 => 3x32x32 input) ----
_H = 32                 # input H = W
_CIN = 3                # input channels
_K = 5                  # conv kernel size
_C1 = 6                 # conv1 out channels
_C2 = 16                # conv2 out channels
_H1 = _H - _K + 1       # 28: conv1 output H = W
_P1 = _H1 // 2          # 14: after pool1
_H2 = _P1 - _K + 1      # 10: conv2 output H = W
_P2 = _H2 // 2          # 5 : after pool2
_F1, _F2 = 256, 64      # fc hidden sizes
_L1 = _CIN * _H         # 96 : conv1 input lane width   (cin*32 + w)
_N1 = _C1 * _H1         # 168: conv1 output lane width  (cout*28 + wo)
_L2 = _N1 - 1           # 167: pooled-1 lane width (valid values at c*28 + 2*wp)
_N2 = _C2 * _H2         # 160: conv2 output lane width  (cout*10 + wo)
_L3 = _N2 - 1           # 159: pooled-2 lane width (valid values at c*10 + 2*wp)


# --------------------------- the fused kernel ---------------------------

def _net_kernel(x_ref, m1_ref, c1b_ref, m2_ref, c2b_ref,
                w1_ref, f1b_ref, w2_ref, f2b_ref, w3_ref, f3b_ref, o_ref):
    """Entire forward pass, VMEM-resident.  Per-image activations are 2-D
    (rows = image row, lanes = channel-major*width) so every matmul is a plain
    2-D MXU dot and the lane axis stays >= 96 wide everywhere."""
    B = x_ref.shape[0]
    feats = []
    for b in range(B):                                   # static unroll (B tiny)
        # ---- conv1 + bias + ReLU: 5 banded row-tap matmuls ----
        y = jnp.dot(x_ref[b, 0:_H1, :], m1_ref[0],
                    preferred_element_type=jnp.float32)
        for kh in range(1, _K):
            y = y + jnp.dot(x_ref[b, kh:kh + _H1, :], m1_ref[kh],
                            preferred_element_type=jnp.float32)
        y = jnp.maximum(y + c1b_ref[...], 0.0)           # (28, 168)

        # ---- 2x2 maxpool: rows via reshape+max, lanes via shift+max ----
        y = y.reshape(_P1, 2, _N1).max(axis=1)           # (14, 168)
        y = jnp.maximum(y[:, :-1], y[:, 1:])             # (14, 167); valid @ c*28+2*wp

        # ---- conv2 + bias + ReLU (m2 rows only address the valid pooled lanes)
        z = jnp.dot(y[0:_H2, :], m2_ref[0], preferred_element_type=jnp.float32)
        for kh in range(1, _K):
            z = z + jnp.dot(y[kh:kh + _H2, :], m2_ref[kh],
                            preferred_element_type=jnp.float32)
        z = jnp.maximum(z + c2b_ref[...], 0.0)           # (10, 160)

        # ---- 2x2 maxpool ----
        z = z.reshape(_P2, 2, _N2).max(axis=1)           # (5, 160)
        z = jnp.maximum(z[:, :-1], z[:, 1:])             # (5, 159); valid @ c*10+2*wp

        # ---- fc1 as a sum of 5 per-row matmuls (no flatten relayout) ----
        h = jnp.dot(z[0:1, :], w1_ref[0], preferred_element_type=jnp.float32)
        for r in range(1, _P2):
            h = h + jnp.dot(z[r:r + 1, :], w1_ref[r],
                            preferred_element_type=jnp.float32)
        feats.append(h)                                  # (1, 256)

    # ---- fc1 bias/ReLU, fc2 + ReLU, fc3 (batched over the B images) ----
    h = jnp.concatenate(feats, axis=0)                   # (B, 256)
    h = jnp.maximum(h + f1b_ref[...], 0.0)
    h = jnp.maximum(jnp.dot(h, w2_ref[...], preferred_element_type=jnp.float32)
                    + f2b_ref[...], 0.0)                 # (B, 64)
    o = jnp.dot(h, w3_ref[...], preferred_element_type=jnp.float32) + f3b_ref[...]
    o_ref[...] = o.astype(o_ref.dtype)                   # (B, num_classes)


def _fused_forward(x1, prepared):
    B = x1.shape[0]
    nc = prepared['w3'].shape[1]
    args = (x1, prepared['m1'], prepared['c1b'], prepared['m2'], prepared['c2b'],
            prepared['w1'], prepared['f1b'], prepared['w2'], prepared['f2b'],
            prepared['w3'], prepared['f3b'])

    def full_block(a):
        nd = a.ndim
        return pl.BlockSpec(a.shape, lambda i, _nd=nd: (0,) * _nd)

    # TODO(synk): when batch grows, add an M-tile grid axis over images
    # ("parallel" on v7x) instead of the single full-block invocation.
    return pl.pallas_call(
        _net_kernel,
        out_shape=jax.ShapeDtypeStruct((B, nc), jnp.float32),
        grid=(1,),
        in_specs=[full_block(a) for a in args],
        out_specs=pl.BlockSpec((B, nc), lambda i: (0, 0)),
        compiler_params=pltpu.CompilerParams(
            dimension_semantics=("arbitrary",)),
    )(*args)


# --------------------------- one-time weight prep ---------------------------

def _band_matrix(conv_w, lane_group, lane_stride, in_w, rows_dim):
    """Banded matrices turning a 5x5 valid conv into 5 row-tap matmuls.
    Input row layout: lane = cin*lane_group + lane_stride*w, w in [0, in_w).
    Output row layout: lane = cout*wo + out_w, wo = in_w - K + 1."""
    wc = np.asarray(conv_w, np.float32)                  # (cout, cin, K, K)
    cout, cin, kh_sz, kw_sz = wc.shape
    wo = in_w - kw_sz + 1
    m = np.zeros((kh_sz, rows_dim, cout * wo), np.float32)
    col = (np.arange(cout) * wo)[None, :] + np.arange(wo)[:, None]   # (wo, cout)
    for kh in range(kh_sz):
        for kw in range(kw_sz):
            for ci in range(cin):
                row = ci * lane_group + lane_stride * (np.arange(wo) + kw)
                m[kh, row[:, None], col] = wc[:, ci, kh, kw][None, :]
    return m


def prepare_params(params):
    """One-time conversion of PyTorch-layout parameters into matmul-ready
    layouts (hoisted out of the per-call jitted path)."""
    m1 = _band_matrix(params['conv1_w'], lane_group=_H, lane_stride=1,
                      in_w=_H, rows_dim=_L1)                      # (5, 96, 168)
    m2 = _band_matrix(params['conv2_w'], lane_group=_H1, lane_stride=2,
                      in_w=_P1, rows_dim=_L2)                     # (5, 167, 160)
    c1b = np.repeat(np.asarray(params['conv1_b'], np.float32), _H1).reshape(1, _N1)
    c2b = np.repeat(np.asarray(params['conv2_b'], np.float32), _H2).reshape(1, _N2)

    # fc1 split into 5 per-row matrices over the un-compacted pool-2 lane layout
    # (lane = c*10 + 2*wp); reproduces PyTorch's x.view(-1, 400) (c, h, w) order.
    fc1 = np.asarray(params['fc1_w'], np.float32).reshape(_F1, _C2, _P2, _P2)
    w1 = np.zeros((_P2, _L3, _F1), np.float32)                    # (5, 159, 256)
    for r in range(_P2):
        for wp in range(_P2):
            w1[r, np.arange(_C2) * _H2 + 2 * wp, :] = fc1[:, :, r, wp].T

    prepped = dict(
        m1=m1, c1b=c1b, m2=m2, c2b=c2b, w1=w1,
        f1b=np.asarray(params['fc1_b'], np.float32).reshape(1, _F1),
        w2=np.asarray(params['fc2_w'], np.float32).T,             # (256, 64)
        f2b=np.asarray(params['fc2_b'], np.float32).reshape(1, _F2),
        w3=np.asarray(params['fc3_w'], np.float32).T,             # (64, num_classes)
        f3b=np.asarray(params['fc3_b'], np.float32).reshape(1, -1),
    )
    return {k: jnp.asarray(v) for k, v in prepped.items()}


def net_forward(prepared, x):
    """x: (B, 3, 32, 32) float32 NCHW (PyTorch interface)."""
    B, C, H, W = x.shape
    assert (C, H, W) == (_CIN, _H, _H), "Net requires 3x32x32 inputs (fc1 = 16*5*5)"
    # Single cheap layout transform: rows = image row, lanes = cin*32 + w.
    x1 = jnp.transpose(x.astype(jnp.float32), (0, 2, 1, 3)).reshape(B, _H, _L1)
    return _fused_forward(x1, prepared)


# --------------------------- params / reference / main ---------------------------

def init_params(key, num_classes):
    ks = jax.random.split(key, 10)

    def u(k, shape, fan_in):
        bound = 1.0 / jnp.sqrt(float(fan_in))
        return jax.random.uniform(k, shape, jnp.float32, -bound, bound)

    return {
        "conv1_w": u(ks[0], (6, 3, 5, 5), 3 * 25),
        "conv1_b": u(ks[1], (6,), 3 * 25),
        "conv2_w": u(ks[2], (16, 6, 5, 5), 6 * 25),
        "conv2_b": u(ks[3], (16,), 6 * 25),
        "fc1_w": u(ks[4], (256, 400), 400),
        "fc1_b": u(ks[5], (256,), 400),
        "fc2_w": u(ks[6], (64, 256), 256),
        "fc2_b": u(ks[7], (64,), 256),
        "fc3_w": u(ks[8], (num_classes, 64), 64),
        "fc3_b": u(ks[9], (num_classes,), 64),
    }


def net_reference(params, x):
    """Pure-XLA reference used only for the self-check in __main__."""
    dn = ('NCHW', 'OIHW', 'NCHW')
    y = lax.conv_general_dilated(x, params['conv1_w'], (1, 1), 'VALID',
                                 dimension_numbers=dn)
    y = jnp.maximum(y + params['conv1_b'][None, :, None, None], 0.0)
    y = lax.reduce_window(y, -jnp.inf, lax.max, (1, 1, 2, 2), (1, 1, 2, 2), 'VALID')
    y = lax.conv_general_dilated(y, params['conv2_w'], (1, 1), 'VALID',
                                 dimension_numbers=dn)
    y = jnp.maximum(y + params['conv2_b'][None, :, None, None], 0.0)
    y = lax.reduce_window(y, -jnp.inf, lax.max, (1, 1, 2, 2), (1, 1, 2, 2), 'VALID')
    y = y.reshape(x.shape[0], _C2 * _P2 * _P2)
    y = jnp.maximum(y @ params['fc1_w'].T + params['fc1_b'], 0.0)
    y = jnp.maximum(y @ params['fc2_w'].T + params['fc2_b'], 0.0)
    return y @ params['fc3_w'].T + params['fc3_b']


if __name__ == "__main__":
    num_classes = 10
    key = jax.random.PRNGKey(0)
    k_params, k_x = jax.random.split(key)
    params = init_params(k_params, num_classes)
    prepared = prepare_params(params)          # one-time weight prep (hoisted)

    x = jax.random.normal(k_x, (2, _CIN, _H, _H), jnp.float32)
    fwd = jax.jit(net_forward)
    out = jax.block_until_ready(fwd(prepared, x))
    assert out.shape == (2, num_classes)

    ref = jax.block_until_ready(net_reference(params, x))
    max_diff = float(jnp.max(jnp.abs(out - ref)))
    assert jnp.allclose(out, ref, rtol=2e-2, atol=2e-2), f"max |diff| = {max_diff}"
    print("KERNEL_OK")
</pallas_src>

<mosaic_0001>
module attributes {stable_mosaic.version = 11 : i64} {
  func.func @_net_kernel(%arg0: i32, %arg1: memref<2x32x96xf32, #tpu.memory_space<vmem>>, %arg2: memref<5x96x168xf32, #tpu.memory_space<vmem>>, %arg3: memref<1x168xf32, #tpu.memory_space<vmem>>, %arg4: memref<5x167x160xf32, #tpu.memory_space<vmem>>, %arg5: memref<1x160xf32, #tpu.memory_space<vmem>>, %arg6: memref<5x159x256xf32, #tpu.memory_space<vmem>>, %arg7: memref<1x256xf32, #tpu.memory_space<vmem>>, %arg8: memref<256x64xf32, #tpu.memory_space<vmem>>, %arg9: memref<1x64xf32, #tpu.memory_space<vmem>>, %arg10: memref<64x10xf32, #tpu.memory_space<vmem>>, %arg11: memref<1x10xf32, #tpu.memory_space<vmem>>, %arg12: memref<2x10xf32, #tpu.memory_space<vmem>>) attributes {dimension_semantics = [#tpu.dimension_semantics<arbitrary>], iteration_bounds = array<i64: 1>, scalar_prefetch = 0 : i64, scratch_operands = 0 : i64, tpu.core_type = #tpu.core_type<tc>, window_params = [{pipeline_mode = #tpu.pipeline_mode<synchronous>, transform_indices = @transform_0, window_bounds = array<i64: 2, 32, 96>}, {pipeline_mode = #tpu.pipeline_mode<synchronous>, transform_indices = @transform_1, window_bounds = array<i64: 5, 96, 168>}, {pipeline_mode = #tpu.pipeline_mode<synchronous>, transform_indices = @transform_2, window_bounds = array<i64: 1, 168>}, {pipeline_mode = #tpu.pipeline_mode<synchronous>, transform_indices = @transform_3, window_bounds = array<i64: 5, 167, 160>}, {pipeline_mode = #tpu.pipeline_mode<synchronous>, transform_indices = @transform_4, window_bounds = array<i64: 1, 160>}, {pipeline_mode = #tpu.pipeline_mode<synchronous>, transform_indices = @transform_5, window_bounds = array<i64: 5, 159, 256>}, {pipeline_mode = #tpu.pipeline_mode<synchronous>, transform_indices = @transform_6, window_bounds = array<i64: 1, 256>}, {pipeline_mode = #tpu.pipeline_mode<synchronous>, transform_indices = @transform_7, window_bounds = array<i64: 256, 64>}, {pipeline_mode = #tpu.pipeline_mode<synchronous>, transform_indices = @transform_8, window_bounds = array<i64: 1, 64>}, {pipeline_mode = #tpu.pipeline_mode<synchronous>, transform_indices = @transform_9, window_bounds = array<i64: 64, 10>}, {pipeline_mode = #tpu.pipeline_mode<synchronous>, transform_indices = @transform_10, window_bounds = array<i64: 1, 10>}, {pipeline_mode = #tpu.pipeline_mode<synchronous>, transform_indices = @transform_11, window_bounds = array<i64: 2, 10>}]} {
    %c0 = arith.constant 0 : index
    %c0_0 = arith.constant 0 : index
    %c0_1 = arith.constant 0 : index
    %0 = vector.load %arg1[%c0, %c0_0, %c0_1] : memref<2x32x96xf32, #tpu.memory_space<vmem>>, vector<1x28x96xf32>
    %1 = vector.shape_cast %0 : vector<1x28x96xf32> to vector<28x96xf32>
    %c0_2 = arith.constant 0 : index
    %c0_3 = arith.constant 0 : index
    %c0_4 = arith.constant 0 : index
    %2 = vector.load %arg2[%c0_2, %c0_3, %c0_4] : memref<5x96x168xf32, #tpu.memory_space<vmem>>, vector<1x96x168xf32>
    %3 = vector.shape_cast %2 : vector<1x96x168xf32> to vector<96x168xf32>
    %cst = arith.constant dense<0.000000e+00> : vector<28x168xf32>
    %4 = tpu.matmul %1, %3, %cst {dimension_numbers = #tpu.dot_dimension_numbers<[1], [0], [0], [1], [0, 0, 1, 1], [], []>} : vector<28x96xf32>, vector<96x168xf32>, vector<28x168xf32> -> vector<28x168xf32>
    %c0_5 = arith.constant 0 : index
    %c1 = arith.constant 1 : index
    %c0_6 = arith.constant 0 : index
    %5 = vector.load %arg1[%c0_5, %c1, %c0_6] : memref<2x32x96xf32, #tpu.memory_space<vmem>>, vector<1x28x96xf32>
    %6 = vector.shape_cast %5 : vector<1x28x96xf32> to vector<28x96xf32>
    %c1_7 = arith.constant 1 : index
    %c0_8 = arith.constant 0 : index
    %c0_9 = arith.constant 0 : index
    %7 = vector.load %arg2[%c1_7, %c0_8, %c0_9] : memref<5x96x168xf32, #tpu.memory_space<vmem>>, vector<1x96x168xf32>
    %8 = vector.shape_cast %7 : vector<1x96x168xf32> to vector<96x168xf32>
    %cst_10 = arith.constant dense<0.000000e+00> : vector<28x168xf32>
    %9 = tpu.matmul %6, %8, %cst_10 {dimension_numbers = #tpu.dot_dimension_numbers<[1], [0], [0], [1], [0, 0, 1, 1], [], []>} : vector<28x96xf32>, vector<96x168xf32>, vector<28x168xf32> -> vector<28x168xf32>
    %10 = arith.addf %4, %9 : vector<28x168xf32>
    %c0_11 = arith.constant 0 : index
    %c2 = arith.constant 2 : index
    %c0_12 = arith.constant 0 : index
    %11 = vector.load %arg1[%c0_11, %c2, %c0_12] : memref<2x32x96xf32, #tpu.memory_space<vmem>>, vector<1x28x96xf32>
    %12 = vector.shape_cast %11 : vector<1x28x96xf32> to vector<28x96xf32>
    %c2_13 = arith.constant 2 : index
    %c0_14 = arith.constant 0 : index
    %c0_15 = arith.constant 0 : index
    %13 = vector.load %arg2[%c2_13, %c0_14, %c0_15] : memref<5x96x168xf32, #tpu.memory_space<vmem>>, vector<1x96x168xf32>
    %14 = vector.shape_cast %13 : vector<1x96x168xf32> to vector<96x168xf32>
    %cst_16 = arith.constant dense<0.000000e+00> : vector<28x168xf32>
    %15 = tpu.matmul %12, %14, %cst_16 {dimension_numbers = #tpu.dot_dimension_numbers<[1], [0], [0], [1], [0, 0, 1, 1], [], []>} : vector<28x96xf32>, vector<96x168xf32>, vector<28x168xf32> -> vector<28x168xf32>
    %16 = arith.addf %10, %15 : vector<28x168xf32>
    %c0_17 = arith.constant 0 : index
    %c3 = arith.constant 3 : index
    %c0_18 = arith.constant 0 : index
    %17 = vector.load %arg1[%c0_17, %c3, %c0_18] : memref<2x32x96xf32, #tpu.memory_space<vmem>>, vector<1x28x96xf32>
    %18 = vector.shape_cast %17 : vector<1x28x96xf32> to vector<28x96xf32>
    %c3_19 = arith.constant 3 : index
    %c0_20 = arith.constant 0 : index
    %c0_21 = arith.constant 0 : index
    %19 = vector.load %arg2[%c3_19, %c0_20, %c0_21] : memref<5x96x168xf32, #tpu.memory_space<vmem>>, vector<1x96x168xf32>
    %20 = vector.shape_cast %19 : vector<1x96x168xf32> to vector<96x168xf32>
    %cst_22 = arith.constant dense<0.000000e+00> : vector<28x168xf32>
    %21 = tpu.matmul %18, %20, %cst_22 {dimension_numbers = #tpu.dot_dimension_numbers<[1], [0], [0], [1], [0, 0, 1, 1], [], []>} : vector<28x96xf32>, vector<96x168xf32>, vector<28x168xf32> -> vector<28x168xf32>
    %22 = arith.addf %16, %21 : vector<28x168xf32>
    %c0_23 = arith.constant 0 : index
    %c4 = arith.constant 4 : index
    %c0_24 = arith.constant 0 : index
    %23 = vector.load %arg1[%c0_23, %c4, %c0_24] : memref<2x32x96xf32, #tpu.memory_space<vmem>>, vector<1x28x96xf32>
    %24 = vector.shape_cast %23 : vector<1x28x96xf32> to vector<28x96xf32>
    %c4_25 = arith.constant 4 : index
    %c0_26 = arith.constant 0 : index
    %c0_27 = arith.constant 0 : index
    %25 = vector.load %arg2[%c4_25, %c0_26, %c0_27] : memref<5x96x168xf32, #tpu.memory_space<vmem>>, vector<1x96x168xf32>
    %26 = vector.shape_cast %25 : vector<1x96x168xf32> to vector<96x168xf32>
    %cst_28 = arith.constant dense<0.000000e+00> : vector<28x168xf32>
    %27 = tpu.matmul %24, %26, %cst_28 {dimension_numbers = #tpu.dot_dimension_numbers<[1], [0], [0], [1], [0, 0, 1, 1], [], []>} : vector<28x96xf32>, vector<96x168xf32>, vector<28x168xf32> -> vector<28x168xf32>
    %28 = arith.addf %22, %27 : vector<28x168xf32>
    %c0_29 = arith.constant 0 : index
    %c0_30 = arith.constant 0 : index
    %29 = vector.load %arg3[%c0_29, %c0_30] : memref<1x168xf32, #tpu.memory_space<vmem>>, vector<1x168xf32>
    %30 = vector.broadcast %29 : vector<1x168xf32> to vector<28x168xf32>
    %31 = arith.addf %28, %30 : vector<28x168xf32>
    %cst_31 = arith.constant 0.000000e+00 : f32
    %32 = vector.broadcast %cst_31 : f32 to vector<28x168xf32>
    %33 = arith.maximumf %31, %32 : vector<28x168xf32>
    %34 = vector.shape_cast %33 : vector<28x168xf32> to vector<14x2x168xf32>
    %cst_32 = arith.constant dense<0xFF800000> : vector<14x168xf32>
    %35 = vector.multi_reduction <maximumf>, %34, %cst_32 [1] : vector<14x2x168xf32> to vector<14x168xf32>
    %36 = vector.extract_strided_slice %35 {offsets = [0, 0], sizes = [14, 167], strides = [1, 1]} : vector<14x168xf32> to vector<14x167xf32>
    %37 = vector.extract_strided_slice %35 {offsets = [0, 1], sizes = [14, 167], strides = [1, 1]} : vector<14x168xf32> to vector<14x167xf32>
    %38 = arith.maximumf %36, %37 : vector<14x167xf32>
    %39 = vector.extract_strided_slice %38 {offsets = [0, 0], sizes = [10, 167], strides = [1, 1]} : vector<14x167xf32> to vector<10x167xf32>
    %c0_33 = arith.constant 0 : index
    %c0_34 = arith.constant 0 : index
    %c0_35 = arith.constant 0 : index
    %40 = vector.load %arg4[%c0_33, %c0_34, %c0_35] : memref<5x167x160xf32, #tpu.memory_space<vmem>>, vector<1x167x160xf32>
    %41 = vector.shape_cast %40 : vector<1x167x160xf32> to vector<167x160xf32>
    %cst_36 = arith.constant dense<0.000000e+00> : vector<10x160xf32>
    %42 = tpu.matmul %39, %41, %cst_36 {dimension_numbers = #tpu.dot_dimension_numbers<[1], [0], [0], [1], [0, 0, 1, 1], [], []>} : vector<10x167xf32>, vector<167x160xf32>, vector<10x160xf32> -> vector<10x160xf32>
    %43 = vector.extract_strided_slice %38 {offsets = [1, 0], sizes = [10, 167], strides = [1, 1]} : vector<14x167xf32> to vector<10x167xf32>
    %c1_37 = arith.constant 1 : index
    %c0_38 = arith.constant 0 : index
    %c0_39 = arith.constant 0 : index
    %44 = vector.load %arg4[%c1_37, %c0_38, %c0_39] : memref<5x167x160xf32, #tpu.memory_space<vmem>>, vector<1x167x160xf32>
    %45 = vector.shape_cast %44 : vector<1x167x160xf32> to vector<167x160xf32>
    %cst_40 = arith.constant dense<0.000000e+00> : vector<10x160xf32>
    %46 = tpu.matmul %43, %45, %cst_40 {dimension_numbers = #tpu.dot_dimension_numbers<[1], [0], [0], [1], [0, 0, 1, 1], [], []>} : vector<10x167xf32>, vector<167x160xf32>, vector<10x160xf32> -> vector<10x160xf32>
    %47 = arith.addf %42, %46 : vector<10x160xf32>
    %48 = vector.extract_strided_slice %38 {offsets = [2, 0], sizes = [10, 167], strides = [1, 1]} : vector<14x167xf32> to vector<10x167xf32>
    %c2_41 = arith.constant 2 : index
    %c0_42 = arith.constant 0 : index
    %c0_43 = arith.constant 0 : index
    %49 = vector.load %arg4[%c2_41, %c0_42, %c0_43] : memref<5x167x160xf32, #tpu.memory_space<vmem>>, vector<1x167x160xf32>
    %50 = vector.shape_cast %49 : vector<1x167x160xf32> to vector<167x160xf32>
    %cst_44 = arith.constant dense<0.000000e+00> : vector<10x160xf32>
    %51 = tpu.matmul %48, %50, %cst_44 {dimension_numbers = #tpu.dot_dimension_numbers<[1], [0], [0], [1], [0, 0, 1, 1], [], []>} : vector<10x167xf32>, vector<167x160xf32>, vector<10x160xf32> -> vector<10x160xf32>
    %52 = arith.addf %47, %51 : vector<10x160xf32>
    %53 = vector.extract_strided_slice %38 {offsets = [3, 0], sizes = [10, 167], strides = [1, 1]} : vector<14x167xf32> to vector<10x167xf32>
    %c3_45 = arith.constant 3 : index
    %c0_46 = arith.constant 0 : index
    %c0_47 = arith.constant 0 : index
    %54 = vector.load %arg4[%c3_45, %c0_46, %c0_47] : memref<5x167x160xf32, #tpu.memory_space<vmem>>, vector<1x167x160xf32>
    %55 = vector.shape_cast %54 : vector<1x167x160xf32> to vector<167x160xf32>
    %cst_48 = arith.constant dense<0.000000e+00> : vector<10x160xf32>
    %56 = tpu.matmul %53, %55, %cst_48 {dimension_numbers = #tpu.dot_dimension_numbers<[1], [0], [0], [1], [0, 0, 1, 1], [], []>} : vector<10x167xf32>, vector<167x160xf32>, vector<10x160xf32> -> vector<10x160xf32>
    %57 = arith.addf %52, %56 : vector<10x160xf32>
    %58 = vector.extract_strided_slice %38 {offsets = [4, 0], sizes = [10, 167], strides = [1, 1]} : vector<14x167xf32> to vector<10x167xf32>
    %c4_49 = arith.constant 4 : index
    %c0_50 = arith.constant 0 : index
    %c0_51 = arith.constant 0 : index
    %59 = vector.load %arg4[%c4_49, %c0_50, %c0_51] : memref<5x167x160xf32, #tpu.memory_space<vmem>>, vector<1x167x160xf32>
    %60 = vector.shape_cast %59 : vector<1x167x160xf32> to vector<167x160xf32>
    %cst_52 = arith.constant dense<0.000000e+00> : vector<10x160xf32>
    %61 = tpu.matmul %58, %60, %cst_52 {dimension_numbers = #tpu.dot_dimension_numbers<[1], [0], [0], [1], [0, 0, 1, 1], [], []>} : vector<10x167xf32>, vector<167x160xf32>, vector<10x160xf32> -> vector<10x160xf32>
    %62 = arith.addf %57, %61 : vector<10x160xf32>
    %c0_53 = arith.constant 0 : index
    %c0_54 = arith.constant 0 : index
    %63 = vector.load %arg5[%c0_53, %c0_54] : memref<1x160xf32, #tpu.memory_space<vmem>>, vector<1x160xf32>
    %64 = vector.broadcast %63 : vector<1x160xf32> to vector<10x160xf32>
    %65 = arith.addf %62, %64 : vector<10x160xf32>
    %cst_55 = arith.constant 0.000000e+00 : f32
    %66 = vector.broadcast %cst_55 : f32 to vector<10x160xf32>
    %67 = arith.maximumf %65, %66 : vector<10x160xf32>
    %68 = vector.shape_cast %67 : vector<10x160xf32> to vector<5x2x160xf32>
    %cst_56 = arith.constant dense<0xFF800000> : vector<5x160xf32>
    %69 = vector.multi_reduction <maximumf>, %68, %cst_56 [1] : vector<5x2x160xf32> to vector<5x160xf32>
    %70 = vector.extract_strided_slice %69 {offsets = [0, 0], sizes = [5, 159], strides = [1, 1]} : vector<5x160xf32> to vector<5x159xf32>
    %71 = vector.extract_strided_slice %69 {offsets = [0, 1], sizes = [5, 159], strides = [1, 1]} : vector<5x160xf32> to vector<5x159xf32>
    %72 = arith.maximumf %70, %71 : vector<5x159xf32>
    %73 = vector.extract_strided_slice %72 {offsets = [0, 0], sizes = [1, 159], strides = [1, 1]} : vector<5x159xf32> to vector<1x159xf32>
    %c0_57 = arith.constant 0 : index
    %c0_58 = arith.constant 0 : index
    %c0_59 = arith.constant 0 : index
    %74 = vector.load %arg6[%c0_57, %c0_58, %c0_59] : memref<5x159x256xf32, #tpu.memory_space<vmem>>, vector<1x159x256xf32>
    %75 = vector.shape_cast %74 : vector<1x159x256xf32> to vector<159x256xf32>
    %cst_60 = arith.constant dense<0.000000e+00> : vector<1x256xf32>
    %76 = tpu.matmul %73, %75, %cst_60 {dimension_numbers = #tpu.dot_dimension_numbers<[1], [0], [0], [1], [0, 0, 1, 1], [], []>} : vector<1x159xf32>, vector<159x256xf32>, vector<1x256xf32> -> vector<1x256xf32>
    %77 = vector.extract_strided_slice %72 {offsets = [1, 0], sizes = [1, 159], strides = [1, 1]} : vector<5x159xf32> to vector<1x159xf32>
    %c1_61 = arith.constant 1 : index
    %c0_62 = arith.constant 0 : index
    %c0_63 = arith.constant 0 : index
    %78 = vector.load %arg6[%c1_61, %c0_62, %c0_63] : memref<5x159x256xf32, #tpu.memory_space<vmem>>, vector<1x159x256xf32>
    %79 = vector.shape_cast %78 : vector<1x159x256xf32> to vector<159x256xf32>
    %cst_64 = arith.constant dense<0.000000e+00> : vector<1x256xf32>
    %80 = tpu.matmul %77, %79, %cst_64 {dimension_numbers = #tpu.dot_dimension_numbers<[1], [0], [0], [1], [0, 0, 1, 1], [], []>} : vector<1x159xf32>, vector<159x256xf32>, vector<1x256xf32> -> vector<1x256xf32>
    %81 = arith.addf %76, %80 : vector<1x256xf32>
    %82 = vector.extract_strided_slice %72 {offsets = [2, 0], sizes = [1, 159], strides = [1, 1]} : vector<5x159xf32> to vector<1x159xf32>
    %c2_65 = arith.constant 2 : index
    %c0_66 = arith.constant 0 : index
    %c0_67 = arith.constant 0 : index
    %83 = vector.load %arg6[%c2_65, %c0_66, %c0_67] : memref<5x159x256xf32, #tpu.memory_space<vmem>>, vector<1x159x256xf32>
    %84 = vector.shape_cast %83 : vector<1x159x256xf32> to vector<159x256xf32>
    %cst_68 = arith.constant dense<0.000000e+00> : vector<1x256xf32>
    %85 = tpu.matmul %82, %84, %cst_68 {dimension_numbers = #tpu.dot_dimension_numbers<[1], [0], [0], [1], [0, 0, 1, 1], [], []>} : vector<1x159xf32>, vector<159x256xf32>, vector<1x256xf32> -> vector<1x256xf32>
    %86 = arith.addf %81, %85 : vector<1x256xf32>
    %87 = vector.extract_strided_slice %72 {offsets = [3, 0], sizes = [1, 159], strides = [1, 1]} : vector<5x159xf32> to vector<1x159xf32>
    %c3_69 = arith.constant 3 : index
    %c0_70 = arith.constant 0 : index
    %c0_71 = arith.constant 0 : index
    %88 = vector.load %arg6[%c3_69, %c0_70, %c0_71] : memref<5x159x256xf32, #tpu.memory_space<vmem>>, vector<1x159x256xf32>
    %89 = vector.shape_cast %88 : vector<1x159x256xf32> to vector<159x256xf32>
    %cst_72 = arith.constant dense<0.000000e+00> : vector<1x256xf32>
    %90 = tpu.matmul %87, %89, %cst_72 {dimension_numbers = #tpu.dot_dimension_numbers<[1], [0], [0], [1], [0, 0, 1, 1], [], []>} : vector<1x159xf32>, vector<159x256xf32>, vector<1x256xf32> -> vector<1x256xf32>
    %91 = arith.addf %86, %90 : vector<1x256xf32>
    %92 = vector.extract_strided_slice %72 {offsets = [4, 0], sizes = [1, 159], strides = [1, 1]} : vector<5x159xf32> to vector<1x159xf32>
    %c4_73 = arith.constant 4 : index
    %c0_74 = arith.constant 0 : index
    %c0_75 = arith.constant 0 : index
    %93 = vector.load %arg6[%c4_73, %c0_74, %c0_75] : memref<5x159x256xf32, #tpu.memory_space<vmem>>, vector<1x159x256xf32>
    %94 = vector.shape_cast %93 : vector<1x159x256xf32> to vector<159x256xf32>
    %cst_76 = arith.constant dense<0.000000e+00> : vector<1x256xf32>
    %95 = tpu.matmul %92, %94, %cst_76 {dimension_numbers = #tpu.dot_dimension_numbers<[1], [0], [0], [1], [0, 0, 1, 1], [], []>} : vector<1x159xf32>, vector<159x256xf32>, vector<1x256xf32> -> vector<1x256xf32>
    %96 = arith.addf %91, %95 : vector<1x256xf32>
    %c1_77 = arith.constant 1 : index
    %c0_78 = arith.constant 0 : index
    %c0_79 = arith.constant 0 : index
    %97 = vector.load %arg1[%c1_77, %c0_78, %c0_79] : memref<2x32x96xf32, #tpu.memory_space<vmem>>, vector<1x28x96xf32>
    %98 = vector.shape_cast %97 : vector<1x28x96xf32> to vector<28x96xf32>
    %c0_80 = arith.constant 0 : index
    %c0_81 = arith.constant 0 : index
    %c0_82 = arith.constant 0 : index
    %99 = vector.load %arg2[%c0_80, %c0_81, %c0_82] : memref<5x96x168xf32, #tpu.memory_space<vmem>>, vector<1x96x168xf32>
    %100 = vector.shape_cast %99 : vector<1x96x168xf32> to vector<96x168xf32>
    %cst_83 = arith.constant dense<0.000000e+00> : vector<28x168xf32>
    %101 = tpu.matmul %98, %100, %cst_83 {dimension_numbers = #tpu.dot_dimension_numbers<[1], [0], [0], [1], [0, 0, 1, 1], [], []>} : vector<28x96xf32>, vector<96x168xf32>, vector<28x168xf32> -> vector<28x168xf32>
    %c1_84 = arith.constant 1 : index
    %c1_85 = arith.constant 1 : index
    %c0_86 = arith.constant 0 : index
    %102 = vector.load %arg1[%c1_84, %c1_85, %c0_86] : memref<2x32x96xf32, #tpu.memory_space<vmem>>, vector<1x28x96xf32>
    %103 = vector.shape_cast %102 : vector<1x28x96xf32> to vector<28x96xf32>
    %c1_87 = arith.constant 1 : index
    %c0_88 = arith.constant 0 : index
    %c0_89 = arith.constant 0 : index
    %104 = vector.load %arg2[%c1_87, %c0_88, %c0_89] : memref<5x96x168xf32, #tpu.memory_space<vmem>>, vector<1x96x168xf32>
    %105 = vector.shape_cast %104 : vector<1x96x168xf32> to vector<96x168xf32>
    %cst_90 = arith.constant dense<0.000000e+00> : vector<28x168xf32>
    %106 = tpu.matmul %103, %105, %cst_90 {dimension_numbers = #tpu.dot_dimension_numbers<[1], [0], [0], [1], [0, 0, 1, 1], [], []>} : vector<28x96xf32>, vector<96x168xf32>, vector<28x168xf32> -> vector<28x168xf32>
    %107 = arith.addf %101, %106 : vector<28x168xf32>
    %c1_91 = arith.constant 1 : index
    %c2_92 = arith.constant 2 : index
    %c0_93 = arith.constant 0 : index
    %108 = vector.load %arg1[%c1_91, %c2_92, %c0_93] : memref<2x32x96xf32, #tpu.memory_space<vmem>>, vector<1x28x96xf32>
    %109 = vector.shape_cast %108 : vector<1x28x96xf32> to vector<28x96xf32>
    %c2_94 = arith.constant 2 : index
    %c0_95 = arith.constant 0 : index
    %c0_96 = arith.constant 0 : index
    %110 = vector.load %arg2[%c2_94, %c0_95, %c0_96] : memref<5x96x168xf32, #tpu.memory_space<vmem>>, vector<1x96x168xf32>
    %111 = vector.shape_cast %110 : vector<1x96x168xf32> to vector<96x168xf32>
    %cst_97 = arith.constant dense<0.000000e+00> : vector<28x168xf32>
    %112 = tpu.matmul %109, %111, %cst_97 {dimension_numbers = #tpu.dot_dimension_numbers<[1], [0], [0], [1], [0, 0, 1, 1], [], []>} : vector<28x96xf32>, vector<96x168xf32>, vector<28x168xf32> -> vector<28x168xf32>
    %113 = arith.addf %107, %112 : vector<28x168xf32>
    %c1_98 = arith.constant 1 : index
    %c3_99 = arith.constant 3 : index
    %c0_100 = arith.constant 0 : index
    %114 = vector.load %arg1[%c1_98, %c3_99, %c0_100] : memref<2x32x96xf32, #tpu.memory_space<vmem>>, vector<1x28x96xf32>
    %115 = vector.shape_cast %114 : vector<1x28x96xf32> to vector<28x96xf32>
    %c3_101 = arith.constant 3 : index
    %c0_102 = arith.constant 0 : index
    %c0_103 = arith.constant 0 : index
    %116 = vector.load %arg2[%c3_101, %c0_102, %c0_103] : memref<5x96x168xf32, #tpu.memory_space<vmem>>, vector<1x96x168xf32>
    %117 = vector.shape_cast %116 : vector<1x96x168xf32> to vector<96x168xf32>
    %cst_104 = arith.constant dense<0.000000e+00> : vector<28x168xf32>
    %118 = tpu.matmul %115, %117, %cst_104 {dimension_numbers = #tpu.dot_dimension_numbers<[1], [0], [0], [1], [0, 0, 1, 1], [], []>} : vector<28x96xf32>, vector<96x168xf32>, vector<28x168xf32> -> vector<28x168xf32>
    %119 = arith.addf %113, %118 : vector<28x168xf32>
    %c1_105 = arith.constant 1 : index
    %c4_106 = arith.constant 4 : index
    %c0_107 = arith.constant 0 : index
    %120 = vector.load %arg1[%c1_105, %c4_106, %c0_107] : memref<2x32x96xf32, #tpu.memory_space<vmem>>, vector<1x28x96xf32>
    %121 = vector.shape_cast %120 : vector<1x28x96xf32> to vector<28x96xf32>
    %c4_108 = arith.constant 4 : index
    %c0_109 = arith.constant 0 : index
    %c0_110 = arith.constant 0 : index
    %122 = vector.load %arg2[%c4_108, %c0_109, %c0_110] : memref<5x96x168xf32, #tpu.memory_space<vmem>>, vector<1x96x168xf32>
    %123 = vector.shape_cast %122 : vector<1x96x168xf32> to vector<96x168xf32>
    %cst_111 = arith.constant dense<0.000000e+00> : vector<28x168xf32>
    %124 = tpu.matmul %121, %123, %cst_111 {dimension_numbers = #tpu.dot_dimension_numbers<[1], [0], [0], [1], [0, 0, 1, 1], [], []>} : vector<28x96xf32>, vector<96x168xf32>, vector<28x168xf32> -> vector<28x168xf32>
    %125 = arith.addf %119, %124 : vector<28x168xf32>
    %c0_112 = arith.constant 0 : index
    %c0_113 = arith.constant 0 : index
    %126 = vector.load %arg3[%c0_112, %c0_113] : memref<1x168xf32, #tpu.memory_space<vmem>>, vector<1x168xf32>
    %127 = vector.broadcast %126 : vector<1x168xf32> to vector<28x168xf32>
    %128 = arith.addf %125, %127 : vector<28x168xf32>
    %cst_114 = arith.constant 0.000000e+00 : f32
    %129 = vector.broadcast %cst_114 : f32 to vector<28x168xf32>
    %130 = arith.maximumf %128, %129 : vector<28x168xf32>
    %131 = vector.shape_cast %130 : vector<28x168xf32> to vector<14x2x168xf32>
    %cst_115 = arith.constant dense<0xFF800000> : vector<14x168xf32>
    %132 = vector.multi_reduction <maximumf>, %131, %cst_115 [1] : vector<14x2x168xf32> to vector<14x168xf32>
    %133 = vector.extract_strided_slice %132 {offsets = [0, 0], sizes = [14, 167], strides = [1, 1]} : vector<14x168xf32> to vector<14x167xf32>
    %134 = vector.extract_strided_slice %132 {offsets = [0, 1], sizes = [14, 167], strides = [1, 1]} : vector<14x168xf32> to vector<14x167xf32>
    %135 = arith.maximumf %133, %134 : vector<14x167xf32>
    %136 = vector.extract_strided_slice %135 {offsets = [0, 0], sizes = [10, 167], strides = [1, 1]} : vector<14x167xf32> to vector<10x167xf32>
    %c0_116 = arith.constant 0 : index
    %c0_117 = arith.constant 0 : index
    %c0_118 = arith.constant 0 : index
    %137 = vector.load %arg4[%c0_116, %c0_117, %c0_118] : memref<5x167x160xf32, #tpu.memory_space<vmem>>, vector<1x167x160xf32>
    %138 = vector.shape_cast %137 : vector<1x167x160xf32> to vector<167x160xf32>
    %cst_119 = arith.constant dense<0.000000e+00> : vector<10x160xf32>
    %139 = tpu.matmul %136, %138, %cst_119 {dimension_numbers = #tpu.dot_dimension_numbers<[1], [0], [0], [1], [0, 0, 1, 1], [], []>} : vector<10x167xf32>, vector<167x160xf32>, vector<10x160xf32> -> vector<10x160xf32>
    %140 = vector.extract_strided_slice %135 {offsets = [1, 0], sizes = [10, 167], strides = [1, 1]} : vector<14x167xf32> to vector<10x167xf32>
    %c1_120 = arith.constant 1 : index
    %c0_121 = arith.constant 0 : index
    %c0_122 = arith.constant 0 : index
    %141 = vector.load %arg4[%c1_120, %c0_121, %c0_122] : memref<5x167x160xf32, #tpu.memory_space<vmem>>, vector<1x167x160xf32>
    %142 = vector.shape_cast %141 : vector<1x167x160xf32> to vector<167x160xf32>
    %cst_123 = arith.constant dense<0.000000e+00> : vector<10x160xf32>
    %143 = tpu.matmul %140, %142, %cst_123 {dimension_numbers = #tpu.dot_dimension_numbers<[1], [0], [0], [1], [0, 0, 1, 1], [], []>} : vector<10x167xf32>, vector<167x160xf32>, vector<10x160xf32> -> vector<10x160xf32>
    %144 = arith.addf %139, %143 : vector<10x160xf32>
    %145 = vector.extract_strided_slice %135 {offsets = [2, 0], sizes = [10, 167], strides = [1, 1]} : vector<14x167xf32> to vector<10x167xf32>
    %c2_124 = arith.constant 2 : index
    %c0_125 = arith.constant 0 : index
    %c0_126 = arith.constant 0 : index
    %146 = vector.load %arg4[%c2_124, %c0_125, %c0_126] : memref<5x167x160xf32, #tpu.memory_space<vmem>>, vector<1x167x160xf32>
    %147 = vector.shape_cast %146 : vector<1x167x160xf32> to vector<167x160xf32>
    %cst_127 = arith.constant dense<0.000000e+00> : vector<10x160xf32>
    %148 = tpu.matmul %145, %147, %cst_127 {dimension_numbers = #tpu.dot_dimension_numbers<[1], [0], [0], [1], [0, 0, 1, 1], [], []>} : vector<10x167xf32>, vector<167x160xf32>, vector<10x160xf32> -> vector<10x160xf32>
    %149 = arith.addf %144, %148 : vector<10x160xf32>
    %150 = vector.extract_strided_slice %135 {offsets = [3, 0], sizes = [10, 167], strides = [1, 1]} : vector<14x167xf32> to vector<10x167xf32>
    %c3_128 = arith.constant 3 : index
    %c0_129 = arith.constant 0 : index
    %c0_130 = arith.constant 0 : index
    %151 = vector.load %arg4[%c3_128, %c0_129, %c0_130] : memref<5x167x160xf32, #tpu.memory_space<vmem>>, vector<1x167x160xf32>
    %152 = vector.shape_cast %151 : vector<1x167x160xf32> to vector<167x160xf32>
    %cst_131 = arith.constant dense<0.000000e+00> : vector<10x160xf32>
    %153 = tpu.matmul %150, %152, %cst_131 {dimension_numbers = #tpu.dot_dimension_numbers<[1], [0], [0], [1], [0, 0, 1, 1], [], []>} : vector<10x167xf32>, vector<167x160xf32>, vector<10x160xf32> -> vector<10x160xf32>
    %154 = arith.addf %149, %153 : vector<10x160xf32>
    %155 = vector.extract_strided_slice %135 {offsets = [4, 0], sizes = [10, 167], strides = [1, 1]} : vector<14x167xf32> to vector<10x167xf32>
    %c4_132 = arith.constant 4 : index
    %c0_133 = arith.constant 0 : index
    %c0_134 = arith.constant 0 : index
    %156 = vector.load %arg4[%c4_132, %c0_133, %c0_134] : memref<5x167x160xf32, #tpu.memory_space<vmem>>, vector<1x167x160xf32>
    %157 = vector.shape_cast %156 : vector<1x167x160xf32> to vector<167x160xf32>
    %cst_135 = arith.constant dense<0.000000e+00> : vector<10x160xf32>
    %158 = tpu.matmul %155, %157, %cst_135 {dimension_numbers = #tpu.dot_dimension_numbers<[1], [0], [0], [1], [0, 0, 1, 1], [], []>} : vector<10x167xf32>, vector<167x160xf32>, vector<10x160xf32> -> vector<10x160xf32>
    %159 = arith.addf %154, %158 : vector<10x160xf32>
    %c0_136 = arith.constant 0 : index
    %c0_137 = arith.constant 0 : index
    %160 = vector.load %arg5[%c0_136, %c0_137] : memref<1x160xf32, #tpu.memory_space<vmem>>, vector<1x160xf32>
    %161 = vector.broadcast %160 : vector<1x160xf32> to vector<10x160xf32>
    %162 = arith.addf %159, %161 : vector<10x160xf32>
    %cst_138 = arith.constant 0.000000e+00 : f32
    %163 = vector.broadcast %cst_138 : f32 to vector<10x160xf32>
    %164 = arith.maximumf %162, %163 : vector<10x160xf32>
    %165 = vector.shape_cast %164 : vector<10x160xf32> to vector<5x2x160xf32>
    %cst_139 = arith.constant dense<0xFF800000> : vector<5x160xf32>
    %166 = vector.multi_reduction <maximumf>, %165, %cst_139 [1] : vector<5x2x160xf32> to vector<5x160xf32>
    %167 = vector.extract_strided_slice %166 {offsets = [0, 0], sizes = [5, 159], strides = [1, 1]} : vector<5x160xf32> to vector<5x159xf32>
    %168 = vector.extract_strided_slice %166 {offsets = [0, 1], sizes = [5, 159], strides = [1, 1]} : vector<5x160xf32> to vector<5x159xf32>
    %169 = arith.maximumf %167, %168 : vector<5x159xf32>
    %170 = vector.extract_strided_slice %169 {offsets = [0, 0], sizes = [1, 159], strides = [1, 1]} : vector<5x159xf32> to vector<1x159xf32>
    %c0_140 = arith.constant 0 : index
    %c0_141 = arith.constant 0 : index
    %c0_142 = arith.constant 0 : index
    %171 = vector.load %arg6[%c0_140, %c0_141, %c0_142] : memref<5x159x256xf32, #tpu.memory_space<vmem>>, vector<1x159x256xf32>
    %172 = vector.shape_cast %171 : vector<1x159x256xf32> to vector<159x256xf32>
    %cst_143 = arith.constant dense<0.000000e+00> : vector<1x256xf32>
    %173 = tpu.matmul %170, %172, %cst_143 {dimension_numbers = #tpu.dot_dimension_numbers<[1], [0], [0], [1], [0, 0, 1, 1], [], []>} : vector<1x159xf32>, vector<159x256xf32>, vector<1x256xf32> -> vector<1x256xf32>
    %174 = vector.extract_strided_slice %169 {offsets = [1, 0], sizes = [1, 159], strides = [1, 1]} : vector<5x159xf32> to vector<1x159xf32>
    %c1_144 = arith.constant 1 : index
    %c0_145 = arith.constant 0 : index
    %c0_146 = arith.constant 0 : index
    %175 = vector.load %arg6[%c1_144, %c0_145, %c0_146] : memref<5x159x256xf32, #tpu.memory_space<vmem>>, vector<1x159x256xf32>
    %176 = vector.shape_cast %175 : vector<1x159x256xf32> to vector<159x256xf32>
    %cst_147 = arith.constant dense<0.000000e+00> : vector<1x256xf32>
    %177 = tpu.matmul %174, %176, %cst_147 {dimension_numbers = #tpu.dot_dimension_numbers<[1], [0], [0], [1], [0, 0, 1, 1], [], []>} : vector<1x159xf32>, vector<159x256xf32>, vector<1x256xf32> -> vector<1x256xf32>
    %178 = arith.addf %173, %177 : vector<1x256xf32>
    %179 = vector.extract_strided_slice %169 {offsets = [2, 0], sizes = [1, 159], strides = [1, 1]} : vector<5x159xf32> to vector<1x159xf32>
    %c2_148 = arith.constant 2 : index
    %c0_149 = arith.constant 0 : index
    %c0_150 = arith.constant 0 : index
    %180 = vector.load %arg6[%c2_148, %c0_149, %c0_150] : memref<5x159x256xf32, #tpu.memory_space<vmem>>, vector<1x159x256xf32>
    %181 = vector.shape_cast %180 : vector<1x159x256xf32> to vector<159x256xf32>
    %cst_151 = arith.constant dense<0.000000e+00> : vector<1x256xf32>
    %182 = tpu.matmul %179, %181, %cst_151 {dimension_numbers = #tpu.dot_dimension_numbers<[1], [0], [0], [1], [0, 0, 1, 1], [], []>} : vector<1x159xf32>, vector<159x256xf32>, vector<1x256xf32> -> vector<1x256xf32>
    %183 = arith.addf %178, %182 : vector<1x256xf32>
    %184 = vector.extract_strided_slice %169 {offsets = [3, 0], sizes = [1, 159], strides = [1, 1]} : vector<5x159xf32> to vector<1x159xf32>
    %c3_152 = arith.constant 3 : index
    %c0_153 = arith.constant 0 : index
    %c0_154 = arith.constant 0 : index
    %185 = vector.load %arg6[%c3_152, %c0_153, %c0_154] : memref<5x159x256xf32, #tpu.memory_space<vmem>>, vector<1x159x256xf32>
    %186 = vector.shape_cast %185 : vector<1x159x256xf32> to vector<159x256xf32>
    %cst_155 = arith.constant dense<0.000000e+00> : vector<1x256xf32>
    %187 = tpu.matmul %184, %186, %cst_155 {dimension_numbers = #tpu.dot_dimension_numbers<[1], [0], [0], [1], [0, 0, 1, 1], [], []>} : vector<1x159xf32>, vector<159x256xf32>, vector<1x256xf32> -> vector<1x256xf32>
    %188 = arith.addf %183, %187 : vector<1x256xf32>
    %189 = vector.extract_strided_slice %169 {offsets = [4, 0], sizes = [1, 159], strides = [1, 1]} : vector<5x159xf32> to vector<1x159xf32>
    %c4_156 = arith.constant 4 : index
    %c0_157 = arith.constant 0 : index
    %c0_158 = arith.constant 0 : index
    %190 = vector.load %arg6[%c4_156, %c0_157, %c0_158] : memref<5x159x256xf32, #tpu.memory_space<vmem>>, vector<1x159x256xf32>
    %191 = vector.shape_cast %190 : vector<1x159x256xf32> to vector<159x256xf32>
    %cst_159 = arith.constant dense<0.000000e+00> : vector<1x256xf32>
    %192 = tpu.matmul %189, %191, %cst_159 {dimension_numbers = #tpu.dot_dimension_numbers<[1], [0], [0], [1], [0, 0, 1, 1], [], []>} : vector<1x159xf32>, vector<159x256xf32>, vector<1x256xf32> -> vector<1x256xf32>
    %193 = arith.addf %188, %192 : vector<1x256xf32>
    %194 = tpu.concatenate %96, %193 in 0 : vector<1x256xf32>, vector<1x256xf32> -> vector<2x256xf32>
    %c0_160 = arith.constant 0 : index
    %c0_161 = arith.constant 0 : index
    %195 = vector.load %arg7[%c0_160, %c0_161] : memref<1x256xf32, #tpu.memory_space<vmem>>, vector<1x256xf32>
    %196 = vector.broadcast %195 : vector<1x256xf32> to vector<2x256xf32>
    %197 = arith.addf %194, %196 : vector<2x256xf32>
    %cst_162 = arith.constant 0.000000e+00 : f32
    %198 = vector.broadcast %cst_162 : f32 to vector<2x256xf32>
    %199 = arith.maximumf %197, %198 : vector<2x256xf32>
    %c0_163 = arith.constant 0 : index
    %c0_164 = arith.constant 0 : index
    %200 = vector.load %arg8[%c0_163, %c0_164] : memref<256x64xf32, #tpu.memory_space<vmem>>, vector<256x64xf32>
    %cst_165 = arith.constant dense<0.000000e+00> : vector<2x64xf32>
    %201 = tpu.matmul %199, %200, %cst_165 {dimension_numbers = #tpu.dot_dimension_numbers<[1], [0], [0], [1], [0, 0, 1, 1], [], []>} : vector<2x256xf32>, vector<256x64xf32>, vector<2x64xf32> -> vector<2x64xf32>
    %c0_166 = arith.constant 0 : index
    %c0_167 = arith.constant 0 : index
    %202 = vector.load %arg9[%c0_166, %c0_167] : memref<1x64xf32, #tpu.memory_space<vmem>>, vector<1x64xf32>
    %203 = vector.broadcast %202 : vector<1x64xf32> to vector<2x64xf32>
    %204 = arith.addf %201, %203 : vector<2x64xf32>
    %cst_168 = arith.constant 0.000000e+00 : f32
    %205 = vector.broadcast %cst_168 : f32 to vector<2x64xf32>
    %206 = arith.maximumf %204, %205 : vector<2x64xf32>
    %c0_169 = arith.constant 0 : index
    %c0_170 = arith.constant 0 : index
    %207 = vector.load %arg10[%c0_169, %c0_170] : memref<64x10xf32, #tpu.memory_space<vmem>>, vector<64x10xf32>
    %cst_171 = arith.constant dense<0.000000e+00> : vector<2x10xf32>
    %208 = tpu.matmul %206, %207, %cst_171 {dimension_numbers = #tpu.dot_dimension_numbers<[1], [0], [0], [1], [0, 0, 1, 1], [], []>} : vector<2x64xf32>, vector<64x10xf32>, vector<2x10xf32> -> vector<2x10xf32>
    %c0_172 = arith.constant 0 : index
    %c0_173 = arith.constant 0 : index
    %209 = vector.load %arg11[%c0_172, %c0_173] : memref<1x10xf32, #tpu.memory_space<vmem>>, vector<1x10xf32>
    %210 = vector.broadcast %209 : vector<1x10xf32> to vector<2x10xf32>
    %211 = arith.addf %208, %210 : vector<2x10xf32>
    %c0_174 = arith.constant 0 : index
    %c0_175 = arith.constant 0 : index
    %212 = vector.load %arg12[%c0_174, %c0_175] : memref<2x10xf32, #tpu.memory_space<vmem>>, vector<2x10xf32>
    tpu.vector_store %arg12[%c0_174, %c0_175], %211 {strides = array<i32>} : memref<2x10xf32, #tpu.memory_space<vmem>>, vector<2x10xf32>,
    return
  }
  func.func @transform_0(%arg0: i32) -> (i32, i32, i32) {
    %c0_i32 = arith.constant 0 : i32
    %c0_i32_0 = arith.constant 0 : i32
    %c0_i32_1 = arith.constant 0 : i32
    %c0_i32_2 = arith.constant 0 : i32
    return %c0_i32, %c0_i32_0, %c0_i32_1 : i32, i32, i32
  }
  func.func @transform_1(%arg0: i32) -> (i32, i32, i32) {
    %c0_i32 = arith.constant 0 : i32
    %c0_i32_0 = arith.constant 0 : i32
    %c0_i32_1 = arith.constant 0 : i32
    %c0_i32_2 = arith.constant 0 : i32
    return %c0_i32, %c0_i32_0, %c0_i32_1 : i32, i32, i32
  }
  func.func @transform_2(%arg0: i32) -> (i32, i32) {
    %c0_i32 = arith.constant 0 : i32
    %c0_i32_0 = arith.constant 0 : i32
    %c0_i32_1 = arith.constant 0 : i32
    return %c0_i32, %c0_i32_0 : i32, i32
  }
  func.func @transform_3(%arg0: i32) -> (i32, i32, i32) {
    %c0_i32 = arith.constant 0 : i32
    %c0_i32_0 = arith.constant 0 : i32
    %c0_i32_1 = arith.constant 0 : i32
    %c0_i32_2 = arith.constant 0 : i32
    return %c0_i32, %c0_i32_0, %c0_i32_1 : i32, i32, i32
  }
  func.func @transform_4(%arg0: i32) -> (i32, i32) {
    %c0_i32 = arith.constant 0 : i32
    %c0_i32_0 = arith.constant 0 : i32
    %c0_i32_1 = arith.constant 0 : i32
    return %c0_i32, %c0_i32_0 : i32, i32
  }
  func.func @transform_5(%arg0: i32) -> (i32, i32, i32) {
    %c0_i32 = arith.constant 0 : i32
    %c0_i32_0 = arith.constant 0 : i32
    %c0_i32_1 = arith.constant 0 : i32
    %c0_i32_2 = arith.constant 0 : i32
    return %c0_i32, %c0_i32_0, %c0_i32_1 : i32, i32, i32
  }
  func.func @transform_6(%arg0: i32) -> (i32, i32) {
    %c0_i32 = arith.constant 0 : i32
    %c0_i32_0 = arith.constant 0 : i32
    %c0_i32_1 = arith.constant 0 : i32
    return %c0_i32, %c0_i32_0 : i32, i32
  }
  func.func @transform_7(%arg0: i32) -> (i32, i32) {
    %c0_i32 = arith.constant 0 : i32
    %c0_i32_0 = arith.constant 0 : i32
    %c0_i32_1 = arith.constant 0 : i32
    return %c0_i32, %c0_i32_0 : i32, i32
  }
  func.func @transform_8(%arg0: i32) -> (i32, i32) {
    %c0_i32 = arith.constant 0 : i32
    %c0_i32_0 = arith.constant 0 : i32
    %c0_i32_1 = arith.constant 0 : i32
    return %c0_i32, %c0_i32_0 : i32, i32
  }
  func.func @transform_9(%arg0: i32) -> (i32, i32) {
    %c0_i32 = arith.constant 0 : i32
    %c0_i32_0 = arith.constant 0 : i32
    %c0_i32_1 = arith.constant 0 : i32
    return %c0_i32, %c0_i32_0 : i32, i32
  }
  func.func @transform_10(%arg0: i32) -> (i32, i32) {
    %c0_i32 = arith.constant 0 : i32
    %c0_i32_0 = arith.constant 0 : i32
    %c0_i32_1 = arith.constant 0 : i32
    return %c0_i32, %c0_i32_0 : i32, i32
  }
  func.func @transform_11(%arg0: i32) -> (i32, i32) {
    %c0_i32 = arith.constant 0 : i32
    %c0_i32_0 = arith.constant 0 : i32
    %c0_i32_1 = arith.constant 0 : i32
    return %c0_i32, %c0_i32_0 : i32, i32
  }
}

</mosaic_0001>

<llo_original>
// kernel: net_forward.1
$region0: #{net_forward.1}
  #allocation0 [shape = 'u32[]', space=smem, size = 0x4, offset = 0x4, fixed_abs, tag = 'smem constant byte address 0x4 - core index']
  #allocation1 [shape = 'u32[144,128]{1,0:T(1,128)}', space=vmem, size = 0x12000, scoped, tag = 'internal scratch']
  %s0 = inlined_call_operand.vmem [shape: f32[2,32,96], index: 0, kind: input, shape index: {}]
  %s1 = inlined_call_operand.vmem [shape: f32[5,96,168], index: 1, kind: input, shape index: {}]
  %s2 = inlined_call_operand.vmem [shape: f32[1,168], index: 2, kind: input, shape index: {}]
  %s3 = inlined_call_operand.vmem [shape: f32[5,167,160], index: 3, kind: input, shape index: {}]
  %s4 = inlined_call_operand.vmem [shape: f32[1,160], index: 4, kind: input, shape index: {}]
  %s5 = inlined_call_operand.vmem [shape: f32[5,159,256], index: 5, kind: input, shape index: {}]
  %s6 = inlined_call_operand.vmem [shape: f32[1,256], index: 6, kind: input, shape index: {}]
  %s7 = inlined_call_operand.vmem [shape: f32[256,64], index: 7, kind: input, shape index: {}]
  %s8 = inlined_call_operand.vmem [shape: f32[1,64], index: 8, kind: input, shape index: {}]
  %s9 = inlined_call_operand.vmem [shape: f32[64,10], index: 9, kind: input, shape index: {}]
  %s10 = inlined_call_operand.vmem [shape: f32[1,10], index: 10, kind: input, shape index: {}]
  %s11 = inlined_call_operand.hbm [shape: f32[2,10], index: 11, kind: output, shape index: {}]
  %s12 = sld [smem:[#allocation0]]
  $region54: #{net_forward.1} parent=0
    _
  %s14 = ssub.s32 1, %s12
  %s15 = scalar_select 0, %s14, %s12
  $region1: #{net_forward.1} parent=0
    #allocation2 [shape = 'u8[1024]{0}', space=vmem, size = 0x400, scoped, tag = 'output window, operand 0, single buffered']
    #allocation3 [shape = 's32[1]{0}', space=sflag, size = 0x4, scoped, tag = 'scoped memory for net_forward.1']
    %16 = vsyncpa [#allocation3], 0
    // Predicated region
    $region2: #{net_forward.1} parent=1 // pred_check
      _
    $region3: #{net_forward.1} parent=1 // pred_check_branch
      %18 = sbr.rel (0) target = $region5
    $region4: #{net_forward.1} parent=1 // pred_region
      _
    $region5: #{net_forward.1} parent=1 // pred_fallthru
      _
    // Predicated region
    $region6: #{net_forward.1} parent=1 // pred_check
      _
    $region7: #{net_forward.1} parent=1 // pred_check_branch
      %20 = sbr.rel (0) target = $region9
    $region8: #{net_forward.1} parent=1 // pred_region
      _
    $region9: #{net_forward.1} parent=1 // pred_fallthru
      _
    // Predicated region
    $region10: #{net_forward.1} parent=1 // pred_check
      _
    $region11: #{net_forward.1} parent=1 // pred_check_branch
      %22 = sbr.rel (0) target = $region13
    $region12: #{net_forward.1} parent=1 // pred_region
      _
    $region13: #{net_forward.1} parent=1 // pred_fallthru
      _
    // Predicated region
    $region14: #{net_forward.1} parent=1 // pred_check
      _
    $region15: #{net_forward.1} parent=1 // pred_check_branch
      %24 = sbr.rel (0) target = $region17
    $region16: #{net_forward.1} parent=1 // pred_region
      _
    $region17: #{net_forward.1} parent=1 // pred_fallthru
      _
    // Predicated region
    $region18: #{net_forward.1} parent=1 // pred_check
      _
    $region19: #{net_forward.1} parent=1 // pred_check_branch
      %26 = sbr.rel (0) target = $region21
    $region20: #{net_forward.1} parent=1 // pred_region
      _
    $region21: #{net_forward.1} parent=1 // pred_fallthru
      _
    // Predicated region
    $region22: #{net_forward.1} parent=1 // pred_check
      _
    $region23: #{net_forward.1} parent=1 // pred_check_branch
      %28 = sbr.rel (0) target = $region25
    $region24: #{net_forward.1} parent=1 // pred_region
      _
    $region25: #{net_forward.1} parent=1 // pred_fallthru
      _
    // Predicated region
    $region26: #{net_forward.1} parent=1 // pred_check
      _
    $region27: #{net_forward.1} parent=1 // pred_check_branch
      %30 = sbr.rel (0) target = $region29
    $region28: #{net_forward.1} parent=1 // pred_region
      _
    $region29: #{net_forward.1} parent=1 // pred_fallthru
      _
    // Predicated region
    $region30: #{net_forward.1} parent=1 // pred_check
      _
    $region31: #{net_forward.1} parent=1 // pred_check_branch
      %32 = sbr.rel (0) target = $region33
    $region32: #{net_forward.1} parent=1 // pred_region
      _
    $region33: #{net_forward.1} parent=1 // pred_fallthru
      _
    // Predicated region
    $region34: #{net_forward.1} parent=1 // pred_check
      _
    $region35: #{net_forward.1} parent=1 // pred_check_branch
      %34 = sbr.rel (0) target = $region37
    $region36: #{net_forward.1} parent=1 // pred_region
      _
    $region37: #{net_forward.1} parent=1 // pred_fallthru
      _
    // Predicated region
    $region38: #{net_forward.1} parent=1 // pred_check
      _
    $region39: #{net_forward.1} parent=1 // pred_check_branch
      %36 = sbr.rel (0) target = $region41
    $region40: #{net_forward.1} parent=1 // pred_region
      _
    $region41: #{net_forward.1} parent=1 // pred_fallthru
      _
    // Predicated region
    $region42: #{net_forward.1} parent=1 // pred_check
      _
    $region43: #{net_forward.1} parent=1 // pred_check_branch
      %38 = sbr.rel (0) target = $region45
    $region44: #{net_forward.1} parent=1 // pred_region
      _
    $region45: #{net_forward.1} parent=1 // pred_fallthru
      _
    %v39 = vld [vmem:[%s0] sm:$0xff]
    %v40 = vld [vmem:[%s0 + $0x8] sm:$0xff]
    %v41 = vld [vmem:[%s0 + $0x10] sm:$0xff]
    %v42 = vld [vmem:[%s0 + $0x18] sm:$0xf]
    %v43 = vld [vmem:[%s1] sm:$0xff]
    %v44 = vld [vmem:[%s1 + $0x8] sm:$0xff]
    %v45 = vld [vmem:[%s1 + $0x10] sm:$0xff]
    %v46 = vld [vmem:[%s1 + $0x18] sm:$0xff]
    %v47 = vld [vmem:[%s1 + $0x20] sm:$0xff]
    %v48 = vld [vmem:[%s1 + $0x28] sm:$0xff]
    %v49 = vld [vmem:[%s1 + $0x30] sm:$0xff]
    %v50 = vld [vmem:[%s1 + $0x38] sm:$0xff]
    %v51 = vld [vmem:[%s1 + $0x40] sm:$0xff]
    %v52 = vld [vmem:[%s1 + $0x48] sm:$0xff]
    %v53 = vld [vmem:[%s1 + $0x50] sm:$0xff]
    %v54 = vld [vmem:[%s1 + $0x58] sm:$0xff]
    %v55 = vld [vmem:[%s1 + $0x60] sm:$0xff]
    %v56 = vld [vmem:[%s1 + $0x68] sm:$0xff]
    %v57 = vld [vmem:[%s1 + $0x70] sm:$0xff]
    %v58 = vld [vmem:[%s1 + $0x78] sm:$0xff]
    %v59 = vld [vmem:[%s1 + $0x80] sm:$0xff]
    %v60 = vld [vmem:[%s1 + $0x88] sm:$0xff]
    %v61 = vld [vmem:[%s1 + $0x90] sm:$0xff]
    %v62 = vld [vmem:[%s1 + $0x98] sm:$0xff]
    %v63 = vld [vmem:[%s1 + $0xa0] sm:$0xff]
    %v64 = vld [vmem:[%s1 + $0xa8] sm:$0xff]
    %v65 = vld [vmem:[%s1 + $0xb0] sm:$0xff]
    %v66 = vld [vmem:[%s1 + $0xb8] sm:$0xff]
    %v67 = vld [vmem:[%s0 + $0x1] sm:$0xff]
    %v68 = vld [vmem:[%s0 + $0x9] sm:$0xff]
    %v69 = vld [vmem:[%s0 + $0x11] sm:$0xff]
    %v70 = vld [vmem:[%s0 + $0x19] sm:$0xf]
    %s71 = scalar_lea.vmem %s1, 192
    %v72 = vld [vmem:[%s71] sm:$0xff]
    %v73 = vld [vmem:[%s71 + $0x8] sm:$0xff]
    %v74 = vld [vmem:[%s71 + $0x10] sm:$0xff]
    %v75 = vld [vmem:[%s71 + $0x18] sm:$0xff]
    %v76 = vld [vmem:[%s71 + $0x20] sm:$0xff]
    %v77 = vld [vmem:[%s71 + $0x28] sm:$0xff]
    %v78 = vld [vmem:[%s71 + $0x30] sm:$0xff]
    %v79 = vld [vmem:[%s71 + $0x38] sm:$0xff]
    %v80 = vld [vmem:[%s71 + $0x40] sm:$0xff]
    %v81 = vld [vmem:[%s71 + $0x48] sm:$0xff]
    %v82 = vld [vmem:[%s71 + $0x50] sm:$0xff]
    %v83 = vld [vmem:[%s71 + $0x58] sm:$0xff]
    %v84 = vld [vmem:[%s71 + $0x60] sm:$0xff]
    %v85 = vld [vmem:[%s71 + $0x68] sm:$0xff]
    %v86 = vld [vmem:[%s71 + $0x70] sm:$0xff]
    %v87 = vld [vmem:[%s71 + $0x78] sm:$0xff]
    %v88 = vld [vmem:[%s71 + $0x80] sm:$0xff]
    %v89 = vld [vmem:[%s71 + $0x88] sm:$0xff]
    %v90 = vld [vmem:[%s71 + $0x90] sm:$0xff]
    %v91 = vld [vmem:[%s71 + $0x98] sm:$0xff]
    %v92 = vld [vmem:[%s71 + $0xa0] sm:$0xff]
    %v93 = vld [vmem:[%s71 + $0xa8] sm:$0xff]
    %v94 = vld [vmem:[%s71 + $0xb0] sm:$0xff]
    %v95 = vld [vmem:[%s71 + $0xb8] sm:$0xff]
    %vm96 = vcmask 785408
    %v98 = vsel %vm96, %v67, 0
    %v101 = vsel %vm96, %v68, 0
    %v104 = vsel %vm96, %v69, 0
    %v107 = vsel %vm96, %v70, 0
    %109 = vmatprep.subr.mxu0 %v73
    %110 = vmatpush1.msra.mxu0 %v72
    %111 = vmatprep.subr.mxu0 %v75
    %112 = vmatpush1.msra.mxu0 %v74
    %113 = vmatprep.subr.mxu0 %v77
    %114 = vmatpush1.msra.mxu0 %v76
    %115 = vmatprep.subr.mxu0 %v79
    %116 = vmatpush1.msra.mxu0 %v78
    %117 = vmatprep.subr.mxu0 %v81
    %118 = vmatpush1.msra.mxu0 %v80
    %119 = vmatprep.subr.mxu0 %v83
    %120 = vmatpush1.msra.mxu0 %v82
    %121 = vmatprep.subr.mxu0 %v85
    %122 = vmatpush1.msra.mxu0 %v84
    %123 = vmatprep.subr.mxu0 %v87
    %124 = vmatpush1.msra.mxu0 %v86
    %125 = vmatprep.subr.mxu0 %v89
    %126 = vmatpush1.msra.mxu0 %v88
    %127 = vmatprep.subr.mxu0 %v91
    %128 = vmatpush1.msra.mxu0 %v90
    %129 = vmatprep.subr.mxu0 %v93
    %130 = vmatpush1.msra.mxu0 %v92
    %131 = vmatprep.subr.mxu0 %v95
    %132 = vmatpush1.msra.mxu0 %v94
    %133 = vmatprep.subr.mxu0 0.0
    %134 = vmatpush1.msra.mxu0 0.0
    %135 = vmatprep.subr.mxu0 0.0
    %136 = vmatpush1.msra.mxu0 0.0
    %137 = vmatprep.subr.mxu0 0.0
    %138 = vmatpush1.msra.mxu0 0.0
    %139 = vmatprep.subr.mxu0 0.0
    %140 = vmatpush1.msra.mxu0 0.0
    %141 = vmatprep.subr.mxu0 0.0
    %142 = vmatpush1.msra.mxu0 0.0
    %143 = vmatprep.subr.mxu0 0.0
    %144 = vmatpush1.msra.mxu0 0.0
    %145 = vmatprep.subr.mxu0 0.0
    %146 = vmatpush1.msra.mxu0 0.0
    %147 = vmatprep.subr.mxu0 0.0
    %148 = vmatpush1.msra.mxu0 0.0
    %149 = vmatprep.subr.mxu0 0.0
    %150 = vmatpush1.msra.mxu0 0.0
    %151 = vmatprep.subr.mxu0 0.0
    %152 = vmatpush1.msra.mxu0 0.0
    %153 = vmatprep.subr.mxu0 0.0
    %154 = vmatpush1.msra.mxu0 0.0
    %155 = vmatprep.subr.mxu0 0.0
    %156 = vmatpush1.msra.mxu0 0.0
    %157 = vmatprep.subr.mxu0 0.0
    %158 = vmatpush1.msra.mxu0 0.0
    %159 = vmatprep.subr.mxu0 0.0
    %160 = vmatpush1.msra.mxu0 0.0
    %161 = vmatprep.subr.mxu0 0.0
    %162 = vmatpush1.msra.mxu0 0.0
    %163 = vmatprep.subr.mxu0 0.0
    %164 = vmatpush1.msra.mxu0 0.0
    %165 = vmatprep.subr.mxu0 0.0
    %166 = vmatpush1.msra.mxu0 0.0
    %167 = vmatprep.subr.mxu0 0.0
    %168 = vmatpush1.msra.mxu0 0.0
    %169 = vmatprep.subr.mxu0 0.0
    %170 = vmatpush1.msra.mxu0 0.0
    %171 = vmatprep.subr.mxu0 0.0
    %172 = vmatpush1.msra.mxu0 0.0
    %173 = vmatprep.mubr.f32.mxu0 0.0
    %174 = vmatmul.mubr.f32.gmra.mrb[0].mxu0 %v98
    %v175 = vpop.f32.mrb[0].mxu0
    %v176 = vadd.f32 0.0, %v175
    %v177 = vpop.f32.mrb[0].mxu0
    %v178 = vadd.f32 0.0, %v177
    %179 = vmatprep.mubr.f32.mxu0 0.0
    %180 = vmatmul.mubr.f32.gmra.mrb[0].mxu0 %v101
    %v181 = vpop.f32.mrb[0].mxu0
    %v182 = vadd.f32 0.0, %v181
    %v183 = vpop.f32.mrb[0].mxu0
    %v184 = vadd.f32 0.0, %v183
    %185 = vmatprep.mubr.f32.mxu0 0.0
    %186 = vmatmul.mubr.f32.gmra.mrb[0].mxu0 %v104
    %v187 = vpop.f32.mrb[0].mxu0
    %v188 = vadd.f32 0.0, %v187
    %v189 = vpop.f32.mrb[0].mxu0
    %v190 = vadd.f32 0.0, %v189
    %191 = vmatprep.mubr.f32.mxu0 0.0
    %192 = vmatmul.mubr.f32.gmra.mrb[0].mxu0 %v107
    %v193 = vpop.f32.mrb[0].mxu0
    %v194 = vadd.f32 0.0, %v193
    %v195 = vpop.f32.mrb[0].mxu0
    %v196 = vadd.f32 0.0, %v195
    %197 = vdwg.mxu0
    %v199 = vsel %vm96, %v39, 0
    %v202 = vsel %vm96, %v40, 0
    %v205 = vsel %vm96, %v41, 0
    %v208 = vsel %vm96, %v42, 0
    %210 = vmatprep.subr.mxu0 %v44
    %211 = vmatpush1.msra.mxu0 %v43
    %212 = vmatprep.subr.mxu0 %v46
    %213 = vmatpush1.msra.mxu0 %v45
    %214 = vmatprep.subr.mxu0 %v48
    %215 = vmatpush1.msra.mxu0 %v47
    %216 = vmatprep.subr.mxu0 %v50
    %217 = vmatpush1.msra.mxu0 %v49
    %218 = vmatprep.subr.mxu0 %v52
    %219 = vmatpush1.msra.mxu0 %v51
    %220 = vmatprep.subr.mxu0 %v54
    %221 = vmatpush1.msra.mxu0 %v53
    %222 = vmatprep.subr.mxu0 %v56
    %223 = vmatpush1.msra.mxu0 %v55
    %224 = vmatprep.subr.mxu0 %v58
    %225 = vmatpush1.msra.mxu0 %v57
    %226 = vmatprep.subr.mxu0 %v60
    %227 = vmatpush1.msra.mxu0 %v59
    %228 = vmatprep.subr.mxu0 %v62
    %229 = vmatpush1.msra.mxu0 %v61
    %230 = vmatprep.subr.mxu0 %v64
    %231 = vmatpush1.msra.mxu0 %v63
    %232 = vmatprep.subr.mxu0 %v66
    %233 = vmatpush1.msra.mxu0 %v65
    %234 = vmatprep.subr.mxu0 0.0
    %235 = vmatpush1.msra.mxu0 0.0
    %236 = vmatprep.subr.mxu0 0.0
    %237 = vmatpush1.msra.mxu0 0.0
    %238 = vmatprep.subr.mxu0 0.0
    %239 = vmatpush1.msra.mxu0 0.0
    %240 = vmatprep.subr.mxu0 0.0
    %241 = vmatpush1.msra.mxu0 0.0
    %242 = vmatprep.subr.mxu0 0.0
    %243 = vmatpush1.msra.mxu0 0.0
    %244 = vmatprep.subr.mxu0 0.0
    %245 = vmatpush1.msra.mxu0 0.0
    %246 = vmatprep.subr.mxu0 0.0
    %247 = vmatpush1.msra.mxu0 0.0
    %248 = vmatprep.subr.mxu0 0.0
    %249 = vmatpush1.msra.mxu0 0.0
    %250 = vmatprep.subr.mxu0 0.0
    %251 = vmatpush1.msra.mxu0 0.0
    %252 = vmatprep.subr.mxu0 0.0
    %253 = vmatpush1.msra.mxu0 0.0
    %254 = vmatprep.subr.mxu0 0.0
    %255 = vmatpush1.msra.mxu0 0.0
    %256 = vmatprep.subr.mxu0 0.0
    %257 = vmatpush1.msra.mxu0 0.0
    %258 = vmatprep.subr.mxu0 0.0
    %259 = vmatpush1.msra.mxu0 0.0
    %260 = vmatprep.subr.mxu0 0.0
    %261 = vmatpush1.msra.mxu0 0.0
    %262 = vmatprep.subr.mxu0 0.0
    %263 = vmatpush1.msra.mxu0 0.0
    %264 = vmatprep.subr.mxu0 0.0
    %265 = vmatpush1.msra.mxu0 0.0
    %266 = vmatprep.subr.mxu0 0.0
    %267 = vmatpush1.msra.mxu0 0.0
    %268 = vmatprep.subr.mxu0 0.0
    %269 = vmatpush1.msra.mxu0 0.0
    %270 = vmatprep.subr.mxu0 0.0
    %271 = vmatpush1.msra.mxu0 0.0
    %272 = vmatprep.subr.mxu0 0.0
    %273 = vmatpush1.msra.mxu0 0.0
    %274 = vmatprep.mubr.f32.mxu0 0.0
    %275 = vmatmul.mubr.f32.gmra.mrb[0].mxu0 %v199
    %v276 = vpop.f32.mrb[0].mxu0
    %v277 = vadd.f32 %v176, %v276
    %v278 = vpop.f32.mrb[0].mxu0
    %v279 = vadd.f32 %v178, %v278
    %280 = vmatprep.mubr.f32.mxu0 0.0
    %281 = vmatmul.mubr.f32.gmra.mrb[0].mxu0 %v202
    %v282 = vpop.f32.mrb[0].mxu0
    %v283 = vadd.f32 %v182, %v282
    %v284 = vpop.f32.mrb[0].mxu0
    %v285 = vadd.f32 %v184, %v284
    %286 = vmatprep.mubr.f32.mxu0 0.0
    %287 = vmatmul.mubr.f32.gmra.mrb[0].mxu0 %v205
    %v288 = vpop.f32.mrb[0].mxu0
    %v289 = vadd.f32 %v188, %v288
    %v290 = vpop.f32.mrb[0].mxu0
    %v291 = vadd.f32 %v190, %v290
    %292 = vmatprep.mubr.f32.mxu0 0.0
    %293 = vmatmul.mubr.f32.gmra.mrb[0].mxu0 %v208
    %v294 = vpop.f32.mrb[0].mxu0
    %v295 = vadd.f32 %v194, %v294
    %v296 = vpop.f32.mrb[0].mxu0
    %v297 = vadd.f32 %v196, %v296
    %298 = vdwg.mxu0
    %v299 = vld [vmem:[%s0 + $0x2] sm:$0xff]
    %v300 = vld [vmem:[%s0 + $0xa] sm:$0xff]
    %v301 = vld [vmem:[%s0 + $0x12] sm:$0xff]
    %v302 = vld [vmem:[%s0 + $0x1a] sm:$0xf]
    %s303 = scalar_lea.vmem %s1, 384
    %v304 = vld [vmem:[%s303] sm:$0xff]
    %v305 = vld [vmem:[%s303 + $0x8] sm:$0xff]
    %v306 = vld [vmem:[%s303 + $0x10] sm:$0xff]
    %v307 = vld [vmem:[%s303 + $0x18] sm:$0xff]
    %v308 = vld [vmem:[%s303 + $0x20] sm:$0xff]
    %v309 = vld [vmem:[%s303 + $0x28] sm:$0xff]
    %v310 = vld [vmem:[%s303 + $0x30] sm:$0xff]
    %v311 = vld [vmem:[%s303 + $0x38] sm:$0xff]
    %v312 = vld [vmem:[%s303 + $0x40] sm:$0xff]
    %v313 = vld [vmem:[%s303 + $0x48] sm:$0xff]
    %v314 = vld [vmem:[%s303 + $0x50] sm:$0xff]
    %v315 = vld [vmem:[%s303 + $0x58] sm:$0xff]
    %v316 = vld [vmem:[%s303 + $0x60] sm:$0xff]
    %v317 = vld [vmem:[%s303 + $0x68] sm:$0xff]
    %v318 = vld [vmem:[%s303 + $0x70] sm:$0xff]
    %v319 = vld [vmem:[%s303 + $0x78] sm:$0xff]
    %v320 = vld [vmem:[%s303 + $0x80] sm:$0xff]
    %v321 = vld [vmem:[%s303 + $0x88] sm:$0xff]
    %v322 = vld [vmem:[%s303 + $0x90] sm:$0xff]
    %v323 = vld [vmem:[%s303 + $0x98] sm:$0xff]
    %v324 = vld [vmem:[%s303 + $0xa0] sm:$0xff]
    %v325 = vld [vmem:[%s303 + $0xa8] sm:$0xff]
    %v326 = vld [vmem:[%s303 + $0xb0] sm:$0xff]
    %v327 = vld [vmem:[%s303 + $0xb8] sm:$0xff]
    %v329 = vsel %vm96, %v299, 0
    %v332 = vsel %vm96, %v300, 0
    %v335 = vsel %vm96, %v301, 0
    %v338 = vsel %vm96, %v302, 0
    %340 = vmatprep.subr.mxu0 %v305
    %341 = vmatpush1.msra.mxu0 %v304
    %342 = vmatprep.subr.mxu0 %v307
    %343 = vmatpush1.msra.mxu0 %v306
    %344 = vmatprep.subr.mxu0 %v309
    %345 = vmatpush1.msra.mxu0 %v308
    %346 = vmatprep.subr.mxu0 %v311
    %347 = vmatpush1.msra.mxu0 %v310
    %348 = vmatprep.subr.mxu0 %v313
    %349 = vmatpush1.msra.mxu0 %v312
    %350 = vmatprep.subr.mxu0 %v315
    %351 = vmatpush1.msra.mxu0 %v314
    %352 = vmatprep.subr.mxu0 %v317
    %353 = vmatpush1.msra.mxu0 %v316
    %354 = vmatprep.subr.mxu0 %v319
    %355 = vmatpush1.msra.mxu0 %v318
    %356 = vmatprep.subr.mxu0 %v321
    %357 = vmatpush1.msra.mxu0 %v320
    %358 = vmatprep.subr.mxu0 %v323
    %359 = vmatpush1.msra.mxu0 %v322
    %360 = vmatprep.subr.mxu0 %v325
    %361 = vmatpush1.msra.mxu0 %v324
    %362 = vmatprep.subr.mxu0 %v327
    %363 = vmatpush1.msra.mxu0 %v326
    %364 = vmatprep.subr.mxu0 0.0
    %365 = vmatpush1.msra.mxu0 0.0
    %366 = vmatprep.subr.mxu0 0.0
    %367 = vmatpush1.msra.mxu0 0.0
    %368 = vmatprep.subr.mxu0 0.0
    %369 = vmatpush1.msra.mxu0 0.0
    %370 = vmatprep.subr.mxu0 0.0
    %371 = vmatpush1.msra.mxu0 0.0
    %372 = vmatprep.subr.mxu0 0.0
    %373 = vmatpush1.msra.mxu0 0.0
    %374 = vmatprep.subr.mxu0 0.0
    %375 = vmatpush1.msra.mxu0 0.0
    %376 = vmatprep.subr.mxu0 0.0
    %377 = vmatpush1.msra.mxu0 0.0
    %378 = vmatprep.subr.mxu0 0.0
    %379 = vmatpush1.msra.mxu0 0.0
    %380 = vmatprep.subr.mxu0 0.0
    %381 = vmatpush1.msra.mxu0 0.0
    %382 = vmatprep.subr.mxu0 0.0
    %383 = vmatpush1.msra.mxu0 0.0
    %384 = vmatprep.subr.mxu0 0.0
    %385 = vmatpush1.msra.mxu0 0.0
    %386 = vmatprep.subr.mxu0 0.0
    %387 = vmatpush1.msra.mxu0 0.0
    %388 = vmatprep.subr.mxu0 0.0
    %389 = vmatpush1.msra.mxu0 0.0
    %390 = vmatprep.subr.mxu0 0.0
    %391 = vmatpush1.msra.mxu0 0.0
    %392 = vmatprep.subr.mxu0 0.0
    %393 = vmatpush1.msra.mxu0 0.0
    %394 = vmatprep.subr.mxu0 0.0
    %395 = vmatpush1.msra.mxu0 0.0
    %396 = vmatprep.subr.mxu0 0.0
    %397 = vmatpush1.msra.mxu0 0.0
    %398 = vmatprep.subr.mxu0 0.0
    %399 = vmatpush1.msra.mxu0 0.0
    %400 = vmatprep.subr.mxu0 0.0
    %401 = vmatpush1.msra.mxu0 0.0
    %402 = vmatprep.subr.mxu0 0.0
    %403 = vmatpush1.msra.mxu0 0.0
    %404 = vmatprep.mubr.f32.mxu0 0.0
    %405 = vmatmul.mubr.f32.gmra.mrb[0].mxu0 %v329
    %v406 = vpop.f32.mrb[0].mxu0
    %v407 = vadd.f32 0.0, %v406
    %v408 = vpop.f32.mrb[0].mxu0
    %v409 = vadd.f32 0.0, %v408
    %410 = vmatprep.mubr.f32.mxu0 0.0
    %411 = vmatmul.mubr.f32.gmra.mrb[0].mxu0 %v332
    %v412 = vpop.f32.mrb[0].mxu0
    %v413 = vadd.f32 0.0, %v412
    %v414 = vpop.f32.mrb[0].mxu0
    %v415 = vadd.f32 0.0, %v414
    %416 = vmatprep.mubr.f32.mxu0 0.0
    %417 = vmatmul.mubr.f32.gmra.mrb[0].mxu0 %v335
    %v418 = vpop.f32.mrb[0].mxu0
    %v419 = vadd.f32 0.0, %v418
    %v420 = vpop.f32.mrb[0].mxu0
    %v421 = vadd.f32 0.0, %v420
    %422 = vmatprep.mubr.f32.mxu0 0.0
    %423 = vmatmul.mubr.f32.gmra.mrb[0].mxu0 %v338
    %v424 = vpop.f32.mrb[0].mxu0
    %v425 = vadd.f32 0.0, %v424
    %v426 = vpop.f32.mrb[0].mxu0
    %v427 = vadd.f32 0.0, %v426
    %428 = vdwg.mxu0
    %v429 = vadd.f32 %v277, %v407
    %v430 = vadd.f32 %v279, %v409
    %v431 = vadd.f32 %v283, %v413
    %v432 = vadd.f32 %v285, %v415
    %v433 = vadd.f32 %v289, %v419
    %v434 = vadd.f32 %v291, %v421
    %v435 = vadd.f32 %v295, %v425
    %v436 = vadd.f32 %v297, %v427
    %v437 = vld [vmem:[%s0 + $0x3] sm:$0xff]
    %v438 = vld [vmem:[%s0 + $0xb] sm:$0xff]
    %v439 = vld [vmem:[%s0 + $0x13] sm:$0xff]
    %v440 = vld [vmem:[%s0 + $0x1b] sm:$0xf]
    %s441 = scalar_lea.vmem %s1, 576
    %v442 = vld [vmem:[%s441] sm:$0xff]
    %v443 = vld [vmem:[%s441 + $0x8] sm:$0xff]
    %v444 = vld [vmem:[%s441 + $0x10] sm:$0xff]
    %v445 = vld [vmem:[%s441 + $0x18] sm:$0xff]
    %v446 = vld [vmem:[%s441 + $0x20] sm:$0xff]
    %v447 = vld [vmem:[%s441 + $0x28] sm:$0xff]
    %v448 = vld [vmem:[%s441 + $0x30] sm:$0xff]
    %v449 = vld [vmem:[%s441 + $0x38] sm:$0xff]
    %v450 = vld [vmem:[%s441 + $0x40] sm:$0xff]
    %v451 = vld [vmem:[%s441 + $0x48] sm:$0xff]
    %v452 = vld [vmem:[%s441 + $0x50] sm:$0xff]
    %v453 = vld [vmem:[%s441 + $0x58] sm:$0xff]
    %v454 = vld [vmem:[%s441 + $0x60] sm:$0xff]
    %v455 = vld [vmem:[%s441 + $0x68] sm:$0xff]
    %v456 = vld [vmem:[%s441 + $0x70] sm:$0xff]
    %v457 = vld [vmem:[%s441 + $0x78] sm:$0xff]
    %v458 = vld [vmem:[%s441 + $0x80] sm:$0xff]
    %v459 = vld [vmem:[%s441 + $0x88] sm:$0xff]
    %v460 = vld [vmem:[%s441 + $0x90] sm:$0xff]
    %v461 = vld [vmem:[%s441 + $0x98] sm:$0xff]
    %v462 = vld [vmem:[%s441 + $0xa0] sm:$0xff]
    %v463 = vld [vmem:[%s441 + $0xa8] sm:$0xff]
    %v464 = vld [vmem:[%s441 + $0xb0] sm:$0xff]
    %v465 = vld [vmem:[%s441 + $0xb8] sm:$0xff]
    %v467 = vsel %vm96, %v437, 0
    %v470 = vsel %vm96, %v438, 0
    %v473 = vsel %vm96, %v439, 0
    %v476 = vsel %vm96, %v440, 0
    %478 = vmatprep.subr.mxu0 %v443
    %479 = vmatpush1.msra.mxu0 %v442
    %480 = vmatprep.subr.mxu0 %v445
    %481 = vmatpush1.msra.mxu0 %v444
    %482 = vmatprep.subr.mxu0 %v447
    %483 = vmatpush1.msra.mxu0 %v446
    %484 = vmatprep.subr.mxu0 %v449
    %485 = vmatpush1.msra.mxu0 %v448
    %486 = vmatprep.subr.mxu0 %v451
    %487 = vmatpush1.msra.mxu0 %v450
    %488 = vmatprep.subr.mxu0 %v453
    %489 = vmatpush1.msra.mxu0 %v452
    %490 = vmatprep.subr.mxu0 %v455
    %491 = vmatpush1.msra.mxu0 %v454
    %492 = vmatprep.subr.mxu0 %v457
    %493 = vmatpush1.msra.mxu0 %v456
    %494 = vmatprep.subr.mxu0 %v459
    %495 = vmatpush1.msra.mxu0 %v458
    %496 = vmatprep.subr.mxu0 %v461
    %497 = vmatpush1.msra.mxu0 %v460
    %498 = vmatprep.subr.mxu0 %v463
    %499 = vmatpush1.msra.mxu0 %v462
    %500 = vmatprep.subr.mxu0 %v465
    %501 = vmatpush1.msra.mxu0 %v464
    %502 = vmatprep.subr.mxu0 0.0
    %503 = vmatpush1.msra.mxu0 0.0
    %504 = vmatprep.subr.mxu0 0.0
    %505 = vmatpush1.msra.mxu0 0.0
    %506 = vmatprep.subr.mxu0 0.0
    %507 = vmatpush1.msra.mxu0 0.0
    %508 = vmatprep.subr.mxu0 0.0
    %509 = vmatpush1.msra.mxu0 0.0
    %510 = vmatprep.subr.mxu0 0.0
    %511 = vmatpush1.msra.mxu0 0.0
    %512 = vmatprep.subr.mxu0 0.0
    %513 = vmatpush1.msra.mxu0 0.0
    %514 = vmatprep.subr.mxu0 0.0
    %515 = vmatpush1.msra.mxu0 0.0
    %516 = vmatprep.subr.mxu0 0.0
    %517 = vmatpush1.msra.mxu0 0.0
    %518 = vmatprep.subr.mxu0 0.0
    %519 = vmatpush1.msra.mxu0 0.0
    %520 = vmatprep.subr.mxu0 0.0
    %521 = vmatpush1.msra.mxu0 0.0
    %522 = vmatprep.subr.mxu0 0.0
    %523 = vmatpush1.msra.mxu0 0.0
    %524 = vmatprep.subr.mxu0 0.0
    %525 = vmatpush1.msra.mxu0 0.0
    %526 = vmatprep.subr.mxu0 0.0
    %527 = vmatpush1.msra.mxu0 0.0
    %528 = vmatprep.subr.mxu0 0.0
    %529 = vmatpush1.msra.mxu0 0.0
    %530 = vmatprep.subr.mxu0 0.0
    %531 = vmatpush1.msra.mxu0 0.0
    %532 = vmatprep.subr.mxu0 0.0
    %533 = vmatpush1.msra.mxu0 0.0
    %534 = vmatprep.subr.mxu0 0.0
    %535 = vmatpush1.msra.mxu0 0.0
    %536 = vmatprep.subr.mxu0 0.0
    %537 = vmatpush1.msra.mxu0 0.0
    %538 = vmatprep.subr.mxu0 0.0
    %539 = vmatpush1.msra.mxu0 0.0
    %540 = vmatprep.subr.mxu0 0.0
    %541 = vmatpush1.msra.mxu0 0.0
    %542 = vmatprep.mubr.f32.mxu0 0.0
    %543 = vmatmul.mubr.f32.gmra.mrb[0].mxu0 %v467
    %v544 = vpop.f32.mrb[0].mxu0
    %v545 = vadd.f32 0.0, %v544
    %v546 = vpop.f32.mrb[0].mxu0
    %v547 = vadd.f32 0.0, %v546
    %548 = vmatprep.mubr.f32.mxu0 0.0
    %549 = vmatmul.mubr.f32.gmra.mrb[0].mxu0 %v470
    %v550 = vpop.f32.mrb[0].mxu0
    %v551 = vadd.f32 0.0, %v550
    %v552 = vpop.f32.mrb[0].mxu0
    %v553 = vadd.f32 0.0, %v552
    %554 = vmatprep.mubr.f32.mxu0 0.0
    %555 = vmatmul.mubr.f32.gmra.mrb[0].mxu0 %v473
    %v556 = vpop.f32.mrb[0].mxu0
    %v557 = vadd.f32 0.0, %v556
    %v558 = vpop.f32.mrb[0].mxu0
    %v559 = vadd.f32 0.0, %v558
    %560 = vmatprep.mubr.f32.mxu0 0.0
    %561 = vmatmul.mubr.f32.gmra.mrb[0].mxu0 %v476
    %v562 = vpop.f32.mrb[0].mxu0
    %v563 = vadd.f32 0.0, %v562
    %v564 = vpop.f32.mrb[0].mxu0
    %v565 = vadd.f32 0.0, %v564
    %566 = vdwg.mxu0
    %v567 = vadd.f32 %v429, %v545
    %v568 = vadd.f32 %v430, %v547
    %v569 = vadd.f32 %v431, %v551
    %v570 = vadd.f32 %v432, %v553
    %v571 = vadd.f32 %v433, %v557
    %v572 = vadd.f32 %v434, %v559
    %v573 = vadd.f32 %v435, %v563
    %v574 = vadd.f32 %v436, %v565
    %v575 = vld [vmem:[%s0 + $0x4] sm:$0xff]
    %v576 = vld [vmem:[%s0 + $0xc] sm:$0xff]
    %v577 = vld [vmem:[%s0 + $0x14] sm:$0xff]
    %v578 = vld [vmem:[%s0 + $0x1c] sm:$0xf]
    %s579 = scalar_lea.vmem %s1, 768
    %v580 = vld [vmem:[%s579] sm:$0xff]
    %v581 = vld [vmem:[%s579 + $0x8] sm:$0xff]
    %v582 = vld [vmem:[%s579 + $0x10] sm:$0xff]
    %v583 = vld [vmem:[%s579 + $0x18] sm:$0xff]
    %v584 = vld [vmem:[%s579 + $0x20] sm:$0xff]
    %v585 = vld [vmem:[%s579 + $0x28] sm:$0xff]
    %v586 = vld [vmem:[%s579 + $0x30] sm:$0xff]
    %v587 = vld [vmem:[%s579 + $0x38] sm:$0xff]
    %v588 = vld [vmem:[%s579 + $0x40] sm:$0xff]
    %v589 = vld [vmem:[%s579 + $0x48] sm:$0xff]
    %v590 = vld [vmem:[%s579 + $0x50] sm:$0xff]
    %v591 = vld [vmem:[%s579 + $0x58] sm:$0xff]
    %v592 = vld [vmem:[%s579 + $0x60] sm:$0xff]
    %v593 = vld [vmem:[%s579 + $0x68] sm:$0xff]
    %v594 = vld [vmem:[%s579 + $0x70] sm:$0xff]
    %v595 = vld [vmem:[%s579 + $0x78] sm:$0xff]
    %v596 = vld [vmem:[%s579 + $0x80] sm:$0xff]
    %v597 = vld [vmem:[%s579 + $0x88] sm:$0xff]
    %v598 = vld [vmem:[%s579 + $0x90] sm:$0xff]
    %v599 = vld [vmem:[%s579 + $0x98] sm:$0xff]
    %v600 = vld [vmem:[%s579 + $0xa0] sm:$0xff]
    %v601 = vld [vmem:[%s579 + $0xa8] sm:$0xff]
    %v602 = vld [vmem:[%s579 + $0xb0] sm:$0xff]
    %v603 = vld [vmem:[%s579 + $0xb8] sm:$0xff]
    %v605 = vsel %vm96, %v575, 0
    %v608 = vsel %vm96, %v576, 0
    %v611 = vsel %vm96, %v577, 0
    %v614 = vsel %vm96, %v578, 0
    %616 = vmatprep.subr.mxu0 %v581
    %617 = vmatpush1.msra.mxu0 %v580
    %618 = vmatprep.subr.mxu0 %v583
    %619 = vmatpush1.msra.mxu0 %v582
    %620 = vmatprep.subr.mxu0 %v585
    %621 = vmatpush1.msra.mxu0 %v584
    %622 = vmatprep.subr.mxu0 %v587
    %623 = vmatpush1.msra.mxu0 %v586
    %624 = vmatprep.subr.mxu0 %v589
    %625 = vmatpush1.msra.mxu0 %v588
    %626 = vmatprep.subr.mxu0 %v591
    %627 = vmatpush1.msra.mxu0 %v590
    %628 = vmatprep.subr.mxu0 %v593
    %629 = vmatpush1.msra.mxu0 %v592
    %630 = vmatprep.subr.mxu0 %v595
    %631 = vmatpush1.msra.mxu0 %v594
    %632 = vmatprep.subr.mxu0 %v597
    %633 = vmatpush1.msra.mxu0 %v596
    %634 = vmatprep.subr.mxu0 %v599
    %635 = vmatpush1.msra.mxu0 %v598
    %636 = vmatprep.subr.mxu0 %v601
    %637 = vmatpush1.msra.mxu0 %v600
    %638 = vmatprep.subr.mxu0 %v603
    %639 = vmatpush1.msra.mxu0 %v602
    %640 = vmatprep.subr.mxu0 0.0
    %641 = vmatpush1.msra.mxu0 0.0
    %642 = vmatprep.subr.mxu0 0.0
    %643 = vmatpush1.msra.mxu0 0.0
    %644 = vmatprep.subr.mxu0 0.0
    %645 = vmatpush1.msra.mxu0 0.0
    %646 = vmatprep.subr.mxu0 0.0
    %647 = vmatpush1.msra.mxu0 0.0
    %648 = vmatprep.subr.mxu0 0.0
    %649 = vmatpush1.msra.mxu0 0.0
    %650 = vmatprep.subr.mxu0 0.0
    %651 = vmatpush1.msra.mxu0 0.0
    %652 = vmatprep.subr.mxu0 0.0
    %653 = vmatpush1.msra.mxu0 0.0
    %654 = vmatprep.subr.mxu0 0.0
    %655 = vmatpush1.msra.mxu0 0.0
    %656 = vmatprep.subr.mxu0 0.0
    %657 = vmatpush1.msra.mxu0 0.0
    %658 = vmatprep.subr.mxu0 0.0
    %659 = vmatpush1.msra.mxu0 0.0
    %660 = vmatprep.subr.mxu0 0.0
    %661 = vmatpush1.msra.mxu0 0.0
    %662 = vmatprep.subr.mxu0 0.0
    %663 = vmatpush1.msra.mxu0 0.0
    %664 = vmatprep.subr.mxu0 0.0
    %665 = vmatpush1.msra.mxu0 0.0
    %666 = vmatprep.subr.mxu0 0.0
    %667 = vmatpush1.msra.mxu0 0.0
    %668 = vmatprep.subr.mxu0 0.0
    %669 = vmatpush1.msra.mxu0 0.0
    %670 = vmatprep.subr.mxu0 0.0
    %671 = vmatpush1.msra.mxu0 0.0
    %672 = vmatprep.subr.mxu0 0.0
    %673 = vmatpush1.msra.mxu0 0.0
    %674 = vmatprep.subr.mxu0 0.0
    %675 = vmatpush1.msra.mxu0 0.0
    %676 = vmatprep.subr.mxu0 0.0
    %677 = vmatpush1.msra.mxu0 0.0
    %678 = vmatprep.subr.mxu0 0.0
    %679 = vmatpush1.msra.mxu0 0.0
    %680 = vmatprep.mubr.f32.mxu0 0.0
    %681 = vmatmul.mubr.f32.gmra.mrb[0].mxu0 %v605
    %v682 = vpop.f32.mrb[0].mxu0
    %v683 = vadd.f32 0.0, %v682
    %v684 = vpop.f32.mrb[0].mxu0
    %v685 = vadd.f32 0.0, %v684
    %686 = vmatprep.mubr.f32.mxu0 0.0
    %687 = vmatmul.mubr.f32.gmra.mrb[0].mxu0 %v608
    %v688 = vpop.f32.mrb[0].mxu0
    %v689 = vadd.f32 0.0, %v688
    %v690 = vpop.f32.mrb[0].mxu0
    %v691 = vadd.f32 0.0, %v690
    %692 = vmatprep.mubr.f32.mxu0 0.0
    %693 = vmatmul.mubr.f32.gmra.mrb[0].mxu0 %v611
    %v694 = vpop.f32.mrb[0].mxu0
    %v695 = vadd.f32 0.0, %v694
    %v696 = vpop.f32.mrb[0].mxu0
    %v697 = vadd.f32 0.0, %v696
    %698 = vmatprep.mubr.f32.mxu0 0.0
    %699 = vmatmul.mubr.f32.gmra.mrb[0].mxu0 %v614
    %v700 = vpop.f32.mrb[0].mxu0
    %v701 = vadd.f32 0.0, %v700
    %v702 = vpop.f32.mrb[0].mxu0
    %v703 = vadd.f32 0.0, %v702
    %704 = vdwg.mxu0
    %v705 = vadd.f32 %v567, %v683
    %v706 = vadd.f32 %v568, %v685
    %v707 = vadd.f32 %v569, %v689
    %v708 = vadd.f32 %v570, %v691
    %v709 = vadd.f32 %v571, %v695
    %v710 = vadd.f32 %v572, %v697
    %v711 = vadd.f32 %v573, %v701
    %v712 = vadd.f32 %v574, %v703
    %v713 = vld [vmem:[%s2] sm:$0x3]
    %v715 = vlaneseq
    %v716 = vshrl.u32 %v715, 7
    %v717 = vsub.s32 0, %v716
    %v718 = vrot.slane %v713, %v717
    %v719 = vlaneseq
    %v720 = vshrl.u32 %v719, 7
    %v721 = vsub.s32 1, %v720
    %v722 = vrot.slane %v713, %v721
    %v725 = vadd.f32 %v705, %v718
    %v726 = vadd.f32 %v706, %v722
    %v727 = vadd.f32 %v707, %v718
    %v728 = vadd.f32 %v708, %v722
    %v729 = vadd.f32 %v709, %v718
    %v730 = vadd.f32 %v710, %v722
    %v731 = vadd.f32 %v711, %v718
    %v732 = vadd.f32 %v712, %v722
    %v733 = vmax.f32 %v725, 0.0
    %v734 = vmax.f32 %v726, 0.0
    %v735 = vmax.f32 %v727, 0.0
    %v736 = vmax.f32 %v728, 0.0
    %v737 = vmax.f32 %v729, 0.0
    %v738 = vmax.f32 %v730, 0.0
    %v739 = vmax.f32 %v731, 0.0
    %v740 = vmax.f32 %v732, 0.0
    %v749 = vcombine.low %v733, %v734
    %v750 = vcombine.high %v733, %v734
    %v752 = vunpack.c.l.s4 1983009808
    %v753 = vunpack.c.0.s8 %v752
    %v754 = vlaneseq
    %v755 = vshrl.u32 %v754, 7
    %v756 = vsub.s32 %v753, %v755
    %v757 = vrot.slane %v749, %v756
    %v759 = vunpack.c.l.s4 1983009808
    %v760 = vunpack.c.0.s8 %v759
    %v761 = vlaneseq
    %v762 = vshrl.u32 %v761, 7
    %v763 = vsub.s32 %v760, %v762
    %v764 = vrot.slane %v750, %v763
    %v765 = vcombine.high %v757, %v757
    %v766 = vcombine.high %v764, %v764
    %v767 = vcombine.low %v735, %v736
    %v768 = vcombine.high %v735, %v736
    %v770 = vunpack.c.l.s4 1983009808
    %v771 = vunpack.c.0.s8 %v770
    %v772 = vlaneseq
    %v773 = vshrl.u32 %v772, 7
    %v774 = vsub.s32 %v771, %v773
    %v775 = vrot.slane %v767, %v774
    %v777 = vunpack.c.l.s4 1983009808
    %v778 = vunpack.c.0.s8 %v777
    %v779 = vlaneseq
    %v780 = vshrl.u32 %v779, 7
    %v781 = vsub.s32 %v778, %v780
    %v782 = vrot.slane %v768, %v781
    %v783 = vcombine.high %v775, %v775
    %v784 = vcombine.high %v782, %v782
    %v785 = vcombine.low %v737, %v738
    %v786 = vcombine.high %v737, %v738
    %v788 = vunpack.c.l.s4 1983009808
    %v789 = vunpack.c.0.s8 %v788
    %v790 = vlaneseq
    %v791 = vshrl.u32 %v790, 7
    %v792 = vsub.s32 %v789, %v791
    %v793 = vrot.slane %v785, %v792
    %v795 = vunpack.c.l.s4 1983009808
    %v796 = vunpack.c.0.s8 %v795
    %v797 = vlaneseq
    %v798 = vshrl.u32 %v797, 7
    %v799 = vsub.s32 %v796, %v798
    %v800 = vrot.slane %v786, %v799
    %v801 = vcombine.high %v793, %v793
    %v802 = vcombine.high %v800, %v800
    %v803 = vcombine.low %v739, %v740
    %v805 = vunpack.c.l.s4 1983009808
    %v806 = vunpack.c.0.s8 %v805
    %v807 = vlaneseq
    %v808 = vshrl.u32 %v807, 7
    %v809 = vsub.s32 %v806, %v808
    %v810 = vrot.slane %v803, %v809
    %v811 = vcombine.high %v810, %v810
    %v813 = vunpack.c.l.s4 1983009808
    %v814 = vunpack.c.0.s8 %v813
    %v815 = vlaneseq
    %v816 = vshrl.u32 %v815, 7
    %v817 = vsub.s32 %v814, %v816
    %v818 = vrot.slane %v757, %v817
    %v819 = vcombine.high %v818, %v818
    %v821 = vunpack.c.l.s4 1983009808
    %v822 = vunpack.c.0.s8 %v821
    %v823 = vlaneseq
    %v824 = vshrl.u32 %v823, 7
    %v825 = vsub.s32 %v822, %v824
    %v826 = vrot.slane %v765, %v825
    %v827 = vcombine.high %v826, %v826
    %v829 = vunpack.c.l.s4 1983009808
    %v830 = vunpack.c.0.s8 %v829
    %v831 = vlaneseq
    %v832 = vshrl.u32 %v831, 7
    %v833 = vsub.s32 %v830, %v832
    %v834 = vrot.slane %v764, %v833
    %v835 = vcombine.high %v834, %v834
    %v837 = vunpack.c.l.s4 1983009808
    %v838 = vunpack.c.0.s8 %v837
    %v839 = vlaneseq
    %v840 = vshrl.u32 %v839, 7
    %v841 = vsub.s32 %v838, %v840
    %v842 = vrot.slane %v766, %v841
    %v843 = vcombine.high %v842, %v842
    %v845 = vunpack.c.l.s4 1983009808
    %v846 = vunpack.c.0.s8 %v845
    %v847 = vlaneseq
    %v848 = vshrl.u32 %v847, 7
    %v849 = vsub.s32 %v846, %v848
    %v850 = vrot.slane %v775, %v849
    %v851 = vcombine.high %v850, %v850
    %v853 = vunpack.c.l.s4 1983009808
    %v854 = vunpack.c.0.s8 %v853
    %v855 = vlaneseq
    %v856 = vshrl.u32 %v855, 7
    %v857 = vsub.s32 %v854, %v856
    %v858 = vrot.slane %v783, %v857
    %v859 = vcombine.high %v858, %v858
    %v861 = vunpack.c.l.s4 1983009808
    %v862 = vunpack.c.0.s8 %v861
    %v863 = vlaneseq
    %v864 = vshrl.u32 %v863, 7
    %v865 = vsub.s32 %v862, %v864
    %v866 = vrot.slane %v782, %v865
    %v867 = vcombine.high %v866, %v866
    %v869 = vunpack.c.l.s4 1983009808
    %v870 = vunpack.c.0.s8 %v869
    %v871 = vlaneseq
    %v872 = vshrl.u32 %v871, 7
    %v873 = vsub.s32 %v870, %v872
    %v874 = vrot.slane %v784, %v873
    %v875 = vcombine.high %v874, %v874
    %v877 = vunpack.c.l.s4 1983009808
    %v878 = vunpack.c.0.s8 %v877
    %v879 = vlaneseq
    %v880 = vshrl.u32 %v879, 7
    %v881 = vsub.s32 %v878, %v880
    %v882 = vrot.slane %v793, %v881
    %v883 = vcombine.high %v882, %v882
    %v885 = vunpack.c.l.s4 1983009808
    %v886 = vunpack.c.0.s8 %v885
    %v887 = vlaneseq
    %v888 = vshrl.u32 %v887, 7
    %v889 = vsub.s32 %v886, %v888
    %v890 = vrot.slane %v801, %v889
    %v891 = vcombine.high %v890, %v890
    %v893 = vunpack.c.l.s4 1983009808
    %v894 = vunpack.c.0.s8 %v893
    %v895 = vlaneseq
    %v896 = vshrl.u32 %v895, 7
    %v897 = vsub.s32 %v894, %v896
    %v898 = vrot.slane %v800, %v897
    %v899 = vcombine.high %v898, %v898
    %v901 = vunpack.c.l.s4 1983009808
    %v902 = vunpack.c.0.s8 %v901
    %v903 = vlaneseq
    %v904 = vshrl.u32 %v903, 7
    %v905 = vsub.s32 %v902, %v904
    %v906 = vrot.slane %v802, %v905
    %v907 = vcombine.high %v906, %v906
    %v909 = vunpack.c.l.s4 1983009808
    %v910 = vunpack.c.0.s8 %v909
    %v911 = vlaneseq
    %v912 = vshrl.u32 %v911, 7
    %v913 = vsub.s32 %v910, %v912
    %v914 = vrot.slane %v810, %v913
    %v915 = vcombine.high %v914, %v914
    %v917 = vunpack.c.l.s4 1983009808
    %v918 = vunpack.c.0.s8 %v917
    %v919 = vlaneseq
    %v920 = vshrl.u32 %v919, 7
    %v921 = vsub.s32 %v918, %v920
    %v922 = vrot.slane %v811, %v921
    %v923 = vcombine.high %v922, %v922
    %vm952 = vcmask 1041408
    %v953 = vsel %vm952, %v818, -inf
    %v954 = vrot.slane %v953, 4
    %v955 = vmax.f32 %v953, %v954
    %v956 = vrot.slane %v955, 2
    %v957 = vmax.f32 %v955, %v956
    %v958 = vrot.slane %v957, 1
    %v959 = vmax.f32 %v957, %v958
    %vm960 = vcmask 320512
    %v961 = vsel %vm960, %v819, -inf
    %v962 = vrot.slane %v961, 4
    %v963 = vmax.f32 %v961, %v962
    %v964 = vrot.slane %v963, 2
    %v965 = vmax.f32 %v963, %v964
    %v966 = vrot.slane %v965, 1
    %v967 = vmax.f32 %v965, %v966
    %v968 = vsel %vm952, %v826, -inf
    %v969 = vrot.slane %v968, 4
    %v970 = vmax.f32 %v968, %v969
    %v971 = vrot.slane %v970, 2
    %v972 = vmax.f32 %v970, %v971
    %v973 = vrot.slane %v972, 1
    %v974 = vmax.f32 %v972, %v973
    %v975 = vsel %vm960, %v827, -inf
    %v976 = vrot.slane %v975, 4
    %v977 = vmax.f32 %v975, %v976
    %v978 = vrot.slane %v977, 2
    %v979 = vmax.f32 %v977, %v978
    %v980 = vrot.slane %v979, 1
    %v981 = vmax.f32 %v979, %v980
    %v982 = vsel %vm952, %v834, -inf
    %v983 = vrot.slane %v982, 4
    %v984 = vmax.f32 %v982, %v983
    %v985 = vrot.slane %v984, 2
    %v986 = vmax.f32 %v984, %v985
    %v987 = vrot.slane %v986, 1
    %v988 = vmax.f32 %v986, %v987
    %v989 = vsel %vm960, %v835, -inf
    %v990 = vrot.slane %v989, 4
    %v991 = vmax.f32 %v989, %v990
    %v992 = vrot.slane %v991, 2
    %v993 = vmax.f32 %v991, %v992
    %v994 = vrot.slane %v993, 1
    %v995 = vmax.f32 %v993, %v994
    %v996 = vsel %vm952, %v842, -inf
    %v997 = vrot.slane %v996, 4
    %v998 = vmax.f32 %v996, %v997
    %v999 = vrot.slane %v998, 2
    %v1000 = vmax.f32 %v998, %v999
    %v1001 = vrot.slane %v1000, 1
    %v1002 = vmax.f32 %v1000, %v1001
    %v1003 = vsel %vm960, %v843, -inf
    %v1004 = vrot.slane %v1003, 4
    %v1005 = vmax.f32 %v1003, %v1004
    %v1006 = vrot.slane %v1005, 2
    %v1007 = vmax.f32 %v1005, %v1006
    %v1008 = vrot.slane %v1007, 1
    %v1009 = vmax.f32 %v1007, %v1008
    %v1010 = vsel %vm952, %v850, -inf
    %v1011 = vrot.slane %v1010, 4
    %v1012 = vmax.f32 %v1010, %v1011
    %v1013 = vrot.slane %v1012, 2
    %v1014 = vmax.f32 %v1012, %v1013
    %v1015 = vrot.slane %v1014, 1
    %v1016 = vmax.f32 %v1014, %v1015
    %v1017 = vsel %vm960, %v851, -inf
    %v1018 = vrot.slane %v1017, 4
    %v1019 = vmax.f32 %v1017, %v1018
    %v1020 = vrot.slane %v1019, 2
    %v1021 = vmax.f32 %v1019, %v1020
    %v1022 = vrot.slane %v1021, 1
    %v1023 = vmax.f32 %v1021, %v1022
    %v1024 = vsel %vm952, %v858, -inf
    %v1025 = vrot.slane %v1024, 4
    %v1026 = vmax.f32 %v1024, %v1025
    %v1027 = vrot.slane %v1026, 2
    %v1028 = vmax.f32 %v1026, %v1027
    %v1029 = vrot.slane %v1028, 1
    %v1030 = vmax.f32 %v1028, %v1029
    %v1031 = vsel %vm960, %v859, -inf
    %v1032 = vrot.slane %v1031, 4
    %v1033 = vmax.f32 %v1031, %v1032
    %v1034 = vrot.slane %v1033, 2
    %v1035 = vmax.f32 %v1033, %v1034
    %v1036 = vrot.slane %v1035, 1
    %v1037 = vmax.f32 %v1035, %v1036
    %v1038 = vsel %vm952, %v866, -inf
    %v1039 = vrot.slane %v1038, 4
    %v1040 = vmax.f32 %v1038, %v1039
    %v1041 = vrot.slane %v1040, 2
    %v1042 = vmax.f32 %v1040, %v1041
    %v1043 = vrot.slane %v1042, 1
    %v1044 = vmax.f32 %v1042, %v1043
    %v1045 = vsel %vm960, %v867, -inf
    %v1046 = vrot.slane %v1045, 4
    %v1047 = vmax.f32 %v1045, %v1046
    %v1048 = vrot.slane %v1047, 2
    %v1049 = vmax.f32 %v1047, %v1048
    %v1050 = vrot.slane %v1049, 1
    %v1051 = vmax.f32 %v1049, %v1050
    %v1052 = vsel %vm952, %v874, -inf
    %v1053 = vrot.slane %v1052, 4
    %v1054 = vmax.f32 %v1052, %v1053
    %v1055 = vrot.slane %v1054, 2
    %v1056 = vmax.f32 %v1054, %v1055
    %v1057 = vrot.slane %v1056, 1
    %v1058 = vmax.f32 %v1056, %v1057
    %v1059 = vsel %vm960, %v875, -inf
    %v1060 = vrot.slane %v1059, 4
    %v1061 = vmax.f32 %v1059, %v1060
    %v1062 = vrot.slane %v1061, 2
    %v1063 = vmax.f32 %v1061, %v1062
    %v1064 = vrot.slane %v1063, 1
    %v1065 = vmax.f32 %v1063, %v1064
    %v1066 = vsel %vm952, %v882, -inf
    %v1067 = vrot.slane %v1066, 4
    %v1068 = vmax.f32 %v1066, %v1067
    %v1069 = vrot.slane %v1068, 2
    %v1070 = vmax.f32 %v1068, %v1069
    %v1071 = vrot.slane %v1070, 1
    %v1072 = vmax.f32 %v1070, %v1071
    %v1073 = vsel %vm960, %v883, -inf
    %v1074 = vrot.slane %v1073, 4
    %v1075 = vmax.f32 %v1073, %v1074
    %v1076 = vrot.slane %v1075, 2
    %v1077 = vmax.f32 %v1075, %v1076
    %v1078 = vrot.slane %v1077, 1
    %v1079 = vmax.f32 %v1077, %v1078
    %v1080 = vsel %vm952, %v890, -inf
    %v1081 = vrot.slane %v1080, 4
    %v1082 = vmax.f32 %v1080, %v1081
    %v1083 = vrot.slane %v1082, 2
    %v1084 = vmax.f32 %v1082, %v1083
    %v1085 = vrot.slane %v1084, 1
    %v1086 = vmax.f32 %v1084, %v1085
    %v1087 = vsel %vm960, %v891, -inf
    %v1088 = vrot.slane %v1087, 4
    %v1089 = vmax.f32 %v1087, %v1088
    %v1090 = vrot.slane %v1089, 2
    %v1091 = vmax.f32 %v1089, %v1090
    %v1092 = vrot.slane %v1091, 1
    %v1093 = vmax.f32 %v1091, %v1092
    %v1094 = vsel %vm952, %v898, -inf
    %v1095 = vrot.slane %v1094, 4
    %v1096 = vmax.f32 %v1094, %v1095
    %v1097 = vrot.slane %v1096, 2
    %v1098 = vmax.f32 %v1096, %v1097
    %v1099 = vrot.slane %v1098, 1
    %v1100 = vmax.f32 %v1098, %v1099
    %v1101 = vsel %vm960, %v899, -inf
    %v1102 = vrot.slane %v1101, 4
    %v1103 = vmax.f32 %v1101, %v1102
    %v1104 = vrot.slane %v1103, 2
    %v1105 = vmax.f32 %v1103, %v1104
    %v1106 = vrot.slane %v1105, 1
    %v1107 = vmax.f32 %v1105, %v1106
    %v1108 = vsel %vm952, %v906, -inf
    %v1109 = vrot.slane %v1108, 4
    %v1110 = vmax.f32 %v1108, %v1109
    %v1111 = vrot.slane %v1110, 2
    %v1112 = vmax.f32 %v1110, %v1111
    %v1113 = vrot.slane %v1112, 1
    %v1114 = vmax.f32 %v1112, %v1113
    %v1115 = vsel %vm960, %v907, -inf
    %v1116 = vrot.slane %v1115, 4
    %v1117 = vmax.f32 %v1115, %v1116
    %v1118 = vrot.slane %v1117, 2
    %v1119 = vmax.f32 %v1117, %v1118
    %v1120 = vrot.slane %v1119, 1
    %v1121 = vmax.f32 %v1119, %v1120
    %v1122 = vsel %vm952, %v914, -inf
    %v1123 = vrot.slane %v1122, 4
    %v1124 = vmax.f32 %v1122, %v1123
    %v1125 = vrot.slane %v1124, 2
    %v1126 = vmax.f32 %v1124, %v1125
    %v1127 = vrot.slane %v1126, 1
    %v1128 = vmax.f32 %v1126, %v1127
    %v1129 = vsel %vm960, %v915, -inf
    %v1130 = vrot.slane %v1129, 4
    %v1131 = vmax.f32 %v1129, %v1130
    %v1132 = vrot.slane %v1131, 2
    %v1133 = vmax.f32 %v1131, %v1132
    %v1134 = vrot.slane %v1133, 1
    %v1135 = vmax.f32 %v1133, %v1134
    %v1136 = vsel %vm952, %v922, -inf
    %v1137 = vrot.slane %v1136, 4
    %v1138 = vmax.f32 %v1136, %v1137
    %v1139 = vrot.slane %v1138, 2
    %v1140 = vmax.f32 %v1138, %v1139
    %v1141 = vrot.slane %v1140, 1
    %v1142 = vmax.f32 %v1140, %v1141
    %v1143 = vsel %vm960, %v923, -inf
    %v1144 = vrot.slane %v1143, 4
    %v1145 = vmax.f32 %v1143, %v1144
    %v1146 = vrot.slane %v1145, 2
    %v1147 = vmax.f32 %v1145, %v1146
    %v1148 = vrot.slane %v1147, 1
    %v1149 = vmax.f32 %v1147, %v1148
    %1178 = vrot.lane.b32.xlu0 %v959, 127
    %v1179 = vpop.permute.xlu0 %1178
    %1180 = vrot.lane.b32.xlu0 %v967, 127
    %v1181 = vpop.permute.xlu0 %1180
    %1182 = vrot.lane.b32.xlu0 %v974, 127
    %v1183 = vpop.permute.xlu0 %1182
    %1184 = vrot.lane.b32.xlu0 %v981, 127
    %v1185 = vpop.permute.xlu0 %1184
    %1186 = vrot.lane.b32.xlu0 %v988, 127
    %v1187 = vpop.permute.xlu0 %1186
    %1188 = vrot.lane.b32.xlu0 %v995, 127
    %v1189 = vpop.permute.xlu0 %1188
    %1190 = vrot.lane.b32.xlu0 %v1002, 127
    %v1191 = vpop.permute.xlu0 %1190
    %1192 = vrot.lane.b32.xlu0 %v1009, 127
    %v1193 = vpop.permute.xlu0 %1192
    %1194 = vrot.lane.b32.xlu0 %v1016, 127
    %v1195 = vpop.permute.xlu0 %1194
    %1196 = vrot.lane.b32.xlu0 %v1023, 127
    %v1197 = vpop.permute.xlu0 %1196
    %1198 = vrot.lane.b32.xlu0 %v1030, 127
    %v1199 = vpop.permute.xlu0 %1198
    %1200 = vrot.lane.b32.xlu0 %v1037, 127
    %v1201 = vpop.permute.xlu0 %1200
    %1202 = vrot.lane.b32.xlu0 %v1044, 127
    %v1203 = vpop.permute.xlu0 %1202
    %1204 = vrot.lane.b32.xlu0 %v1051, 127
    %v1205 = vpop.permute.xlu0 %1204
    %1206 = vrot.lane.b32.xlu0 %v1058, 127
    %v1207 = vpop.permute.xlu0 %1206
    %1208 = vrot.lane.b32.xlu0 %v1065, 127
    %v1209 = vpop.permute.xlu0 %1208
    %1210 = vrot.lane.b32.xlu0 %v1072, 127
    %v1211 = vpop.permute.xlu0 %1210
    %1212 = vrot.lane.b32.xlu0 %v1079, 127
    %v1213 = vpop.permute.xlu0 %1212
    %1214 = vrot.lane.b32.xlu0 %v1086, 127
    %v1215 = vpop.permute.xlu0 %1214
    %1216 = vrot.lane.b32.xlu0 %v1093, 127
    %v1217 = vpop.permute.xlu0 %1216
    %1218 = vrot.lane.b32.xlu0 %v1100, 127
    %v1219 = vpop.permute.xlu0 %1218
    %1220 = vrot.lane.b32.xlu0 %v1107, 127
    %v1221 = vpop.permute.xlu0 %1220
    %1222 = vrot.lane.b32.xlu0 %v1114, 127
    %v1223 = vpop.permute.xlu0 %1222
    %1224 = vrot.lane.b32.xlu0 %v1121, 127
    %v1225 = vpop.permute.xlu0 %1224
    %1226 = vrot.lane.b32.xlu0 %v1128, 127
    %v1227 = vpop.permute.xlu0 %1226
    %1228 = vrot.lane.b32.xlu0 %v1135, 127
    %v1229 = vpop.permute.xlu0 %1228
    %1230 = vrot.lane.b32.xlu0 %v1142, 127
    %v1231 = vpop.permute.xlu0 %1230
    %1232 = vrot.lane.b32.xlu0 %v1149, 127
    %v1233 = vpop.permute.xlu0 %1232
    %vm1234 = vcmask 1039360
    %v1235 = vsel %vm1234, %v1179, %v1181
    %v1236 = vsel %vm1234, %v1183, %v1185
    %v1237 = vsel %vm1234, %v1187, %v1189
    %v1238 = vsel %vm1234, %v1191, %v1193
    %v1239 = vsel %vm1234, %v1195, %v1197
    %v1240 = vsel %vm1234, %v1199, %v1201
    %v1241 = vsel %vm1234, %v1203, %v1205
    %v1242 = vsel %vm1234, %v1207, %v1209
    %v1243 = vsel %vm1234, %v1211, %v1213
    %v1244 = vsel %vm1234, %v1215, %v1217
    %v1245 = vsel %vm1234, %v1219, %v1221
    %v1246 = vsel %vm1234, %v1223, %v1225
    %v1247 = vsel %vm1234, %v1227, %v1229
    %v1248 = vsel %vm1234, %v1231, %v1233
    %v1277 = vmax.f32 %v959, %v1235
    %v1278 = vmax.f32 %v967, %v1181
    %v1279 = vmax.f32 %v974, %v1236
    %v1280 = vmax.f32 %v981, %v1185
    %v1281 = vmax.f32 %v988, %v1237
    %v1282 = vmax.f32 %v995, %v1189
    %v1283 = vmax.f32 %v1002, %v1238
    %v1284 = vmax.f32 %v1009, %v1193
    %v1285 = vmax.f32 %v1016, %v1239
    %v1286 = vmax.f32 %v1023, %v1197
    %v1287 = vmax.f32 %v1030, %v1240
    %v1288 = vmax.f32 %v1037, %v1201
    %v1289 = vmax.f32 %v1044, %v1241
    %v1290 = vmax.f32 %v1051, %v1205
    %v1291 = vmax.f32 %v1058, %v1242
    %v1292 = vmax.f32 %v1065, %v1209
    %v1293 = vmax.f32 %v1072, %v1243
    %v1294 = vmax.f32 %v1079, %v1213
    %v1295 = vmax.f32 %v1086, %v1244
    %v1296 = vmax.f32 %v1093, %v1217
    %v1297 = vmax.f32 %v1100, %v1245
    %v1298 = vmax.f32 %v1107, %v1221
    %v1299 = vmax.f32 %v1114, %v1246
    %v1300 = vmax.f32 %v1121, %v1225
    %v1301 = vmax.f32 %v1128, %v1247
    %v1302 = vmax.f32 %v1135, %v1229
    %v1303 = vmax.f32 %v1142, %v1248
    %v1304 = vmax.f32 %v1149, %v1233
    %v1305 = vld [vmem:[%s3] sm:$0xff]
    %v1306 = vld [vmem:[%s3 + $0x8] sm:$0xff]
    %v1307 = vld [vmem:[%s3 + $0x10] sm:$0xff]
    %v1308 = vld [vmem:[%s3 + $0x18] sm:$0xff]
    %v1309 = vld [vmem:[%s3 + $0x20] sm:$0xff]
    %v1310 = vld [vmem:[%s3 + $0x28] sm:$0xff]
    %v1311 = vld [vmem:[%s3 + $0x30] sm:$0xff]
    %v1312 = vld [vmem:[%s3 + $0x38] sm:$0xff]
    %v1313 = vld [vmem:[%s3 + $0x40] sm:$0xff]
    %v1314 = vld [vmem:[%s3 + $0x48] sm:$0xff]
    %v1315 = vld [vmem:[%s3 + $0x50] sm:$0xff]
    %v1316 = vld [vmem:[%s3 + $0x58] sm:$0xff]
    %v1317 = vld [vmem:[%s3 + $0x60] sm:$0xff]
    %v1318 = vld [vmem:[%s3 + $0x68] sm:$0xff]
    %v1319 = vld [vmem:[%s3 + $0x70] sm:$0xff]
    %v1320 = vld [vmem:[%s3 + $0x78] sm:$0xff]
    %v1321 = vld [vmem:[%s3 + $0x80] sm:$0xff]
    %v1322 = vld [vmem:[%s3 + $0x88] sm:$0xff]
    %v1323 = vld [vmem:[%s3 + $0x90] sm:$0xff]
    %v1324 = vld [vmem:[%s3 + $0x98] sm:$0xff]
    %v1325 = vld [vmem:[%s3 + $0xa0] sm:$0xff]
    %v1326 = vld [vmem:[%s3 + $0xa8] sm:$0xff]
    %v1327 = vld [vmem:[%s3 + $0xb0] sm:$0xff]
    %v1328 = vld [vmem:[%s3 + $0xb8] sm:$0xff]
    %v1329 = vld [vmem:[%s3 + $0xc0] sm:$0xff]
    %v1330 = vld [vmem:[%s3 + $0xc8] sm:$0xff]
    %v1331 = vld [vmem:[%s3 + $0xd0] sm:$0xff]
    %v1332 = vld [vmem:[%s3 + $0xd8] sm:$0xff]
    %v1333 = vld [vmem:[%s3 + $0xe0] sm:$0xff]
    %v1334 = vld [vmem:[%s3 + $0xe8] sm:$0xff]
    %v1335 = vld [vmem:[%s3 + $0xf0] sm:$0xff]
    %v1336 = vld [vmem:[%s3 + $0xf8] sm:$0xff]
    %v1337 = vld [vmem:[%s3 + $0x100] sm:$0xff]
    %v1338 = vld [vmem:[%s3 + $0x108] sm:$0xff]
    %v1339 = vld [vmem:[%s3 + $0x110] sm:$0xff]
    %v1340 = vld [vmem:[%s3 + $0x118] sm:$0xff]
    %v1341 = vld [vmem:[%s3 + $0x120] sm:$0xff]
    %v1342 = vld [vmem:[%s3 + $0x128] sm:$0xff]
    %v1343 = vld [vmem:[%s3 + $0x130] sm:$0xff]
    %v1344 = vld [vmem:[%s3 + $0x138] sm:$0xff]
    %v1345 = vld [vmem:[%s3 + $0x140] sm:$0x7f]
    %v1346 = vld [vmem:[%s3 + $0x148] sm:$0x7f]
    %s1347 = scalar_lea.vmem %s3, 336
    %v1348 = vld [vmem:[%s1347] sm:$0xff]
    %v1349 = vld [vmem:[%s1347 + $0x8] sm:$0xff]
    %v1350 = vld [vmem:[%s1347 + $0x10] sm:$0xff]
    %v1351 = vld [vmem:[%s1347 + $0x18] sm:$0xff]
    %v1352 = vld [vmem:[%s1347 + $0x20] sm:$0xff]
    %v1353 = vld [vmem:[%s1347 + $0x28] sm:$0xff]
    %v1354 = vld [vmem:[%s1347 + $0x30] sm:$0xff]
    %v1355 = vld [vmem:[%s1347 + $0x38] sm:$0xff]
    %v1356 = vld [vmem:[%s1347 + $0x40] sm:$0xff]
    %v1357 = vld [vmem:[%s1347 + $0x48] sm:$0xff]
    %v1358 = vld [vmem:[%s1347 + $0x50] sm:$0xff]
    %v1359 = vld [vmem:[%s1347 + $0x58] sm:$0xff]
    %v1360 = vld [vmem:[%s1347 + $0x60] sm:$0xff]
    %v1361 = vld [vmem:[%s1347 + $0x68] sm:$0xff]
    %v1362 = vld [vmem:[%s1347 + $0x70] sm:$0xff]
    %v1363 = vld [vmem:[%s1347 + $0x78] sm:$0xff]
    %v1364 = vld [vmem:[%s1347 + $0x80] sm:$0xff]
    %v1365 = vld [vmem:[%s1347 + $0x88] sm:$0xff]
    %v1366 = vld [vmem:[%s1347 + $0x90] sm:$0xff]
    %v1367 = vld [vmem:[%s1347 + $0x98] sm:$0xff]
    %v1368 = vld [vmem:[%s1347 + $0xa0] sm:$0xff]
    %v1369 = vld [vmem:[%s1347 + $0xa8] sm:$0xff]
    %v1370 = vld [vmem:[%s1347 + $0xb0] sm:$0xff]
    %v1371 = vld [vmem:[%s1347 + $0xb8] sm:$0xff]
    %v1372 = vld [vmem:[%s1347 + $0xc0] sm:$0xff]
    %v1373 = vld [vmem:[%s1347 + $0xc8] sm:$0xff]
    %v1374 = vld [vmem:[%s1347 + $0xd0] sm:$0xff]
    %v1375 = vld [vmem:[%s1347 + $0xd8] sm:$0xff]
    %v1376 = vld [vmem:[%s1347 + $0xe0] sm:$0xff]
    %v1377 = vld [vmem:[%s1347 + $0xe8] sm:$0xff]
    %v1378 = vld [vmem:[%s1347 + $0xf0] sm:$0xff]
    %v1379 = vld [vmem:[%s1347 + $0xf8] sm:$0xff]
    %v1380 = vld [vmem:[%s1347 + $0x100] sm:$0xff]
    %v1381 = vld [vmem:[%s1347 + $0x108] sm:$0xff]
    %v1382 = vld [vmem:[%s1347 + $0x110] sm:$0xff]
    %v1383 = vld [vmem:[%s1347 + $0x118] sm:$0xff]
    %v1384 = vld [vmem:[%s1347 + $0x120] sm:$0xff]
    %v1385 = vld [vmem:[%s1347 + $0x128] sm:$0xff]
    %v1386 = vld [vmem:[%s1347 + $0x130] sm:$0xff]
    %v1387 = vld [vmem:[%s1347 + $0x138] sm:$0xff]
    %v1388 = vld [vmem:[%s1347 + $0x140] sm:$0x7f]
    %v1389 = vld [vmem:[%s1347 + $0x148] sm:$0x7f]
    %v1410 = vrot.slane %v1281, 7
    %vm1411 = vcmask 1041409
    %v1412 = vsel %vm1411, %v1410, %v1279
    %v1413 = vrot.slane %v1283, 6
    %vm1414 = vcmask 1042434
    %v1415 = vsel %vm1414, %v1413, %v1412
    %v1416 = vrot.slane %v1285, 5
    %vm1417 = vcmask 1043459
    %v1418 = vsel %vm1417, %v1416, %v1415
    %v1419 = vrot.slane %v1287, 4
    %vm1420 = vcmask 1044484
    %v1421 = vsel %vm1420, %v1419, %v1418
    %v1422 = vrot.slane %v1289, 3
    %vm1423 = vcmask 1045509
    %v1424 = vsel %vm1423, %v1422, %v1421
    %v1425 = vrot.slane %v1291, 2
    %vm1426 = vcmask 1046534
    %v1427 = vsel %vm1426, %v1425, %v1424
    %v1428 = vrot.slane %v1293, 1
    %vm1429 = vcmask 1047559
    %v1430 = vsel %vm1429, %v1428, %v1427
    %v1431 = vrot.slane %v1282, 7
    %v1432 = vsel %vm1411, %v1431, %v1280
    %v1433 = vrot.slane %v1284, 6
    %v1434 = vsel %vm1414, %v1433, %v1432
    %v1435 = vrot.slane %v1286, 5
    %v1436 = vsel %vm1417, %v1435, %v1434
    %v1437 = vrot.slane %v1288, 4
    %v1438 = vsel %vm1420, %v1437, %v1436
    %v1439 = vrot.slane %v1290, 3
    %v1440 = vsel %vm1423, %v1439, %v1438
    %v1441 = vrot.slane %v1292, 2
    %v1442 = vsel %vm1426, %v1441, %v1440
    %v1443 = vrot.slane %v1294, 1
    %v1444 = vsel %vm1429, %v1443, %v1442
    %v1445 = vrot.slane %v1297, 7
    %v1446 = vsel %vm1411, %v1445, %v1295
    %v1447 = vrot.slane %v1298, 7
    %v1448 = vsel %vm1411, %v1447, %v1296
    %vm1451 = vcmask 318464
    %v1452 = vsel %vm1451, %v1444, 0
    %v1454 = vsel %vm1451, %v1448, 0
    %vm1456 = vcmask 1046528
    %v1458 = vsel %vm1456, %v1388, 0
    %v1461 = vsel %vm1456, %v1389, 0
    %1463 = vmatprep.subr.mxu0 %v1349
    %1464 = vmatpush1.msra.mxu0 %v1348
    %1465 = vmatprep.subr.mxu0 %v1351
    %1466 = vmatpush1.msra.mxu0 %v1350
    %1467 = vmatprep.subr.mxu0 %v1353
    %1468 = vmatpush1.msra.mxu0 %v1352
    %1469 = vmatprep.subr.mxu0 %v1355
    %1470 = vmatpush1.msra.mxu0 %v1354
    %1471 = vmatprep.subr.mxu0 %v1357
    %1472 = vmatpush1.msra.mxu0 %v1356
    %1473 = vmatprep.subr.mxu0 %v1359
    %1474 = vmatpush1.msra.mxu0 %v1358
    %1475 = vmatprep.subr.mxu0 %v1361
    %1476 = vmatpush1.msra.mxu0 %v1360
    %1477 = vmatprep.subr.mxu0 %v1363
    %1478 = vmatpush1.msra.mxu0 %v1362
    %1479 = vmatprep.subr.mxu0 %v1365
    %1480 = vmatpush1.msra.mxu0 %v1364
    %1481 = vmatprep.subr.mxu0 %v1367
    %1482 = vmatpush1.msra.mxu0 %v1366
    %1483 = vmatprep.subr.mxu0 %v1369
    %1484 = vmatpush1.msra.mxu0 %v1368
    %1485 = vmatprep.subr.mxu0 %v1371
    %1486 = vmatpush1.msra.mxu0 %v1370
    %1487 = vmatprep.subr.mxu0 %v1373
    %1488 = vmatpush1.msra.mxu0 %v1372
    %1489 = vmatprep.subr.mxu0 %v1375
    %1490 = vmatpush1.msra.mxu0 %v1374
    %1491 = vmatprep.subr.mxu0 %v1377
    %1492 = vmatpush1.msra.mxu0 %v1376
    %1493 = vmatprep.subr.mxu0 %v1379
    %1494 = vmatpush1.msra.mxu0 %v1378
    %1495 = vmatprep.subr.mxu0 %v1381
    %1496 = vmatpush1.msra.mxu0 %v1380
    %1497 = vmatprep.subr.mxu0 %v1383
    %1498 = vmatpush1.msra.mxu0 %v1382
    %1499 = vmatprep.subr.mxu0 %v1385
    %1500 = vmatpush1.msra.mxu0 %v1384
    %1501 = vmatprep.subr.mxu0 %v1387
    %1502 = vmatpush1.msra.mxu0 %v1386
    %1503 = vmatprep.subr.mxu0 %v1461
    %1504 = vmatpush1.msra.mxu0 %v1458
    %1505 = vmatprep.subr.mxu0 0.0
    %1506 = vmatpush1.msra.mxu0 0.0
    %1507 = vmatprep.subr.mxu0 0.0
    %1508 = vmatpush1.msra.mxu0 0.0
    %1509 = vmatprep.subr.mxu0 0.0
    %1510 = vmatpush1.msra.mxu0 0.0
    %1511 = vmatprep.subr.mxu0 0.0
    %1512 = vmatpush1.msra.mxu0 0.0
    %1513 = vmatprep.subr.mxu0 0.0
    %1514 = vmatpush1.msra.mxu0 0.0
    %1515 = vmatprep.subr.mxu0 0.0
    %1516 = vmatpush1.msra.mxu0 0.0
    %1517 = vmatprep.subr.mxu0 0.0
    %1518 = vmatpush1.msra.mxu0 0.0
    %1519 = vmatprep.subr.mxu0 0.0
    %1520 = vmatpush1.msra.mxu0 0.0
    %1521 = vmatprep.subr.mxu0 0.0
    %1522 = vmatpush1.msra.mxu0 0.0
    %1523 = vmatprep.subr.mxu0 0.0
    %1524 = vmatpush1.msra.mxu0 0.0
    %1525 = vmatprep.subr.mxu0 0.0
    %1526 = vmatpush1.msra.mxu0 0.0
    %1527 = vmatprep.mubr.f32.mxu0 %v1452
    %1528 = vmatmul.mubr.f32.gmra.mrb[0].mxu0 %v1430
    %v1529 = vpop.f32.mrb[0].mxu0
    %v1530 = vadd.f32 0.0, %v1529
    %v1531 = vpop.f32.mrb[0].mxu0
    %v1532 = vadd.f32 0.0, %v1531
    %1533 = vmatprep.mubr.f32.mxu0 %v1454
    %1534 = vmatmul.mubr.f32.gmra.mrb[0].mxu0 %v1446
    %v1535 = vpop.f32.mrb[0].mxu0
    %v1536 = vadd.f32 0.0, %v1535
    %v1537 = vpop.f32.mrb[0].mxu0
    %v1538 = vadd.f32 0.0, %v1537
    %1539 = vdwg.mxu0
    %v1542 = vrot.slane %v1279, 7
    %v1543 = vsel %vm1411, %v1542, %v1277
    %v1544 = vrot.slane %v1281, 6
    %v1545 = vsel %vm1414, %v1544, %v1543
    %v1546 = vrot.slane %v1283, 5
    %v1547 = vsel %vm1417, %v1546, %v1545
    %v1548 = vrot.slane %v1285, 4
    %v1549 = vsel %vm1420, %v1548, %v1547
    %v1550 = vrot.slane %v1287, 3
    %v1551 = vsel %vm1423, %v1550, %v1549
    %v1552 = vrot.slane %v1289, 2
    %v1553 = vsel %vm1426, %v1552, %v1551
    %v1554 = vrot.slane %v1291, 1
    %v1555 = vsel %vm1429, %v1554, %v1553
    %v1556 = vrot.slane %v1280, 7
    %v1557 = vsel %vm1411, %v1556, %v1278
    %v1558 = vrot.slane %v1282, 6
    %v1559 = vsel %vm1414, %v1558, %v1557
    %v1560 = vrot.slane %v1284, 5
    %v1561 = vsel %vm1417, %v1560, %v1559
    %v1562 = vrot.slane %v1286, 4
    %v1563 = vsel %vm1420, %v1562, %v1561
    %v1564 = vrot.slane %v1288, 3
    %v1565 = vsel %vm1423, %v1564, %v1563
    %v1566 = vrot.slane %v1290, 2
    %v1567 = vsel %vm1426, %v1566, %v1565
    %v1568 = vrot.slane %v1292, 1
    %v1569 = vsel %vm1429, %v1568, %v1567
    %v1570 = vrot.slane %v1295, 7
    %v1571 = vsel %vm1411, %v1570, %v1293
    %v1572 = vrot.slane %v1296, 7
    %v1573 = vsel %vm1411, %v1572, %v1294
    %v1576 = vsel %vm1451, %v1569, 0
    %v1578 = vsel %vm1451, %v1573, 0
    %v1581 = vsel %vm1456, %v1345, 0
    %v1584 = vsel %vm1456, %v1346, 0
    %1586 = vmatprep.subr.mxu0 %v1306
    %1587 = vmatpush1.msra.mxu0 %v1305
    %1588 = vmatprep.subr.mxu0 %v1308
    %1589 = vmatpush1.msra.mxu0 %v1307
    %1590 = vmatprep.subr.mxu0 %v1310
    %1591 = vmatpush1.msra.mxu0 %v1309
    %1592 = vmatprep.subr.mxu0 %v1312
    %1593 = vmatpush1.msra.mxu0 %v1311
    %1594 = vmatprep.subr.mxu0 %v1314
    %1595 = vmatpush1.msra.mxu0 %v1313
    %1596 = vmatprep.subr.mxu0 %v1316
    %1597 = vmatpush1.msra.mxu0 %v1315
    %1598 = vmatprep.subr.mxu0 %v1318
    %1599 = vmatpush1.msra.mxu0 %v1317
    %1600 = vmatprep.subr.mxu0 %v1320
    %1601 = vmatpush1.msra.mxu0 %v1319
    %1602 = vmatprep.subr.mxu0 %v1322
    %1603 = vmatpush1.msra.mxu0 %v1321
    %1604 = vmatprep.subr.mxu0 %v1324
    %1605 = vmatpush1.msra.mxu0 %v1323
    %1606 = vmatprep.subr.mxu0 %v1326
    %1607 = vmatpush1.msra.mxu0 %v1325
    %1608 = vmatprep.subr.mxu0 %v1328
    %1609 = vmatpush1.msra.mxu0 %v1327
    %1610 = vmatprep.subr.mxu0 %v1330
    %1611 = vmatpush1.msra.mxu0 %v1329
    %1612 = vmatprep.subr.mxu0 %v1332
    %1613 = vmatpush1.msra.mxu0 %v1331
    %1614 = vmatprep.subr.mxu0 %v1334
    %1615 = vmatpush1.msra.mxu0 %v1333
    %1616 = vmatprep.subr.mxu0 %v1336
    %1617 = vmatpush1.msra.mxu0 %v1335
    %1618 = vmatprep.subr.mxu0 %v1338
    %1619 = vmatpush1.msra.mxu0 %v1337
    %1620 = vmatprep.subr.mxu0 %v1340
    %1621 = vmatpush1.msra.mxu0 %v1339
    %1622 = vmatprep.subr.mxu0 %v1342
    %1623 = vmatpush1.msra.mxu0 %v1341
    %1624 = vmatprep.subr.mxu0 %v1344
    %1625 = vmatpush1.msra.mxu0 %v1343
    %1626 = vmatprep.subr.mxu0 %v1584
    %1627 = vmatpush1.msra.mxu0 %v1581
    %1628 = vmatprep.subr.mxu0 0.0
    %1629 = vmatpush1.msra.mxu0 0.0
    %1630 = vmatprep.subr.mxu0 0.0
    %1631 = vmatpush1.msra.mxu0 0.0
    %1632 = vmatprep.subr.mxu0 0.0
    %1633 = vmatpush1.msra.mxu0 0.0
    %1634 = vmatprep.subr.mxu0 0.0
    %1635 = vmatpush1.msra.mxu0 0.0
    %1636 = vmatprep.subr.mxu0 0.0
    %1637 = vmatpush1.msra.mxu0 0.0
    %1638 = vmatprep.subr.mxu0 0.0
    %1639 = vmatpush1.msra.mxu0 0.0
    %1640 = vmatprep.subr.mxu0 0.0
    %1641 = vmatpush1.msra.mxu0 0.0
    %1642 = vmatprep.subr.mxu0 0.0
    %1643 = vmatpush1.msra.mxu0 0.0
    %1644 = vmatprep.subr.mxu0 0.0
    %1645 = vmatpush1.msra.mxu0 0.0
    %1646 = vmatprep.subr.mxu0 0.0
    %1647 = vmatpush1.msra.mxu0 0.0
    %1648 = vmatprep.subr.mxu0 0.0
    %1649 = vmatpush1.msra.mxu0 0.0
    %1650 = vmatprep.mubr.f32.mxu0 %v1576
    %1651 = vmatmul.mubr.f32.gmra.mrb[0].mxu0 %v1555
    %v1652 = vpop.f32.mrb[0].mxu0
    %v1653 = vadd.f32 %v1530, %v1652
    %v1654 = vpop.f32.mrb[0].mxu0
    %v1655 = vadd.f32 %v1532, %v1654
    %1656 = vmatprep.mubr.f32.mxu0 %v1578
    %1657 = vmatmul.mubr.f32.gmra.mrb[0].mxu0 %v1571
    %v1658 = vpop.f32.mrb[0].mxu0
    %v1659 = vadd.f32 %v1536, %v1658
    %v1660 = vpop.f32.mrb[0].mxu0
    %v1661 = vadd.f32 %v1538, %v1660
    %1662 = vdwg.mxu0
    %s1663 = scalar_lea.vmem %s3, 672
    %v1664 = vld [vmem:[%s1663] sm:$0xff]
    %v1665 = vld [vmem:[%s1663 + $0x8] sm:$0xff]
    %v1666 = vld [vmem:[%s1663 + $0x10] sm:$0xff]
    %v1667 = vld [vmem:[%s1663 + $0x18] sm:$0xff]
    %v1668 = vld [vmem:[%s1663 + $0x20] sm:$0xff]
    %v1669 = vld [vmem:[%s1663 + $0x28] sm:$0xff]
    %v1670 = vld [vmem:[%s1663 + $0x30] sm:$0xff]
    %v1671 = vld [vmem:[%s1663 + $0x38] sm:$0xff]
    %v1672 = vld [vmem:[%s1663 + $0x40] sm:$0xff]
    %v1673 = vld [vmem:[%s1663 + $0x48] sm:$0xff]
    %v1674 = vld [vmem:[%s1663 + $0x50] sm:$0xff]
    %v1675 = vld [vmem:[%s1663 + $0x58] sm:$0xff]
    %v1676 = vld [vmem:[%s1663 + $0x60] sm:$0xff]
    %v1677 = vld [vmem:[%s1663 + $0x68] sm:$0xff]
    %v1678 = vld [vmem:[%s1663 + $0x70] sm:$0xff]
    %v1679 = vld [vmem:[%s1663 + $0x78] sm:$0xff]
    %v1680 = vld [vmem:[%s1663 + $0x80] sm:$0xff]
    %v1681 = vld [vmem:[%s1663 + $0x88] sm:$0xff]
    %v1682 = vld [vmem:[%s1663 + $0x90] sm:$0xff]
    %v1683 = vld [vmem:[%s1663 + $0x98] sm:$0xff]
    %v1684 = vld [vmem:[%s1663 + $0xa0] sm:$0xff]
    %v1685 = vld [vmem:[%s1663 + $0xa8] sm:$0xff]
    %v1686 = vld [vmem:[%s1663 + $0xb0] sm:$0xff]
    %v1687 = vld [vmem:[%s1663 + $0xb8] sm:$0xff]
    %v1688 = vld [vmem:[%s1663 + $0xc0] sm:$0xff]
    %v1689 = vld [vmem:[%s1663 + $0xc8] sm:$0xff]
    %v1690 = vld [vmem:[%s1663 + $0xd0] sm:$0xff]
    %v1691 = vld [vmem:[%s1663 + $0xd8] sm:$0xff]
    %v1692 = vld [vmem:[%s1663 + $0xe0] sm:$0xff]
    %v1693 = vld [vmem:[%s1663 + $0xe8] sm:$0xff]
    %v1694 = vld [vmem:[%s1663 + $0xf0] sm:$0xff]
    %v1695 = vld [vmem:[%s1663 + $0xf8] sm:$0xff]
    %v1696 = vld [vmem:[%s1663 + $0x100] sm:$0xff]
    %v1697 = vld [vmem:[%s1663 + $0x108] sm:$0xff]
    %v1698 = vld [vmem:[%s1663 + $0x110] sm:$0xff]
    %v1699 = vld [vmem:[%s1663 + $0x118] sm:$0xff]
    %v1700 = vld [vmem:[%s1663 + $0x120] sm:$0xff]
    %v1701 = vld [vmem:[%s1663 + $0x128] sm:$0xff]
    %v1702 = vld [vmem:[%s1663 + $0x130] sm:$0xff]
    %v1703 = vld [vmem:[%s1663 + $0x138] sm:$0xff]
    %v1704 = vld [vmem:[%s1663 + $0x140] sm:$0x7f]
    %v1705 = vld [vmem:[%s1663 + $0x148] sm:$0x7f]
    %v1708 = vrot.slane %v1283, 7
    %v1709 = vsel %vm1411, %v1708, %v1281
    %v1710 = vrot.slane %v1285, 6
    %v1711 = vsel %vm1414, %v1710, %v1709
    %v1712 = vrot.slane %v1287, 5
    %v1713 = vsel %vm1417, %v1712, %v1711
    %v1714 = vrot.slane %v1289, 4
    %v1715 = vsel %vm1420, %v1714, %v1713
    %v1716 = vrot.slane %v1291, 3
    %v1717 = vsel %vm1423, %v1716, %v1715
    %v1718 = vrot.slane %v1293, 2
    %v1719 = vsel %vm1426, %v1718, %v1717
    %v1720 = vrot.slane %v1295, 1
    %v1721 = vsel %vm1429, %v1720, %v1719
    %v1722 = vrot.slane %v1284, 7
    %v1723 = vsel %vm1411, %v1722, %v1282
    %v1724 = vrot.slane %v1286, 6
    %v1725 = vsel %vm1414, %v1724, %v1723
    %v1726 = vrot.slane %v1288, 5
    %v1727 = vsel %vm1417, %v1726, %v1725
    %v1728 = vrot.slane %v1290, 4
    %v1729 = vsel %vm1420, %v1728, %v1727
    %v1730 = vrot.slane %v1292, 3
    %v1731 = vsel %vm1423, %v1730, %v1729
    %v1732 = vrot.slane %v1294, 2
    %v1733 = vsel %vm1426, %v1732, %v1731
    %v1734 = vrot.slane %v1296, 1
    %v1735 = vsel %vm1429, %v1734, %v1733
    %v1736 = vrot.slane %v1299, 7
    %v1737 = vsel %vm1411, %v1736, %v1297
    %v1738 = vrot.slane %v1300, 7
    %v1739 = vsel %vm1411, %v1738, %v1298
    %v1742 = vsel %vm1451, %v1735, 0
    %v1744 = vsel %vm1451, %v1739, 0
    %v1747 = vsel %vm1456, %v1704, 0
    %v1750 = vsel %vm1456, %v1705, 0
    %1752 = vmatprep.subr.mxu0 %v1665
    %1753 = vmatpush1.msra.mxu0 %v1664
    %1754 = vmatprep.subr.mxu0 %v1667
    %1755 = vmatpush1.msra.mxu0 %v1666
    %1756 = vmatprep.subr.mxu0 %v1669
    %1757 = vmatpush1.msra.mxu0 %v1668
    %1758 = vmatprep.subr.mxu0 %v1671
    %1759 = vmatpush1.msra.mxu0 %v1670
    %1760 = vmatprep.subr.mxu0 %v1673
    %1761 = vmatpush1.msra.mxu0 %v1672
    %1762 = vmatprep.subr.mxu0 %v1675
    %1763 = vmatpush1.msra.mxu0 %v1674
    %1764 = vmatprep.subr.mxu0 %v1677
    %1765 = vmatpush1.msra.mxu0 %v1676
    %1766 = vmatprep.subr.mxu0 %v1679
    %1767 = vmatpush1.msra.mxu0 %v1678
    %1768 = vmatprep.subr.mxu0 %v1681
    %1769 = vmatpush1.msra.mxu0 %v1680
    %1770 = vmatprep.subr.mxu0 %v1683
    %1771 = vmatpush1.msra.mxu0 %v1682
    %1772 = vmatprep.subr.mxu0 %v1685
    %1773 = vmatpush1.msra.mxu0 %v1684
    %1774 = vmatprep.subr.mxu0 %v1687
    %1775 = vmatpush1.msra.mxu0 %v1686
    %1776 = vmatprep.subr.mxu0 %v1689
    %1777 = vmatpush1.msra.mxu0 %v1688
    %1778 = vmatprep.subr.mxu0 %v1691
    %1779 = vmatpush1.msra.mxu0 %v1690
    %1780 = vmatprep.subr.mxu0 %v1693
    %1781 = vmatpush1.msra.mxu0 %v1692
    %1782 = vmatprep.subr.mxu0 %v1695
    %1783 = vmatpush1.msra.mxu0 %v1694
    %1784 = vmatprep.subr.mxu0 %v1697
    %1785 = vmatpush1.msra.mxu0 %v1696
    %1786 = vmatprep.subr.mxu0 %v1699
    %1787 = vmatpush1.msra.mxu0 %v1698
    %1788 = vmatprep.subr.mxu0 %v1701
    %1789 = vmatpush1.msra.mxu0 %v1700
    %1790 = vmatprep.subr.mxu0 %v1703
    %1791 = vmatpush1.msra.mxu0 %v1702
    %1792 = vmatprep.subr.mxu0 %v1750
    %1793 = vmatpush1.msra.mxu0 %v1747
    %1794 = vmatprep.subr.mxu0 0.0
    %1795 = vmatpush1.msra.mxu0 0.0
    %1796 = vmatprep.subr.mxu0 0.0
    %1797 = vmatpush1.msra.mxu0 0.0
    %1798 = vmatprep.subr.mxu0 0.0
    %1799 = vmatpush1.msra.mxu0 0.0
    %1800 = vmatprep.subr.mxu0 0.0
    %1801 = vmatpush1.msra.mxu0 0.0
    %1802 = vmatprep.subr.mxu0 0.0
    %1803 = vmatpush1.msra.mxu0 0.0
    %1804 = vmatprep.subr.mxu0 0.0
    %1805 = vmatpush1.msra.mxu0 0.0
    %1806 = vmatprep.subr.mxu0 0.0
    %1807 = vmatpush1.msra.mxu0 0.0
    %1808 = vmatprep.subr.mxu0 0.0
    %1809 = vmatpush1.msra.mxu0 0.0
    %1810 = vmatprep.subr.mxu0 0.0
    %1811 = vmatpush1.msra.mxu0 0.0
    %1812 = vmatprep.subr.mxu0 0.0
    %1813 = vmatpush1.msra.mxu0 0.0
    %1814 = vmatprep.subr.mxu0 0.0
    %1815 = vmatpush1.msra.mxu0 0.0
    %1816 = vmatprep.mubr.f32.mxu0 %v1742
    %1817 = vmatmul.mubr.f32.gmra.mrb[0].mxu0 %v1721
    %v1818 = vpop.f32.mrb[0].mxu0
    %v1819 = vadd.f32 0.0, %v1818
    %v1820 = vpop.f32.mrb[0].mxu0
    %v1821 = vadd.f32 0.0, %v1820
    %1822 = vmatprep.mubr.f32.mxu0 %v1744
    %1823 = vmatmul.mubr.f32.gmra.mrb[0].mxu0 %v1737
    %v1824 = vpop.f32.mrb[0].mxu0
    %v1825 = vadd.f32 0.0, %v1824
    %v1826 = vpop.f32.mrb[0].mxu0
    %v1827 = vadd.f32 0.0, %v1826
    %1828 = vdwg.mxu0
    %v1829 = vadd.f32 %v1653, %v1819
    %v1830 = vadd.f32 %v1655, %v1821
    %v1831 = vadd.f32 %v1659, %v1825
    %v1832 = vadd.f32 %v1661, %v1827
    %s1833 = scalar_lea.vmem %s3, 1008
    %v1834 = vld [vmem:[%s1833] sm:$0xff]
    %v1835 = vld [vmem:[%s1833 + $0x8] sm:$0xff]
    %v1836 = vld [vmem:[%s1833 + $0x10] sm:$0xff]
    %v1837 = vld [vmem:[%s1833 + $0x18] sm:$0xff]
    %v1838 = vld [vmem:[%s1833 + $0x20] sm:$0xff]
    %v1839 = vld [vmem:[%s1833 + $0x28] sm:$0xff]
    %v1840 = vld [vmem:[%s1833 + $0x30] sm:$0xff]
    %v1841 = vld [vmem:[%s1833 + $0x38] sm:$0xff]
    %v1842 = vld [vmem:[%s1833 + $0x40] sm:$0xff]
    %v1843 = vld [vmem:[%s1833 + $0x48] sm:$0xff]
    %v1844 = vld [vmem:[%s1833 + $0x50] sm:$0xff]
    %v1845 = vld [vmem:[%s1833 + $0x58] sm:$0xff]
    %v1846 = vld [vmem:[%s1833 + $0x60] sm:$0xff]
    %v1847 = vld [vmem:[%s1833 + $0x68] sm:$0xff]
    %v1848 = vld [vmem:[%s1833 + $0x70] sm:$0xff]
    %v1849 = vld [vmem:[%s1833 + $0x78] sm:$0xff]
    %v1850 = vld [vmem:[%s1833 + $0x80] sm:$0xff]
    %v1851 = vld [vmem:[%s1833 + $0x88] sm:$0xff]
    %v1852 = vld [vmem:[%s1833 + $0x90] sm:$0xff]
    %v1853 = vld [vmem:[%s1833 + $0x98] sm:$0xff]
    %v1854 = vld [vmem:[%s1833 + $0xa0] sm:$0xff]
    %v1855 = vld [vmem:[%s1833 + $0xa8] sm:$0xff]
    %v1856 = vld [vmem:[%s1833 + $0xb0] sm:$0xff]
    %v1857 = vld [vmem:[%s1833 + $0xb8] sm:$0xff]
    %v1858 = vld [vmem:[%s1833 + $0xc0] sm:$0xff]
    %v1859 = vld [vmem:[%s1833 + $0xc8] sm:$0xff]
    %v1860 = vld [vmem:[%s1833 + $0xd0] sm:$0xff]
    %v1861 = vld [vmem:[%s1833 + $0xd8] sm:$0xff]
    %v1862 = vld [vmem:[%s1833 + $0xe0] sm:$0xff]
    %v1863 = vld [vmem:[%s1833 + $0xe8] sm:$0xff]
    %v1864 = vld [vmem:[%s1833 + $0xf0] sm:$0xff]
    %v1865 = vld [vmem:[%s1833 + $0xf8] sm:$0xff]
    %v1866 = vld [vmem:[%s1833 + $0x100] sm:$0xff]
    %v1867 = vld [vmem:[%s1833 + $0x108] sm:$0xff]
    %v1868 = vld [vmem:[%s1833 + $0x110] sm:$0xff]
    %v1869 = vld [vmem:[%s1833 + $0x118] sm:$0xff]
    %v1870 = vld [vmem:[%s1833 + $0x120] sm:$0xff]
    %v1871 = vld [vmem:[%s1833 + $0x128] sm:$0xff]
    %v1872 = vld [vmem:[%s1833 + $0x130] sm:$0xff]
    %v1873 = vld [vmem:[%s1833 + $0x138] sm:$0xff]
    %v1874 = vld [vmem:[%s1833 + $0x140] sm:$0x7f]
    %v1875 = vld [vmem:[%s1833 + $0x148] sm:$0x7f]
    %v1878 = vrot.slane %v1285, 7
    %v1879 = vsel %vm1411, %v1878, %v1283
    %v1880 = vrot.slane %v1287, 6
    %v1881 = vsel %vm1414, %v1880, %v1879
    %v1882 = vrot.slane %v1289, 5
    %v1883 = vsel %vm1417, %v1882, %v1881
    %v1884 = vrot.slane %v1291, 4
    %v1885 = vsel %vm1420, %v1884, %v1883
    %v1886 = vrot.slane %v1293, 3
    %v1887 = vsel %vm1423, %v1886, %v1885
    %v1888 = vrot.slane %v1295, 2
    %v1889 = vsel %vm1426, %v1888, %v1887
    %v1890 = vrot.slane %v1297, 1
    %v1891 = vsel %vm1429, %v1890, %v1889
    %v1892 = vrot.slane %v1286, 7
    %v1893 = vsel %vm1411, %v1892, %v1284
    %v1894 = vrot.slane %v1288, 6
    %v1895 = vsel %vm1414, %v1894, %v1893
    %v1896 = vrot.slane %v1290, 5
    %v1897 = vsel %vm1417, %v1896, %v1895
    %v1898 = vrot.slane %v1292, 4
    %v1899 = vsel %vm1420, %v1898, %v1897
    %v1900 = vrot.slane %v1294, 3
    %v1901 = vsel %vm1423, %v1900, %v1899
    %v1902 = vrot.slane %v1296, 2
    %v1903 = vsel %vm1426, %v1902, %v1901
    %v1904 = vrot.slane %v1298, 1
    %v1905 = vsel %vm1429, %v1904, %v1903
    %v1906 = vrot.slane %v1301, 7
    %v1907 = vsel %vm1411, %v1906, %v1299
    %v1908 = vrot.slane %v1302, 7
    %v1909 = vsel %vm1411, %v1908, %v1300
    %v1912 = vsel %vm1451, %v1905, 0
    %v1914 = vsel %vm1451, %v1909, 0
    %v1917 = vsel %vm1456, %v1874, 0
    %v1920 = vsel %vm1456, %v1875, 0
    %1922 = vmatprep.subr.mxu0 %v1835
    %1923 = vmatpush1.msra.mxu0 %v1834
    %1924 = vmatprep.subr.mxu0 %v1837
    %1925 = vmatpush1.msra.mxu0 %v1836
    %1926 = vmatprep.subr.mxu0 %v1839
    %1927 = vmatpush1.msra.mxu0 %v1838
    %1928 = vmatprep.subr.mxu0 %v1841
    %1929 = vmatpush1.msra.mxu0 %v1840
    %1930 = vmatprep.subr.mxu0 %v1843
    %1931 = vmatpush1.msra.mxu0 %v1842
    %1932 = vmatprep.subr.mxu0 %v1845
    %1933 = vmatpush1.msra.mxu0 %v1844
    %1934 = vmatprep.subr.mxu0 %v1847
    %1935 = vmatpush1.msra.mxu0 %v1846
    %1936 = vmatprep.subr.mxu0 %v1849
    %1937 = vmatpush1.msra.mxu0 %v1848
    %1938 = vmatprep.subr.mxu0 %v1851
    %1939 = vmatpush1.msra.mxu0 %v1850
    %1940 = vmatprep.subr.mxu0 %v1853
    %1941 = vmatpush1.msra.mxu0 %v1852
    %1942 = vmatprep.subr.mxu0 %v1855
    %1943 = vmatpush1.msra.mxu0 %v1854
    %1944 = vmatprep.subr.mxu0 %v1857
    %1945 = vmatpush1.msra.mxu0 %v1856
    %1946 = vmatprep.subr.mxu0 %v1859
    %1947 = vmatpush1.msra.mxu0 %v1858
    %1948 = vmatprep.subr.mxu0 %v1861
    %1949 = vmatpush1.msra.mxu0 %v1860
    %1950 = vmatprep.subr.mxu0 %v1863
    %1951 = vmatpush1.msra.mxu0 %v1862
    %1952 = vmatprep.subr.mxu0 %v1865
    %1953 = vmatpush1.msra.mxu0 %v1864
    %1954 = vmatprep.subr.mxu0 %v1867
    %1955 = vmatpush1.msra.mxu0 %v1866
    %1956 = vmatprep.subr.mxu0 %v1869
    %1957 = vmatpush1.msra.mxu0 %v1868
    %1958 = vmatprep.subr.mxu0 %v1871
    %1959 = vmatpush1.msra.mxu0 %v1870
    %1960 = vmatprep.subr.mxu0 %v1873
    %1961 = vmatpush1.msra.mxu0 %v1872
    %1962 = vmatprep.subr.mxu0 %v1920
    %1963 = vmatpush1.msra.mxu0 %v1917
    %1964 = vmatprep.subr.mxu0 0.0
    %1965 = vmatpush1.msra.mxu0 0.0
    %1966 = vmatprep.subr.mxu0 0.0
    %1967 = vmatpush1.msra.mxu0 0.0
    %1968 = vmatprep.subr.mxu0 0.0
    %1969 = vmatpush1.msra.mxu0 0.0
    %1970 = vmatprep.subr.mxu0 0.0
    %1971 = vmatpush1.msra.mxu0 0.0
    %1972 = vmatprep.subr.mxu0 0.0
    %1973 = vmatpush1.msra.mxu0 0.0
    %1974 = vmatprep.subr.mxu0 0.0
    %1975 = vmatpush1.msra.mxu0 0.0
    %1976 = vmatprep.subr.mxu0 0.0
    %1977 = vmatpush1.msra.mxu0 0.0
    %1978 = vmatprep.subr.mxu0 0.0
    %1979 = vmatpush1.msra.mxu0 0.0
    %1980 = vmatprep.subr.mxu0 0.0
    %1981 = vmatpush1.msra.mxu0 0.0
    %1982 = vmatprep.subr.mxu0 0.0
    %1983 = vmatpush1.msra.mxu0 0.0
    %1984 = vmatprep.subr.mxu0 0.0
    %1985 = vmatpush1.msra.mxu0 0.0
    %1986 = vmatprep.mubr.f32.mxu0 %v1912
    %1987 = vmatmul.mubr.f32.gmra.mrb[0].mxu0 %v1891
    %v1988 = vpop.f32.mrb[0].mxu0
    %v1989 = vadd.f32 0.0, %v1988
    %v1990 = vpop.f32.mrb[0].mxu0
    %v1991 = vadd.f32 0.0, %v1990
    %1992 = vmatprep.mubr.f32.mxu0 %v1914
    %1993 = vmatmul.mubr.f32.gmra.mrb[0].mxu0 %v1907
    %v1994 = vpop.f32.mrb[0].mxu0
    %v1995 = vadd.f32 0.0, %v1994
    %v1996 = vpop.f32.mrb[0].mxu0
    %v1997 = vadd.f32 0.0, %v1996
    %1998 = vdwg.mxu0
    %v1999 = vadd.f32 %v1829, %v1989
    %v2000 = vadd.f32 %v1830, %v1991
    %v2001 = vadd.f32 %v1831, %v1995
    %v2002 = vadd.f32 %v1832, %v1997
    %s2003 = scalar_lea.vmem %s3, 1344
    %v2004 = vld [vmem:[%s2003] sm:$0xff]
    %v2005 = vld [vmem:[%s2003 + $0x8] sm:$0xff]
    %v2006 = vld [vmem:[%s2003 + $0x10] sm:$0xff]
    %v2007 = vld [vmem:[%s2003 + $0x18] sm:$0xff]
    %v2008 = vld [vmem:[%s2003 + $0x20] sm:$0xff]
    %v2009 = vld [vmem:[%s2003 + $0x28] sm:$0xff]
    %v2010 = vld [vmem:[%s2003 + $0x30] sm:$0xff]
    %v2011 = vld [vmem:[%s2003 + $0x38] sm:$0xff]
    %v2012 = vld [vmem:[%s2003 + $0x40] sm:$0xff]
    %v2013 = vld [vmem:[%s2003 + $0x48] sm:$0xff]
    %v2014 = vld [vmem:[%s2003 + $0x50] sm:$0xff]
    %v2015 = vld [vmem:[%s2003 + $0x58] sm:$0xff]
    %v2016 = vld [vmem:[%s2003 + $0x60] sm:$0xff]
    %v2017 = vld [vmem:[%s2003 + $0x68] sm:$0xff]
    %v2018 = vld [vmem:[%s2003 + $0x70] sm:$0xff]
    %v2019 = vld [vmem:[%s2003 + $0x78] sm:$0xff]
    %v2020 = vld [vmem:[%s2003 + $0x80] sm:$0xff]
    %v2021 = vld [vmem:[%s2003 + $0x88] sm:$0xff]
    %v2022 = vld [vmem:[%s2003 + $0x90] sm:$0xff]
    %v2023 = vld [vmem:[%s2003 + $0x98] sm:$0xff]
    %v2024 = vld [vmem:[%s2003 + $0xa0] sm:$0xff]
    %v2025 = vld [vmem:[%s2003 + $0xa8] sm:$0xff]
    %v2026 = vld [vmem:[%s2003 + $0xb0] sm:$0xff]
    %v2027 = vld [vmem:[%s2003 + $0xb8] sm:$0xff]
    %v2028 = vld [vmem:[%s2003 + $0xc0] sm:$0xff]
    %v2029 = vld [vmem:[%s2003 + $0xc8] sm:$0xff]
    %v2030 = vld [vmem:[%s2003 + $0xd0] sm:$0xff]
    %v2031 = vld [vmem:[%s2003 + $0xd8] sm:$0xff]
    %v2032 = vld [vmem:[%s2003 + $0xe0] sm:$0xff]
    %v2033 = vld [vmem:[%s2003 + $0xe8] sm:$0xff]
    %v2034 = vld [vmem:[%s2003 + $0xf0] sm:$0xff]
    %v2035 = vld [vmem:[%s2003 + $0xf8] sm:$0xff]
    %v2036 = vld [vmem:[%s2003 + $0x100] sm:$0xff]
    %v2037 = vld [vmem:[%s2003 + $0x108] sm:$0xff]
    %v2038 = vld [vmem:[%s2003 + $0x110] sm:$0xff]
    %v2039 = vld [vmem:[%s2003 + $0x118] sm:$0xff]
    %v2040 = vld [vmem:[%s2003 + $0x120] sm:$0xff]
    %v2041 = vld [vmem:[%s2003 + $0x128] sm:$0xff]
    %v2042 = vld [vmem:[%s2003 + $0x130] sm:$0xff]
    %v2043 = vld [vmem:[%s2003 + $0x138] sm:$0xff]
    %v2044 = vld [vmem:[%s2003 + $0x140] sm:$0x7f]
    %v2045 = vld [vmem:[%s2003 + $0x148] sm:$0x7f]
    %v2048 = vrot.slane %v1287, 7
    %v2049 = vsel %vm1411, %v2048, %v1285
    %v2050 = vrot.slane %v1289, 6
    %v2051 = vsel %vm1414, %v2050, %v2049
    %v2052 = vrot.slane %v1291, 5
    %v2053 = vsel %vm1417, %v2052, %v2051
    %v2054 = vrot.slane %v1293, 4
    %v2055 = vsel %vm1420, %v2054, %v2053
    %v2056 = vrot.slane %v1295, 3
    %v2057 = vsel %vm1423, %v2056, %v2055
    %v2058 = vrot.slane %v1297, 2
    %v2059 = vsel %vm1426, %v2058, %v2057
    %v2060 = vrot.slane %v1299, 1
    %v2061 = vsel %vm1429, %v2060, %v2059
    %v2062 = vrot.slane %v1288, 7
    %v2063 = vsel %vm1411, %v2062, %v1286
    %v2064 = vrot.slane %v1290, 6
    %v2065 = vsel %vm1414, %v2064, %v2063
    %v2066 = vrot.slane %v1292, 5
    %v2067 = vsel %vm1417, %v2066, %v2065
    %v2068 = vrot.slane %v1294, 4
    %v2069 = vsel %vm1420, %v2068, %v2067
    %v2070 = vrot.slane %v1296, 3
    %v2071 = vsel %vm1423, %v2070, %v2069
    %v2072 = vrot.slane %v1298, 2
    %v2073 = vsel %vm1426, %v2072, %v2071
    %v2074 = vrot.slane %v1300, 1
    %v2075 = vsel %vm1429, %v2074, %v2073
    %v2076 = vrot.slane %v1303, 7
    %v2077 = vsel %vm1411, %v2076, %v1301
    %v2078 = vrot.slane %v1304, 7
    %v2079 = vsel %vm1411, %v2078, %v1302
    %v2082 = vsel %vm1451, %v2075, 0
    %v2084 = vsel %vm1451, %v2079, 0
    %v2087 = vsel %vm1456, %v2044, 0
    %v2090 = vsel %vm1456, %v2045, 0
    %2092 = vmatprep.subr.mxu0 %v2005
    %2093 = vmatpush1.msra.mxu0 %v2004
    %2094 = vmatprep.subr.mxu0 %v2007
    %2095 = vmatpush1.msra.mxu0 %v2006
    %2096 = vmatprep.subr.mxu0 %v2009
    %2097 = vmatpush1.msra.mxu0 %v2008
    %2098 = vmatprep.subr.mxu0 %v2011
    %2099 = vmatpush1.msra.mxu0 %v2010
    %2100 = vmatprep.subr.mxu0 %v2013
    %2101 = vmatpush1.msra.mxu0 %v2012
    %2102 = vmatprep.subr.mxu0 %v2015
    %2103 = vmatpush1.msra.mxu0 %v2014
    %2104 = vmatprep.subr.mxu0 %v2017
    %2105 = vmatpush1.msra.mxu0 %v2016
    %2106 = vmatprep.subr.mxu0 %v2019
    %2107 = vmatpush1.msra.mxu0 %v2018
    %2108 = vmatprep.subr.mxu0 %v2021
    %2109 = vmatpush1.msra.mxu0 %v2020
    %2110 = vmatprep.subr.mxu0 %v2023
    %2111 = vmatpush1.msra.mxu0 %v2022
    %2112 = vmatprep.subr.mxu0 %v2025
    %2113 = vmatpush1.msra.mxu0 %v2024
    %2114 = vmatprep.subr.mxu0 %v2027
    %2115 = vmatpush1.msra.mxu0 %v2026
    %2116 = vmatprep.subr.mxu0 %v2029
    %2117 = vmatpush1.msra.mxu0 %v2028
    %2118 = vmatprep.subr.mxu0 %v2031
    %2119 = vmatpush1.msra.mxu0 %v2030
    %2120 = vmatprep.subr.mxu0 %v2033
    %2121 = vmatpush1.msra.mxu0 %v2032
    %2122 = vmatprep.subr.mxu0 %v2035
    %2123 = vmatpush1.msra.mxu0 %v2034
    %2124 = vmatprep.subr.mxu0 %v2037
    %2125 = vmatpush1.msra.mxu0 %v2036
    %2126 = vmatprep.subr.mxu0 %v2039
    %2127 = vmatpush1.msra.mxu0 %v2038
    %2128 = vmatprep.subr.mxu0 %v2041
    %2129 = vmatpush1.msra.mxu0 %v2040
    %2130 = vmatprep.subr.mxu0 %v2043
    %2131 = vmatpush1.msra.mxu0 %v2042
    %2132 = vmatprep.subr.mxu0 %v2090
    %2133 = vmatpush1.msra.mxu0 %v2087
    %2134 = vmatprep.subr.mxu0 0.0
    %2135 = vmatpush1.msra.mxu0 0.0
    %2136 = vmatprep.subr.mxu0 0.0
    %2137 = vmatpush1.msra.mxu0 0.0
    %2138 = vmatprep.subr.mxu0 0.0
    %2139 = vmatpush1.msra.mxu0 0.0
    %2140 = vmatprep.subr.mxu0 0.0
    %2141 = vmatpush1.msra.mxu0 0.0
    %2142 = vmatprep.subr.mxu0 0.0
    %2143 = vmatpush1.msra.mxu0 0.0
    %2144 = vmatprep.subr.mxu0 0.0
    %2145 = vmatpush1.msra.mxu0 0.0
    %2146 = vmatprep.subr.mxu0 0.0
    %2147 = vmatpush1.msra.mxu0 0.0
    %2148 = vmatprep.subr.mxu0 0.0
    %2149 = vmatpush1.msra.mxu0 0.0
    %2150 = vmatprep.subr.mxu0 0.0
    %2151 = vmatpush1.msra.mxu0 0.0
    %2152 = vmatprep.subr.mxu0 0.0
    %2153 = vmatpush1.msra.mxu0 0.0
    %2154 = vmatprep.subr.mxu0 0.0
    %2155 = vmatpush1.msra.mxu0 0.0
    %2156 = vmatprep.mubr.f32.mxu0 %v2082
    %2157 = vmatmul.mubr.f32.gmra.mrb[0].mxu0 %v2061
    %v2158 = vpop.f32.mrb[0].mxu0
    %v2159 = vadd.f32 0.0, %v2158
    %v2160 = vpop.f32.mrb[0].mxu0
    %v2161 = vadd.f32 0.0, %v2160
    %2162 = vmatprep.mubr.f32.mxu0 %v2084
    %2163 = vmatmul.mubr.f32.gmra.mrb[0].mxu0 %v2077
    %v2164 = vpop.f32.mrb[0].mxu0
    %v2165 = vadd.f32 0.0, %v2164
    %v2166 = vpop.f32.mrb[0].mxu0
    %v2167 = vadd.f32 0.0, %v2166
    %2168 = vdwg.mxu0
    %v2169 = vadd.f32 %v1999, %v2159
    %v2170 = vadd.f32 %v2000, %v2161
    %v2171 = vadd.f32 %v2001, %v2165
    %v2172 = vadd.f32 %v2002, %v2167
    %v2173 = vld [vmem:[%s4] sm:$0x3]
    %v2175 = vlaneseq
    %v2176 = vshrl.u32 %v2175, 7
    %v2177 = vsub.s32 0, %v2176
    %v2178 = vrot.slane %v2173, %v2177
    %v2179 = vlaneseq
    %v2180 = vshrl.u32 %v2179, 7
    %v2181 = vsub.s32 1, %v2180
    %v2182 = vrot.slane %v2173, %v2181
    %v2185 = vadd.f32 %v2169, %v2178
    %v2186 = vadd.f32 %v2170, %v2182
    %v2187 = vadd.f32 %v2171, %v2178
    %v2188 = vadd.f32 %v2172, %v2182
    %v2189 = vmax.f32 %v2185, 0.0
    %v2190 = vmax.f32 %v2186, 0.0
    %v2191 = vmax.f32 %v2187, 0.0
    %v2192 = vmax.f32 %v2188, 0.0
    %v2197 = vcombine.low %v2189, %v2190
    %v2198 = vcombine.high %v2189, %v2190
    %v2200 = vunpack.c.l.s4 1983009808
    %v2201 = vunpack.c.0.s8 %v2200
    %v2202 = vlaneseq
    %v2203 = vshrl.u32 %v2202, 7
    %v2204 = vsub.s32 %v2201, %v2203
    %v2205 = vrot.slane %v2197, %v2204
    %v2207 = vunpack.c.l.s4 1983009808
    %v2208 = vunpack.c.0.s8 %v2207
    %v2209 = vlaneseq
    %v2210 = vshrl.u32 %v2209, 7
    %v2211 = vsub.s32 %v2208, %v2210
    %v2212 = vrot.slane %v2198, %v2211
    %v2213 = vcombine.high %v2205, %v2205
    %v2214 = vcombine.high %v2212, %v2212
    %v2215 = vcombine.low %v2191, %v2192
    %v2217 = vunpack.c.l.s4 1983009808
    %v2218 = vunpack.c.0.s8 %v2217
    %v2219 = vlaneseq
    %v2220 = vshrl.u32 %v2219, 7
    %v2221 = vsub.s32 %v2218, %v2220
    %v2222 = vrot.slane %v2215, %v2221
    %v2224 = vunpack.c.l.s4 1983009808
    %v2225 = vunpack.c.0.s8 %v2224
    %v2226 = vlaneseq
    %v2227 = vshrl.u32 %v2226, 7
    %v2228 = vsub.s32 %v2225, %v2227
    %v2229 = vrot.slane %v2205, %v2228
    %v2230 = vcombine.high %v2229, %v2229
    %v2232 = vunpack.c.l.s4 1983009808
    %v2233 = vunpack.c.0.s8 %v2232
    %v2234 = vlaneseq
    %v2235 = vshrl.u32 %v2234, 7
    %v2236 = vsub.s32 %v2233, %v2235
    %v2237 = vrot.slane %v2213, %v2236
    %v2238 = vcombine.high %v2237, %v2237
    %v2240 = vunpack.c.l.s4 1983009808
    %v2241 = vunpack.c.0.s8 %v2240
    %v2242 = vlaneseq
    %v2243 = vshrl.u32 %v2242, 7
    %v2244 = vsub.s32 %v2241, %v2243
    %v2245 = vrot.slane %v2212, %v2244
    %v2246 = vcombine.high %v2245, %v2245
    %v2248 = vunpack.c.l.s4 1983009808
    %v2249 = vunpack.c.0.s8 %v2248
    %v2250 = vlaneseq
    %v2251 = vshrl.u32 %v2250, 7
    %v2252 = vsub.s32 %v2249, %v2251
    %v2253 = vrot.slane %v2214, %v2252
    %v2254 = vcombine.high %v2253, %v2253
    %v2256 = vunpack.c.l.s4 1983009808
    %v2257 = vunpack.c.0.s8 %v2256
    %v2258 = vlaneseq
    %v2259 = vshrl.u32 %v2258, 7
    %v2260 = vsub.s32 %v2257, %v2259
    %v2261 = vrot.slane %v2222, %v2260
    %v2262 = vcombine.high %v2261, %v2261
    %v2273 = vsel %vm952, %v2229, -inf
    %v2274 = vrot.slane %v2273, 4
    %v2275 = vmax.f32 %v2273, %v2274
    %v2276 = vrot.slane %v2275, 2
    %v2277 = vmax.f32 %v2275, %v2276
    %v2278 = vrot.slane %v2277, 1
    %v2279 = vmax.f32 %v2277, %v2278
    %vm2280 = vcmask 254976
    %v2281 = vsel %vm2280, %v2230, -inf
    %v2282 = vrot.slane %v2281, 4
    %v2283 = vmax.f32 %v2281, %v2282
    %v2284 = vrot.slane %v2283, 2
    %v2285 = vmax.f32 %v2283, %v2284
    %v2286 = vrot.slane %v2285, 1
    %v2287 = vmax.f32 %v2285, %v2286
    %v2288 = vsel %vm952, %v2237, -inf
    %v2289 = vrot.slane %v2288, 4
    %v2290 = vmax.f32 %v2288, %v2289
    %v2291 = vrot.slane %v2290, 2
    %v2292 = vmax.f32 %v2290, %v2291
    %v2293 = vrot.slane %v2292, 1
    %v2294 = vmax.f32 %v2292, %v2293
    %v2295 = vsel %vm2280, %v2238, -inf
    %v2296 = vrot.slane %v2295, 4
    %v2297 = vmax.f32 %v2295, %v2296
    %v2298 = vrot.slane %v2297, 2
    %v2299 = vmax.f32 %v2297, %v2298
    %v2300 = vrot.slane %v2299, 1
    %v2301 = vmax.f32 %v2299, %v2300
    %v2302 = vsel %vm952, %v2245, -inf
    %v2303 = vrot.slane %v2302, 4
    %v2304 = vmax.f32 %v2302, %v2303
    %v2305 = vrot.slane %v2304, 2
    %v2306 = vmax.f32 %v2304, %v2305
    %v2307 = vrot.slane %v2306, 1
    %v2308 = vmax.f32 %v2306, %v2307
    %v2309 = vsel %vm2280, %v2246, -inf
    %v2310 = vrot.slane %v2309, 4
    %v2311 = vmax.f32 %v2309, %v2310
    %v2312 = vrot.slane %v2311, 2
    %v2313 = vmax.f32 %v2311, %v2312
    %v2314 = vrot.slane %v2313, 1
    %v2315 = vmax.f32 %v2313, %v2314
    %v2316 = vsel %vm952, %v2253, -inf
    %v2317 = vrot.slane %v2316, 4
    %v2318 = vmax.f32 %v2316, %v2317
    %v2319 = vrot.slane %v2318, 2
    %v2320 = vmax.f32 %v2318, %v2319
    %v2321 = vrot.slane %v2320, 1
    %v2322 = vmax.f32 %v2320, %v2321
    %v2323 = vsel %vm2280, %v2254, -inf
    %v2324 = vrot.slane %v2323, 4
    %v2325 = vmax.f32 %v2323, %v2324
    %v2326 = vrot.slane %v2325, 2
    %v2327 = vmax.f32 %v2325, %v2326
    %v2328 = vrot.slane %v2327, 1
    %v2329 = vmax.f32 %v2327, %v2328
    %v2330 = vsel %vm952, %v2261, -inf
    %v2331 = vrot.slane %v2330, 4
    %v2332 = vmax.f32 %v2330, %v2331
    %v2333 = vrot.slane %v2332, 2
    %v2334 = vmax.f32 %v2332, %v2333
    %v2335 = vrot.slane %v2334, 1
    %v2336 = vmax.f32 %v2334, %v2335
    %v2337 = vsel %vm2280, %v2262, -inf
    %v2338 = vrot.slane %v2337, 4
    %v2339 = vmax.f32 %v2337, %v2338
    %v2340 = vrot.slane %v2339, 2
    %v2341 = vmax.f32 %v2339, %v2340
    %v2342 = vrot.slane %v2341, 1
    %v2343 = vmax.f32 %v2341, %v2342
    %2354 = vrot.lane.b32.xlu0 %v2279, 127
    %v2355 = vpop.permute.xlu0 %2354
    %2356 = vrot.lane.b32.xlu0 %v2287, 127
    %v2357 = vpop.permute.xlu0 %2356
    %2358 = vrot.lane.b32.xlu0 %v2294, 127
    %v2359 = vpop.permute.xlu0 %2358
    %2360 = vrot.lane.b32.xlu0 %v2301, 127
    %v2361 = vpop.permute.xlu0 %2360
    %2362 = vrot.lane.b32.xlu0 %v2308, 127
    %v2363 = vpop.permute.xlu0 %2362
    %2364 = vrot.lane.b32.xlu0 %v2315, 127
    %v2365 = vpop.permute.xlu0 %2364
    %2366 = vrot.lane.b32.xlu0 %v2322, 127
    %v2367 = vpop.permute.xlu0 %2366
    %2368 = vrot.lane.b32.xlu0 %v2329, 127
    %v2369 = vpop.permute.xlu0 %2368
    %2370 = vrot.lane.b32.xlu0 %v2336, 127
    %v2371 = vpop.permute.xlu0 %2370
    %2372 = vrot.lane.b32.xlu0 %v2343, 127
    %v2373 = vpop.permute.xlu0 %2372
    %v2374 = vsel %vm1234, %v2355, %v2357
    %v2375 = vsel %vm1234, %v2359, %v2361
    %v2376 = vsel %vm1234, %v2363, %v2365
    %v2377 = vsel %vm1234, %v2367, %v2369
    %v2378 = vsel %vm1234, %v2371, %v2373
    %v2389 = vmax.f32 %v2279, %v2374
    %v2390 = vmax.f32 %v2287, %v2357
    %v2391 = vmax.f32 %v2294, %v2375
    %v2392 = vmax.f32 %v2301, %v2361
    %v2393 = vmax.f32 %v2308, %v2376
    %v2394 = vmax.f32 %v2315, %v2365
    %v2395 = vmax.f32 %v2322, %v2377
    %v2396 = vmax.f32 %v2329, %v2369
    %v2397 = vmax.f32 %v2336, %v2378
    %v2398 = vmax.f32 %v2343, %v2373
    %v2399 = vld [vmem:[%s5] sm:$0xff]
    %v2400 = vld [vmem:[%s5 + $0x8] sm:$0xff]
    %v2401 = vld [vmem:[%s5 + $0x10] sm:$0xff]
    %v2402 = vld [vmem:[%s5 + $0x18] sm:$0xff]
    %v2403 = vld [vmem:[%s5 + $0x20] sm:$0xff]
    %v2404 = vld [vmem:[%s5 + $0x28] sm:$0xff]
    %v2405 = vld [vmem:[%s5 + $0x30] sm:$0xff]
    %v2406 = vld [vmem:[%s5 + $0x38] sm:$0xff]
    %v2407 = vld [vmem:[%s5 + $0x40] sm:$0xff]
    %v2408 = vld [vmem:[%s5 + $0x48] sm:$0xff]
    %v2409 = vld [vmem:[%s5 + $0x50] sm:$0xff]
    %v2410 = vld [vmem:[%s5 + $0x58] sm:$0xff]
    %v2411 = vld [vmem:[%s5 + $0x60] sm:$0xff]
    %v2412 = vld [vmem:[%s5 + $0x68] sm:$0xff]
    %v2413 = vld [vmem:[%s5 + $0x70] sm:$0xff]
    %v2414 = vld [vmem:[%s5 + $0x78] sm:$0xff]
    %v2415 = vld [vmem:[%s5 + $0x80] sm:$0xff]
    %v2416 = vld [vmem:[%s5 + $0x88] sm:$0xff]
    %v2417 = vld [vmem:[%s5 + $0x90] sm:$0xff]
    %v2418 = vld [vmem:[%s5 + $0x98] sm:$0xff]
    %v2419 = vld [vmem:[%s5 + $0xa0] sm:$0xff]
    %v2420 = vld [vmem:[%s5 + $0xa8] sm:$0xff]
    %v2421 = vld [vmem:[%s5 + $0xb0] sm:$0xff]
    %v2422 = vld [vmem:[%s5 + $0xb8] sm:$0xff]
    %v2423 = vld [vmem:[%s5 + $0xc0] sm:$0xff]
    %v2424 = vld [vmem:[%s5 + $0xc8] sm:$0xff]
    %v2425 = vld [vmem:[%s5 + $0xd0] sm:$0xff]
    %v2426 = vld [vmem:[%s5 + $0xd8] sm:$0xff]
    %v2427 = vld [vmem:[%s5 + $0xe0] sm:$0xff]
    %v2428 = vld [vmem:[%s5 + $0xe8] sm:$0xff]
    %v2429 = vld [vmem:[%s5 + $0xf0] sm:$0xff]
    %v2430 = vld [vmem:[%s5 + $0xf8] sm:$0xff]
    %v2431 = vld [vmem:[%s5 + $0x100] sm:$0xff]
    %v2432 = vld [vmem:[%s5 + $0x108] sm:$0xff]
    %v2433 = vld [vmem:[%s5 + $0x110] sm:$0xff]
    %v2434 = vld [vmem:[%s5 + $0x118] sm:$0xff]
    %v2435 = vld [vmem:[%s5 + $0x120] sm:$0xff]
    %v2436 = vld [vmem:[%s5 + $0x128] sm:$0xff]
    %v2437 = vld [vmem:[%s5 + $0x130] sm:$0x7f]
    %v2438 = vld [vmem:[%s5 + $0x138] sm:$0x7f]
    %s2439 = scalar_lea.vmem %s5, 320
    %v2440 = vld [vmem:[%s2439] sm:$0xff]
    %v2441 = vld [vmem:[%s2439 + $0x8] sm:$0xff]
    %v2442 = vld [vmem:[%s2439 + $0x10] sm:$0xff]
    %v2443 = vld [vmem:[%s2439 + $0x18] sm:$0xff]
    %v2444 = vld [vmem:[%s2439 + $0x20] sm:$0xff]
    %v2445 = vld [vmem:[%s2439 + $0x28] sm:$0xff]
    %v2446 = vld [vmem:[%s2439 + $0x30] sm:$0xff]
    %v2447 = vld [vmem:[%s2439 + $0x38] sm:$0xff]
    %v2448 = vld [vmem:[%s2439 + $0x40] sm:$0xff]
    %v2449 = vld [vmem:[%s2439 + $0x48] sm:$0xff]
    %v2450 = vld [vmem:[%s2439 + $0x50] sm:$0xff]
    %v2451 = vld [vmem:[%s2439 + $0x58] sm:$0xff]
    %v2452 = vld [vmem:[%s2439 + $0x60] sm:$0xff]
    %v2453 = vld [vmem:[%s2439 + $0x68] sm:$0xff]
    %v2454 = vld [vmem:[%s2439 + $0x70] sm:$0xff]
    %v2455 = vld [vmem:[%s2439 + $0x78] sm:$0xff]
    %v2456 = vld [vmem:[%s2439 + $0x80] sm:$0xff]
    %v2457 = vld [vmem:[%s2439 + $0x88] sm:$0xff]
    %v2458 = vld [vmem:[%s2439 + $0x90] sm:$0xff]
    %v2459 = vld [vmem:[%s2439 + $0x98] sm:$0xff]
    %v2460 = vld [vmem:[%s2439 + $0xa0] sm:$0xff]
    %v2461 = vld [vmem:[%s2439 + $0xa8] sm:$0xff]
    %v2462 = vld [vmem:[%s2439 + $0xb0] sm:$0xff]
    %v2463 = vld [vmem:[%s2439 + $0xb8] sm:$0xff]
    %v2464 = vld [vmem:[%s2439 + $0xc0] sm:$0xff]
    %v2465 = vld [vmem:[%s2439 + $0xc8] sm:$0xff]
    %v2466 = vld [vmem:[%s2439 + $0xd0] sm:$0xff]
    %v2467 = vld [vmem:[%s2439 + $0xd8] sm:$0xff]
    %v2468 = vld [vmem:[%s2439 + $0xe0] sm:$0xff]
    %v2469 = vld [vmem:[%s2439 + $0xe8] sm:$0xff]
    %v2470 = vld [vmem:[%s2439 + $0xf0] sm:$0xff]
    %v2471 = vld [vmem:[%s2439 + $0xf8] sm:$0xff]
    %v2472 = vld [vmem:[%s2439 + $0x100] sm:$0xff]
    %v2473 = vld [vmem:[%s2439 + $0x108] sm:$0xff]
    %v2474 = vld [vmem:[%s2439 + $0x110] sm:$0xff]
    %v2475 = vld [vmem:[%s2439 + $0x118] sm:$0xff]
    %v2476 = vld [vmem:[%s2439 + $0x120] sm:$0xff]
    %v2477 = vld [vmem:[%s2439 + $0x128] sm:$0xff]
    %v2478 = vld [vmem:[%s2439 + $0x130] sm:$0x7f]
    %v2479 = vld [vmem:[%s2439 + $0x138] sm:$0x7f]
    %vm2480 = vcmask 252928
    %v2482 = vsel %vm2480, %v2392, 0
    %v2485 = vsel %vm1456, %v2478, 0
    %v2488 = vsel %vm1456, %v2479, 0
    %2490 = vmatprep.subr.mxu0 %v2441
    %2491 = vmatpush1.msra.mxu0 %v2440
    %2492 = vmatprep.subr.mxu0 %v2443
    %2493 = vmatpush1.msra.mxu0 %v2442
    %2494 = vmatprep.subr.mxu0 %v2445
    %2495 = vmatpush1.msra.mxu0 %v2444
    %2496 = vmatprep.subr.mxu0 %v2447
    %2497 = vmatpush1.msra.mxu0 %v2446
    %2498 = vmatprep.subr.mxu0 %v2449
    %2499 = vmatpush1.msra.mxu0 %v2448
    %2500 = vmatprep.subr.mxu0 %v2451
    %2501 = vmatpush1.msra.mxu0 %v2450
    %2502 = vmatprep.subr.mxu0 %v2453
    %2503 = vmatpush1.msra.mxu0 %v2452
    %2504 = vmatprep.subr.mxu0 %v2455
    %2505 = vmatpush1.msra.mxu0 %v2454
    %2506 = vmatprep.subr.mxu0 %v2457
    %2507 = vmatpush1.msra.mxu0 %v2456
    %2508 = vmatprep.subr.mxu0 %v2459
    %2509 = vmatpush1.msra.mxu0 %v2458
    %2510 = vmatprep.subr.mxu0 %v2461
    %2511 = vmatpush1.msra.mxu0 %v2460
    %2512 = vmatprep.subr.mxu0 %v2463
    %2513 = vmatpush1.msra.mxu0 %v2462
    %2514 = vmatprep.subr.mxu0 %v2465
    %2515 = vmatpush1.msra.mxu0 %v2464
    %2516 = vmatprep.subr.mxu0 %v2467
    %2517 = vmatpush1.msra.mxu0 %v2466
    %2518 = vmatprep.subr.mxu0 %v2469
    %2519 = vmatpush1.msra.mxu0 %v2468
    %2520 = vmatprep.subr.mxu0 %v2471
    %2521 = vmatpush1.msra.mxu0 %v2470
    %2522 = vmatprep.subr.mxu0 %v2473
    %2523 = vmatpush1.msra.mxu0 %v2472
    %2524 = vmatprep.subr.mxu0 %v2475
    %2525 = vmatpush1.msra.mxu0 %v2474
    %2526 = vmatprep.subr.mxu0 %v2477
    %2527 = vmatpush1.msra.mxu0 %v2476
    %2528 = vmatprep.subr.mxu0 %v2488
    %2529 = vmatpush1.msra.mxu0 %v2485
    %2530 = vmatprep.subr.mxu0 0.0
    %2531 = vmatpush1.msra.mxu0 0.0
    %2532 = vmatprep.subr.mxu0 0.0
    %2533 = vmatpush1.msra.mxu0 0.0
    %2534 = vmatprep.subr.mxu0 0.0
    %2535 = vmatpush1.msra.mxu0 0.0
    %2536 = vmatprep.subr.mxu0 0.0
    %2537 = vmatpush1.msra.mxu0 0.0
    %2538 = vmatprep.subr.mxu0 0.0
    %2539 = vmatpush1.msra.mxu0 0.0
    %2540 = vmatprep.subr.mxu0 0.0
    %2541 = vmatpush1.msra.mxu0 0.0
    %2542 = vmatprep.subr.mxu0 0.0
    %2543 = vmatpush1.msra.mxu0 0.0
    %2544 = vmatprep.subr.mxu0 0.0
    %2545 = vmatpush1.msra.mxu0 0.0
    %2546 = vmatprep.subr.mxu0 0.0
    %2547 = vmatpush1.msra.mxu0 0.0
    %2548 = vmatprep.subr.mxu0 0.0
    %2549 = vmatpush1.msra.mxu0 0.0
    %2550 = vmatprep.subr.mxu0 0.0
    %2551 = vmatpush1.msra.mxu0 0.0
    %2552 = vmatprep.subr.mxu0 0.0
    %2553 = vmatpush1.msra.mxu0 0.0
    %2554 = vmatprep.mubr.f32.mxu0 %v2482
    %2555 = vmatmul.mubr.f32.gmra.mrb[0].mxu0 %v2391
    %v2556 = vpop.f32.mrb[0].mxu0
    %v2557 = vadd.f32 0.0, %v2556
    %v2558 = vpop.f32.mrb[0].mxu0
    %v2559 = vadd.f32 0.0, %v2558
    %2560 = vdwg.mxu0
    %v2562 = vsel %vm2480, %v2390, 0
    %v2565 = vsel %vm1456, %v2437, 0
    %v2568 = vsel %vm1456, %v2438, 0
    %2570 = vmatprep.subr.mxu0 %v2400
    %2571 = vmatpush1.msra.mxu0 %v2399
    %2572 = vmatprep.subr.mxu0 %v2402
    %2573 = vmatpush1.msra.mxu0 %v2401
    %2574 = vmatprep.subr.mxu0 %v2404
    %2575 = vmatpush1.msra.mxu0 %v2403
    %2576 = vmatprep.subr.mxu0 %v2406
    %2577 = vmatpush1.msra.mxu0 %v2405
    %2578 = vmatprep.subr.mxu0 %v2408
    %2579 = vmatpush1.msra.mxu0 %v2407
    %2580 = vmatprep.subr.mxu0 %v2410
    %2581 = vmatpush1.msra.mxu0 %v2409
    %2582 = vmatprep.subr.mxu0 %v2412
    %2583 = vmatpush1.msra.mxu0 %v2411
    %2584 = vmatprep.subr.mxu0 %v2414
    %2585 = vmatpush1.msra.mxu0 %v2413
    %2586 = vmatprep.subr.mxu0 %v2416
    %2587 = vmatpush1.msra.mxu0 %v2415
    %2588 = vmatprep.subr.mxu0 %v2418
    %2589 = vmatpush1.msra.mxu0 %v2417
    %2590 = vmatprep.subr.mxu0 %v2420
    %2591 = vmatpush1.msra.mxu0 %v2419
    %2592 = vmatprep.subr.mxu0 %v2422
    %2593 = vmatpush1.msra.mxu0 %v2421
    %2594 = vmatprep.subr.mxu0 %v2424
    %2595 = vmatpush1.msra.mxu0 %v2423
    %2596 = vmatprep.subr.mxu0 %v2426
    %2597 = vmatpush1.msra.mxu0 %v2425
    %2598 = vmatprep.subr.mxu0 %v2428
    %2599 = vmatpush1.msra.mxu0 %v2427
    %2600 = vmatprep.subr.mxu0 %v2430
    %2601 = vmatpush1.msra.mxu0 %v2429
    %2602 = vmatprep.subr.mxu0 %v2432
    %2603 = vmatpush1.msra.mxu0 %v2431
    %2604 = vmatprep.subr.mxu0 %v2434
    %2605 = vmatpush1.msra.mxu0 %v2433
    %2606 = vmatprep.subr.mxu0 %v2436
    %2607 = vmatpush1.msra.mxu0 %v2435
    %2608 = vmatprep.subr.mxu0 %v2568
    %2609 = vmatpush1.msra.mxu0 %v2565
    %2610 = vmatprep.subr.mxu0 0.0
    %2611 = vmatpush1.msra.mxu0 0.0
    %2612 = vmatprep.subr.mxu0 0.0
    %2613 = vmatpush1.msra.mxu0 0.0
    %2614 = vmatprep.subr.mxu0 0.0
    %2615 = vmatpush1.msra.mxu0 0.0
    %2616 = vmatprep.subr.mxu0 0.0
    %2617 = vmatpush1.msra.mxu0 0.0
    %2618 = vmatprep.subr.mxu0 0.0
    %2619 = vmatpush1.msra.mxu0 0.0
    %2620 = vmatprep.subr.mxu0 0.0
    %2621 = vmatpush1.msra.mxu0 0.0
    %2622 = vmatprep.subr.mxu0 0.0
    %2623 = vmatpush1.msra.mxu0 0.0
    %2624 = vmatprep.subr.mxu0 0.0
    %2625 = vmatpush1.msra.mxu0 0.0
    %2626 = vmatprep.subr.mxu0 0.0
    %2627 = vmatpush1.msra.mxu0 0.0
    %2628 = vmatprep.subr.mxu0 0.0
    %2629 = vmatpush1.msra.mxu0 0.0
    %2630 = vmatprep.subr.mxu0 0.0
    %2631 = vmatpush1.msra.mxu0 0.0
    %2632 = vmatprep.subr.mxu0 0.0
    %2633 = vmatpush1.msra.mxu0 0.0
    %2634 = vmatprep.mubr.f32.mxu0 %v2562
    %2635 = vmatmul.mubr.f32.gmra.mrb[0].mxu0 %v2389
    %v2636 = vpop.f32.mrb[0].mxu0
    %v2637 = vadd.f32 %v2557, %v2636
    %v2638 = vpop.f32.mrb[0].mxu0
    %v2639 = vadd.f32 %v2559, %v2638
    %2640 = vdwg.mxu0
    %s2641 = scalar_lea.vmem %s5, 640
    %v2642 = vld [vmem:[%s2641] sm:$0xff]
    %v2643 = vld [vmem:[%s2641 + $0x8] sm:$0xff]
    %v2644 = vld [vmem:[%s2641 + $0x10] sm:$0xff]
    %v2645 = vld [vmem:[%s2641 + $0x18] sm:$0xff]
    %v2646 = vld [vmem:[%s2641 + $0x20] sm:$0xff]
    %v2647 = vld [vmem:[%s2641 + $0x28] sm:$0xff]
    %v2648 = vld [vmem:[%s2641 + $0x30] sm:$0xff]
    %v2649 = vld [vmem:[%s2641 + $0x38] sm:$0xff]
    %v2650 = vld [vmem:[%s2641 + $0x40] sm:$0xff]
    %v2651 = vld [vmem:[%s2641 + $0x48] sm:$0xff]
    %v2652 = vld [vmem:[%s2641 + $0x50] sm:$0xff]
    %v2653 = vld [vmem:[%s2641 + $0x58] sm:$0xff]
    %v2654 = vld [vmem:[%s2641 + $0x60] sm:$0xff]
    %v2655 = vld [vmem:[%s2641 + $0x68] sm:$0xff]
    %v2656 = vld [vmem:[%s2641 + $0x70] sm:$0xff]
    %v2657 = vld [vmem:[%s2641 + $0x78] sm:$0xff]
    %v2658 = vld [vmem:[%s2641 + $0x80] sm:$0xff]
    %v2659 = vld [vmem:[%s2641 + $0x88] sm:$0xff]
    %v2660 = vld [vmem:[%s2641 + $0x90] sm:$0xff]
    %v2661 = vld [vmem:[%s2641 + $0x98] sm:$0xff]
    %v2662 = vld [vmem:[%s2641 + $0xa0] sm:$0xff]
    %v2663 = vld [vmem:[%s2641 + $0xa8] sm:$0xff]
    %v2664 = vld [vmem:[%s2641 + $0xb0] sm:$0xff]
    %v2665 = vld [vmem:[%s2641 + $0xb8] sm:$0xff]
    %v2666 = vld [vmem:[%s2641 + $0xc0] sm:$0xff]
    %v2667 = vld [vmem:[%s2641 + $0xc8] sm:$0xff]
    %v2668 = vld [vmem:[%s2641 + $0xd0] sm:$0xff]
    %v2669 = vld [vmem:[%s2641 + $0xd8] sm:$0xff]
    %v2670 = vld [vmem:[%s2641 + $0xe0] sm:$0xff]
    %v2671 = vld [vmem:[%s2641 + $0xe8] sm:$0xff]
    %v2672 = vld [vmem:[%s2641 + $0xf0] sm:$0xff]
    %v2673 = vld [vmem:[%s2641 + $0xf8] sm:$0xff]
    %v2674 = vld [vmem:[%s2641 + $0x100] sm:$0xff]
    %v2675 = vld [vmem:[%s2641 + $0x108] sm:$0xff]
    %v2676 = vld [vmem:[%s2641 + $0x110] sm:$0xff]
    %v2677 = vld [vmem:[%s2641 + $0x118] sm:$0xff]
    %v2678 = vld [vmem:[%s2641 + $0x120] sm:$0xff]
    %v2679 = vld [vmem:[%s2641 + $0x128] sm:$0xff]
    %v2680 = vld [vmem:[%s2641 + $0x130] sm:$0x7f]
    %v2681 = vld [vmem:[%s2641 + $0x138] sm:$0x7f]
    %v2683 = vsel %vm2480, %v2394, 0
    %v2686 = vsel %vm1456, %v2680, 0
    %v2689 = vsel %vm1456, %v2681, 0
    %2691 = vmatprep.subr.mxu0 %v2643
    %2692 = vmatpush1.msra.mxu0 %v2642
    %2693 = vmatprep.subr.mxu0 %v2645
    %2694 = vmatpush1.msra.mxu0 %v2644
    %2695 = vmatprep.subr.mxu0 %v2647
    %2696 = vmatpush1.msra.mxu0 %v2646
    %2697 = vmatprep.subr.mxu0 %v2649
    %2698 = vmatpush1.msra.mxu0 %v2648
    %2699 = vmatprep.subr.mxu0 %v2651
    %2700 = vmatpush1.msra.mxu0 %v2650
    %2701 = vmatprep.subr.mxu0 %v2653
    %2702 = vmatpush1.msra.mxu0 %v2652
    %2703 = vmatprep.subr.mxu0 %v2655
    %2704 = vmatpush1.msra.mxu0 %v2654
    %2705 = vmatprep.subr.mxu0 %v2657
    %2706 = vmatpush1.msra.mxu0 %v2656
    %2707 = vmatprep.subr.mxu0 %v2659
    %2708 = vmatpush1.msra.mxu0 %v2658
    %2709 = vmatprep.subr.mxu0 %v2661
    %2710 = vmatpush1.msra.mxu0 %v2660
    %2711 = vmatprep.subr.mxu0 %v2663
    %2712 = vmatpush1.msra.mxu0 %v2662
    %2713 = vmatprep.subr.mxu0 %v2665
    %2714 = vmatpush1.msra.mxu0 %v2664
    %2715 = vmatprep.subr.mxu0 %v2667
    %2716 = vmatpush1.msra.mxu0 %v2666
    %2717 = vmatprep.subr.mxu0 %v2669
    %2718 = vmatpush1.msra.mxu0 %v2668
    %2719 = vmatprep.subr.mxu0 %v2671
    %2720 = vmatpush1.msra.mxu0 %v2670
    %2721 = vmatprep.subr.mxu0 %v2673
    %2722 = vmatpush1.msra.mxu0 %v2672
    %2723 = vmatprep.subr.mxu0 %v2675
    %2724 = vmatpush1.msra.mxu0 %v2674
    %2725 = vmatprep.subr.mxu0 %v2677
    %2726 = vmatpush1.msra.mxu0 %v2676
    %2727 = vmatprep.subr.mxu0 %v2679
    %2728 = vmatpush1.msra.mxu0 %v2678
    %2729 = vmatprep.subr.mxu0 %v2689
    %2730 = vmatpush1.msra.mxu0 %v2686
    %2731 = vmatprep.subr.mxu0 0.0
    %2732 = vmatpush1.msra.mxu0 0.0
    %2733 = vmatprep.subr.mxu0 0.0
    %2734 = vmatpush1.msra.mxu0 0.0
    %2735 = vmatprep.subr.mxu0 0.0
    %2736 = vmatpush1.msra.mxu0 0.0
    %2737 = vmatprep.subr.mxu0 0.0
    %2738 = vmatpush1.msra.mxu0 0.0
    %2739 = vmatprep.subr.mxu0 0.0
    %2740 = vmatpush1.msra.mxu0 0.0
    %2741 = vmatprep.subr.mxu0 0.0
    %2742 = vmatpush1.msra.mxu0 0.0
    %2743 = vmatprep.subr.mxu0 0.0
    %2744 = vmatpush1.msra.mxu0 0.0
    %2745 = vmatprep.subr.mxu0 0.0
    %2746 = vmatpush1.msra.mxu0 0.0
    %2747 = vmatprep.subr.mxu0 0.0
    %2748 = vmatpush1.msra.mxu0 0.0
    %2749 = vmatprep.subr.mxu0 0.0
    %2750 = vmatpush1.msra.mxu0 0.0
    %2751 = vmatprep.subr.mxu0 0.0
    %2752 = vmatpush1.msra.mxu0 0.0
    %2753 = vmatprep.subr.mxu0 0.0
    %2754 = vmatpush1.msra.mxu0 0.0
    %2755 = vmatprep.mubr.f32.mxu0 %v2683
    %2756 = vmatmul.mubr.f32.gmra.mrb[0].mxu0 %v2393
    %v2757 = vpop.f32.mrb[0].mxu0
    %v2758 = vadd.f32 0.0, %v2757
    %v2759 = vpop.f32.mrb[0].mxu0
    %v2760 = vadd.f32 0.0, %v2759
    %2761 = vdwg.mxu0
    %v2762 = vadd.f32 %v2637, %v2758
    %v2763 = vadd.f32 %v2639, %v2760
    %s2764 = scalar_lea.vmem %s5, 960
    %v2765 = vld [vmem:[%s2764] sm:$0xff]
    %v2766 = vld [vmem:[%s2764 + $0x8] sm:$0xff]
    %v2767 = vld [vmem:[%s2764 + $0x10] sm:$0xff]
    %v2768 = vld [vmem:[%s2764 + $0x18] sm:$0xff]
    %v2769 = vld [vmem:[%s2764 + $0x20] sm:$0xff]
    %v2770 = vld [vmem:[%s2764 + $0x28] sm:$0xff]
    %v2771 = vld [vmem:[%s2764 + $0x30] sm:$0xff]
    %v2772 = vld [vmem:[%s2764 + $0x38] sm:$0xff]
    %v2773 = vld [vmem:[%s2764 + $0x40] sm:$0xff]
    %v2774 = vld [vmem:[%s2764 + $0x48] sm:$0xff]
    %v2775 = vld [vmem:[%s2764 + $0x50] sm:$0xff]
    %v2776 = vld [vmem:[%s2764 + $0x58] sm:$0xff]
    %v2777 = vld [vmem:[%s2764 + $0x60] sm:$0xff]
    %v2778 = vld [vmem:[%s2764 + $0x68] sm:$0xff]
    %v2779 = vld [vmem:[%s2764 + $0x70] sm:$0xff]
    %v2780 = vld [vmem:[%s2764 + $0x78] sm:$0xff]
    %v2781 = vld [vmem:[%s2764 + $0x80] sm:$0xff]
    %v2782 = vld [vmem:[%s2764 + $0x88] sm:$0xff]
    %v2783 = vld [vmem:[%s2764 + $0x90] sm:$0xff]
    %v2784 = vld [vmem:[%s2764 + $0x98] sm:$0xff]
    %v2785 = vld [vmem:[%s2764 + $0xa0] sm:$0xff]
    %v2786 = vld [vmem:[%s2764 + $0xa8] sm:$0xff]
    %v2787 = vld [vmem:[%s2764 + $0xb0] sm:$0xff]
    %v2788 = vld [vmem:[%s2764 + $0xb8] sm:$0xff]
    %v2789 = vld [vmem:[%s2764 + $0xc0] sm:$0xff]
    %v2790 = vld [vmem:[%s2764 + $0xc8] sm:$0xff]
    %v2791 = vld [vmem:[%s2764 + $0xd0] sm:$0xff]
    %v2792 = vld [vmem:[%s2764 + $0xd8] sm:$0xff]
    %v2793 = vld [vmem:[%s2764 + $0xe0] sm:$0xff]
    %v2794 = vld [vmem:[%s2764 + $0xe8] sm:$0xff]
    %v2795 = vld [vmem:[%s2764 + $0xf0] sm:$0xff]
    %v2796 = vld [vmem:[%s2764 + $0xf8] sm:$0xff]
    %v2797 = vld [vmem:[%s2764 + $0x100] sm:$0xff]
    %v2798 = vld [vmem:[%s2764 + $0x108] sm:$0xff]
    %v2799 = vld [vmem:[%s2764 + $0x110] sm:$0xff]
    %v2800 = vld [vmem:[%s2764 + $0x118] sm:$0xff]
    %v2801 = vld [vmem:[%s2764 + $0x120] sm:$0xff]
    %v2802 = vld [vmem:[%s2764 + $0x128] sm:$0xff]
    %v2803 = vld [vmem:[%s2764 + $0x130] sm:$0x7f]
    %v2804 = vld [vmem:[%s2764 + $0x138] sm:$0x7f]
    %v2806 = vsel %vm2480, %v2396, 0
    %v2809 = vsel %vm1456, %v2803, 0
    %v2812 = vsel %vm1456, %v2804, 0
    %2814 = vmatprep.subr.mxu0 %v2766
    %2815 = vmatpush1.msra.mxu0 %v2765
    %2816 = vmatprep.subr.mxu0 %v2768
    %2817 = vmatpush1.msra.mxu0 %v2767
    %2818 = vmatprep.subr.mxu0 %v2770
    %2819 = vmatpush1.msra.mxu0 %v2769
    %2820 = vmatprep.subr.mxu0 %v2772
    %2821 = vmatpush1.msra.mxu0 %v2771
    %2822 = vmatprep.subr.mxu0 %v2774
    %2823 = vmatpush1.msra.mxu0 %v2773
    %2824 = vmatprep.subr.mxu0 %v2776
    %2825 = vmatpush1.msra.mxu0 %v2775
    %2826 = vmatprep.subr.mxu0 %v2778
    %2827 = vmatpush1.msra.mxu0 %v2777
    %2828 = vmatprep.subr.mxu0 %v2780
    %2829 = vmatpush1.msra.mxu0 %v2779
    %2830 = vmatprep.subr.mxu0 %v2782
    %2831 = vmatpush1.msra.mxu0 %v2781
    %2832 = vmatprep.subr.mxu0 %v2784
    %2833 = vmatpush1.msra.mxu0 %v2783
    %2834 = vmatprep.subr.mxu0 %v2786
    %2835 = vmatpush1.msra.mxu0 %v2785
    %2836 = vmatprep.subr.mxu0 %v2788
    %2837 = vmatpush1.msra.mxu0 %v2787
    %2838 = vmatprep.subr.mxu0 %v2790
    %2839 = vmatpush1.msra.mxu0 %v2789
    %2840 = vmatprep.subr.mxu0 %v2792
    %2841 = vmatpush1.msra.mxu0 %v2791
    %2842 = vmatprep.subr.mxu0 %v2794
    %2843 = vmatpush1.msra.mxu0 %v2793
    %2844 = vmatprep.subr.mxu0 %v2796
    %2845 = vmatpush1.msra.mxu0 %v2795
    %2846 = vmatprep.subr.mxu0 %v2798
    %2847 = vmatpush1.msra.mxu0 %v2797
    %2848 = vmatprep.subr.mxu0 %v2800
    %2849 = vmatpush1.msra.mxu0 %v2799
    %2850 = vmatprep.subr.mxu0 %v2802
    %2851 = vmatpush1.msra.mxu0 %v2801
    %2852 = vmatprep.subr.mxu0 %v2812
    %2853 = vmatpush1.msra.mxu0 %v2809
    %2854 = vmatprep.subr.mxu0 0.0
    %2855 = vmatpush1.msra.mxu0 0.0
    %2856 = vmatprep.subr.mxu0 0.0
    %2857 = vmatpush1.msra.mxu0 0.0
    %2858 = vmatprep.subr.mxu0 0.0
    %2859 = vmatpush1.msra.mxu0 0.0
    %2860 = vmatprep.subr.mxu0 0.0
    %2861 = vmatpush1.msra.mxu0 0.0
    %2862 = vmatprep.subr.mxu0 0.0
    %2863 = vmatpush1.msra.mxu0 0.0
    %2864 = vmatprep.subr.mxu0 0.0
    %2865 = vmatpush1.msra.mxu0 0.0
    %2866 = vmatprep.subr.mxu0 0.0
    %2867 = vmatpush1.msra.mxu0 0.0
    %2868 = vmatprep.subr.mxu0 0.0
    %2869 = vmatpush1.msra.mxu0 0.0
    %2870 = vmatprep.subr.mxu0 0.0
    %2871 = vmatpush1.msra.mxu0 0.0
    %2872 = vmatprep.subr.mxu0 0.0
    %2873 = vmatpush1.msra.mxu0 0.0
    %2874 = vmatprep.subr.mxu0 0.0
    %2875 = vmatpush1.msra.mxu0 0.0
    %2876 = vmatprep.subr.mxu0 0.0
    %2877 = vmatpush1.msra.mxu0 0.0
    %2878 = vmatprep.mubr.f32.mxu0 %v2806
    %2879 = vmatmul.mubr.f32.gmra.mrb[0].mxu0 %v2395
    %v2880 = vpop.f32.mrb[0].mxu0
    %v2881 = vadd.f32 0.0, %v2880
    %v2882 = vpop.f32.mrb[0].mxu0
    %v2883 = vadd.f32 0.0, %v2882
    %2884 = vdwg.mxu0
    %v2885 = vadd.f32 %v2762, %v2881
    %v2886 = vadd.f32 %v2763, %v2883
    %s2887 = scalar_lea.vmem %s5, 1280
    %v2888 = vld [vmem:[%s2887] sm:$0xff]
    %v2889 = vld [vmem:[%s2887 + $0x8] sm:$0xff]
    %v2890 = vld [vmem:[%s2887 + $0x10] sm:$0xff]
    %v2891 = vld [vmem:[%s2887 + $0x18] sm:$0xff]
    %v2892 = vld [vmem:[%s2887 + $0x20] sm:$0xff]
    %v2893 = vld [vmem:[%s2887 + $0x28] sm:$0xff]
    %v2894 = vld [vmem:[%s2887 + $0x30] sm:$0xff]
    %v2895 = vld [vmem:[%s2887 + $0x38] sm:$0xff]
    %v2896 = vld [vmem:[%s2887 + $0x40] sm:$0xff]
    %v2897 = vld [vmem:[%s2887 + $0x48] sm:$0xff]
    %v2898 = vld [vmem:[%s2887 + $0x50] sm:$0xff]
    %v2899 = vld [vmem:[%s2887 + $0x58] sm:$0xff]
    %v2900 = vld [vmem:[%s2887 + $0x60] sm:$0xff]
    %v2901 = vld [vmem:[%s2887 + $0x68] sm:$0xff]
    %v2902 = vld [vmem:[%s2887 + $0x70] sm:$0xff]
    %v2903 = vld [vmem:[%s2887 + $0x78] sm:$0xff]
    %v2904 = vld [vmem:[%s2887 + $0x80] sm:$0xff]
    %v2905 = vld [vmem:[%s2887 + $0x88] sm:$0xff]
    %v2906 = vld [vmem:[%s2887 + $0x90] sm:$0xff]
    %v2907 = vld [vmem:[%s2887 + $0x98] sm:$0xff]
    %v2908 = vld [vmem:[%s2887 + $0xa0] sm:$0xff]
    %v2909 = vld [vmem:[%s2887 + $0xa8] sm:$0xff]
    %v2910 = vld [vmem:[%s2887 + $0xb0] sm:$0xff]
    %v2911 = vld [vmem:[%s2887 + $0xb8] sm:$0xff]
    %v2912 = vld [vmem:[%s2887 + $0xc0] sm:$0xff]
    %v2913 = vld [vmem:[%s2887 + $0xc8] sm:$0xff]
    %v2914 = vld [vmem:[%s2887 + $0xd0] sm:$0xff]
    %v2915 = vld [vmem:[%s2887 + $0xd8] sm:$0xff]
    %v2916 = vld [vmem:[%s2887 + $0xe0] sm:$0xff]
    %v2917 = vld [vmem:[%s2887 + $0xe8] sm:$0xff]
    %v2918 = vld [vmem:[%s2887 + $0xf0] sm:$0xff]
    %v2919 = vld [vmem:[%s2887 + $0xf8] sm:$0xff]
    %v2920 = vld [vmem:[%s2887 + $0x100] sm:$0xff]
    %v2921 = vld [vmem:[%s2887 + $0x108] sm:$0xff]
    %v2922 = vld [vmem:[%s2887 + $0x110] sm:$0xff]
    %v2923 = vld [vmem:[%s2887 + $0x118] sm:$0xff]
    %v2924 = vld [vmem:[%s2887 + $0x120] sm:$0xff]
    %v2925 = vld [vmem:[%s2887 + $0x128] sm:$0xff]
    %v2926 = vld [vmem:[%s2887 + $0x130] sm:$0x7f]
    %v2927 = vld [vmem:[%s2887 + $0x138] sm:$0x7f]
    %v2929 = vsel %vm2480, %v2398, 0
    %v2932 = vsel %vm1456, %v2926, 0
    %v2935 = vsel %vm1456, %v2927, 0
    %2937 = vmatprep.subr.mxu0 %v2889
    %2938 = vmatpush1.msra.mxu0 %v2888
    %2939 = vmatprep.subr.mxu0 %v2891
    %2940 = vmatpush1.msra.mxu0 %v2890
    %2941 = vmatprep.subr.mxu0 %v2893
    %2942 = vmatpush1.msra.mxu0 %v2892
    %2943 = vmatprep.subr.mxu0 %v2895
    %2944 = vmatpush1.msra.mxu0 %v2894
    %2945 = vmatprep.subr.mxu0 %v2897
    %2946 = vmatpush1.msra.mxu0 %v2896
    %2947 = vmatprep.subr.mxu0 %v2899
    %2948 = vmatpush1.msra.mxu0 %v2898
    %2949 = vmatprep.subr.mxu0 %v2901
    %2950 = vmatpush1.msra.mxu0 %v2900
    %2951 = vmatprep.subr.mxu0 %v2903
    %2952 = vmatpush1.msra.mxu0 %v2902
    %2953 = vmatprep.subr.mxu0 %v2905
    %2954 = vmatpush1.msra.mxu0 %v2904
    %2955 = vmatprep.subr.mxu0 %v2907
    %2956 = vmatpush1.msra.mxu0 %v2906
    %2957 = vmatprep.subr.mxu0 %v2909
    %2958 = vmatpush1.msra.mxu0 %v2908
    %2959 = vmatprep.subr.mxu0 %v2911
    %2960 = vmatpush1.msra.mxu0 %v2910
    %2961 = vmatprep.subr.mxu0 %v2913
    %2962 = vmatpush1.msra.mxu0 %v2912
    %2963 = vmatprep.subr.mxu0 %v2915
    %2964 = vmatpush1.msra.mxu0 %v2914
    %2965 = vmatprep.subr.mxu0 %v2917
    %2966 = vmatpush1.msra.mxu0 %v2916
    %2967 = vmatprep.subr.mxu0 %v2919
    %2968 = vmatpush1.msra.mxu0 %v2918
    %2969 = vmatprep.subr.mxu0 %v2921
    %2970 = vmatpush1.msra.mxu0 %v2920
    %2971 = vmatprep.subr.mxu0 %v2923
    %2972 = vmatpush1.msra.mxu0 %v2922
    %2973 = vmatprep.subr.mxu0 %v2925
    %2974 = vmatpush1.msra.mxu0 %v2924
    %2975 = vmatprep.subr.mxu0 %v2935
    %2976 = vmatpush1.msra.mxu0 %v2932
    %2977 = vmatprep.subr.mxu0 0.0
    %2978 = vmatpush1.msra.mxu0 0.0
    %2979 = vmatprep.subr.mxu0 0.0
    %2980 = vmatpush1.msra.mxu0 0.0
    %2981 = vmatprep.subr.mxu0 0.0
    %2982 = vmatpush1.msra.mxu0 0.0
    %2983 = vmatprep.subr.mxu0 0.0
    %2984 = vmatpush1.msra.mxu0 0.0
    %2985 = vmatprep.subr.mxu0 0.0
    %2986 = vmatpush1.msra.mxu0 0.0
    %2987 = vmatprep.subr.mxu0 0.0
    %2988 = vmatpush1.msra.mxu0 0.0
    %2989 = vmatprep.subr.mxu0 0.0
    %2990 = vmatpush1.msra.mxu0 0.0
    %2991 = vmatprep.subr.mxu0 0.0
    %2992 = vmatpush1.msra.mxu0 0.0
    %2993 = vmatprep.subr.mxu0 0.0
    %2994 = vmatpush1.msra.mxu0 0.0
    %2995 = vmatprep.subr.mxu0 0.0
    %2996 = vmatpush1.msra.mxu0 0.0
    %2997 = vmatprep.subr.mxu0 0.0
    %2998 = vmatpush1.msra.mxu0 0.0
    %2999 = vmatprep.subr.mxu0 0.0
    %3000 = vmatpush1.msra.mxu0 0.0
    %3001 = vmatprep.mubr.f32.mxu0 %v2929
    %3002 = vmatmul.mubr.f32.gmra.mrb[0].mxu0 %v2397
    %v3003 = vpop.f32.mrb[0].mxu0
    %v3004 = vadd.f32 0.0, %v3003
    %v3005 = vpop.f32.mrb[0].mxu0
    %v3006 = vadd.f32 0.0, %v3005
    %3007 = vdwg.mxu0
    %v3008 = vadd.f32 %v2885, %v3004
    %v3009 = vadd.f32 %v2886, %v3006
    %s3010 = scalar_lea.vmem %s0, 32
    %v3011 = vld [vmem:[%s3010] sm:$0xff]
    %v3012 = vld [vmem:[%s3010 + $0x8] sm:$0xff]
    %v3013 = vld [vmem:[%s3010 + $0x10] sm:$0xff]
    %v3014 = vld [vmem:[%s3010 + $0x18] sm:$0xf]
    %v3015 = vld [vmem:[%s3010 + $0x1] sm:$0xff]
    %v3016 = vld [vmem:[%s3010 + $0x9] sm:$0xff]
    %v3017 = vld [vmem:[%s3010 + $0x11] sm:$0xff]
    %v3018 = vld [vmem:[%s3010 + $0x19] sm:$0xf]
    %v3020 = vsel %vm96, %v3015, 0
    %v3023 = vsel %vm96, %v3016, 0
    %v3026 = vsel %vm96, %v3017, 0
    %v3029 = vsel %vm96, %v3018, 0
    %3031 = vmatprep.subr.mxu0 %v73
    %3032 = vmatpush1.msra.mxu0 %v72
    %3033 = vmatprep.subr.mxu0 %v75
    %3034 = vmatpush1.msra.mxu0 %v74
    %3035 = vmatprep.subr.mxu0 %v77
    %3036 = vmatpush1.msra.mxu0 %v76
    %3037 = vmatprep.subr.mxu0 %v79
    %3038 = vmatpush1.msra.mxu0 %v78
    %3039 = vmatprep.subr.mxu0 %v81
    %3040 = vmatpush1.msra.mxu0 %v80
    %3041 = vmatprep.subr.mxu0 %v83
    %3042 = vmatpush1.msra.mxu0 %v82
    %3043 = vmatprep.subr.mxu0 %v85
    %3044 = vmatpush1.msra.mxu0 %v84
    %3045 = vmatprep.subr.mxu0 %v87
    %3046 = vmatpush1.msra.mxu0 %v86
    %3047 = vmatprep.subr.mxu0 %v89
    %3048 = vmatpush1.msra.mxu0 %v88
    %3049 = vmatprep.subr.mxu0 %v91
    %3050 = vmatpush1.msra.mxu0 %v90
    %3051 = vmatprep.subr.mxu0 %v93
    %3052 = vmatpush1.msra.mxu0 %v92
    %3053 = vmatprep.subr.mxu0 %v95
    %3054 = vmatpush1.msra.mxu0 %v94
    %3055 = vmatprep.subr.mxu0 0.0
    %3056 = vmatpush1.msra.mxu0 0.0
    %3057 = vmatprep.subr.mxu0 0.0
    %3058 = vmatpush1.msra.mxu0 0.0
    %3059 = vmatprep.subr.mxu0 0.0
    %3060 = vmatpush1.msra.mxu0 0.0
    %3061 = vmatprep.subr.mxu0 0.0
    %3062 = vmatpush1.msra.mxu0 0.0
    %3063 = vmatprep.subr.mxu0 0.0
    %3064 = vmatpush1.msra.mxu0 0.0
    %3065 = vmatprep.subr.mxu0 0.0
    %3066 = vmatpush1.msra.mxu0 0.0
    %3067 = vmatprep.subr.mxu0 0.0
    %3068 = vmatpush1.msra.mxu0 0.0
    %3069 = vmatprep.subr.mxu0 0.0
    %3070 = vmatpush1.msra.mxu0 0.0
    %3071 = vmatprep.subr.mxu0 0.0
    %3072 = vmatpush1.msra.mxu0 0.0
    %3073 = vmatprep.subr.mxu0 0.0
    %3074 = vmatpush1.msra.mxu0 0.0
    %3075 = vmatprep.subr.mxu0 0.0
    %3076 = vmatpush1.msra.mxu0 0.0
    %3077 = vmatprep.subr.mxu0 0.0
    %3078 = vmatpush1.msra.mxu0 0.0
    %3079 = vmatprep.subr.mxu0 0.0
    %3080 = vmatpush1.msra.mxu0 0.0
    %3081 = vmatprep.subr.mxu0 0.0
    %3082 = vmatpush1.msra.mxu0 0.0
    %3083 = vmatprep.subr.mxu0 0.0
    %3084 = vmatpush1.msra.mxu0 0.0
    %3085 = vmatprep.subr.mxu0 0.0
    %3086 = vmatpush1.msra.mxu0 0.0
    %3087 = vmatprep.subr.mxu0 0.0
    %3088 = vmatpush1.msra.mxu0 0.0
    %3089 = vmatprep.subr.mxu0 0.0
    %3090 = vmatpush1.msra.mxu0 0.0
    %3091 = vmatprep.subr.mxu0 0.0
    %3092 = vmatpush1.msra.mxu0 0.0
    %3093 = vmatprep.subr.mxu0 0.0
    %3094 = vmatpush1.msra.mxu0 0.0
    %3095 = vmatprep.mubr.f32.mxu0 0.0
    %3096 = vmatmul.mubr.f32.gmra.mrb[0].mxu0 %v3020
    %v3097 = vpop.f32.mrb[0].mxu0
    %v3098 = vadd.f32 0.0, %v3097
    %v3099 = vpop.f32.mrb[0].mxu0
    %v3100 = vadd.f32 0.0, %v3099
    %3101 = vmatprep.mubr.f32.mxu0 0.0
    %3102 = vmatmul.mubr.f32.gmra.mrb[0].mxu0 %v3023
    %v3103 = vpop.f32.mrb[0].mxu0
    %v3104 = vadd.f32 0.0, %v3103
    %v3105 = vpop.f32.mrb[0].mxu0
    %v3106 = vadd.f32 0.0, %v3105
    %3107 = vmatprep.mubr.f32.mxu0 0.0
    %3108 = vmatmul.mubr.f32.gmra.mrb[0].mxu0 %v3026
    %v3109 = vpop.f32.mrb[0].mxu0
    %v3110 = vadd.f32 0.0, %v3109
    %v3111 = vpop.f32.mrb[0].mxu0
    %v3112 = vadd.f32 0.0, %v3111
    %3113 = vmatprep.mubr.f32.mxu0 0.0
    %3114 = vmatmul.mubr.f32.gmra.mrb[0].mxu0 %v3029
    %v3115 = vpop.f32.mrb[0].mxu0
    %v3116 = vadd.f32 0.0, %v3115
    %v3117 = vpop.f32.mrb[0].mxu0
    %v3118 = vadd.f32 0.0, %v3117
    %3119 = vdwg.mxu0
    %v3121 = vsel %vm96, %v3011, 0
    %v3124 = vsel %vm96, %v3012, 0
    %v3127 = vsel %vm96, %v3013, 0
    %v3130 = vsel %vm96, %v3014, 0
    %3132 = vmatprep.subr.mxu0 %v44
    %3133 = vmatpush1.msra.mxu0 %v43
    %3134 = vmatprep.subr.mxu0 %v46
    %3135 = vmatpush1.msra.mxu0 %v45
    %3136 = vmatprep.subr.mxu0 %v48
    %3137 = vmatpush1.msra.mxu0 %v47
    %3138 = vmatprep.subr.mxu0 %v50
    %3139 = vmatpush1.msra.mxu0 %v49
    %3140 = vmatprep.subr.mxu0 %v52
    %3141 = vmatpush1.msra.mxu0 %v51
    %3142 = vmatprep.subr.mxu0 %v54
    %3143 = vmatpush1.msra.mxu0 %v53
    %3144 = vmatprep.subr.mxu0 %v56
    %3145 = vmatpush1.msra.mxu0 %v55
    %3146 = vmatprep.subr.mxu0 %v58
    %3147 = vmatpush1.msra.mxu0 %v57
    %3148 = vmatprep.subr.mxu0 %v60
    %3149 = vmatpush1.msra.mxu0 %v59
    %3150 = vmatprep.subr.mxu0 %v62
    %3151 = vmatpush1.msra.mxu0 %v61
    %3152 = vmatprep.subr.mxu0 %v64
    %3153 = vmatpush1.msra.mxu0 %v63
    %3154 = vmatprep.subr.mxu0 %v66
    %3155 = vmatpush1.msra.mxu0 %v65
    %3156 = vmatprep.subr.mxu0 0.0
    %3157 = vmatpush1.msra.mxu0 0.0
    %3158 = vmatprep.subr.mxu0 0.0
    %3159 = vmatpush1.msra.mxu0 0.0
    %3160 = vmatprep.subr.mxu0 0.0
    %3161 = vmatpush1.msra.mxu0 0.0
    %3162 = vmatprep.subr.mxu0 0.0
    %3163 = vmatpush1.msra.mxu0 0.0
    %3164 = vmatprep.subr.mxu0 0.0
    %3165 = vmatpush1.msra.mxu0 0.0
    %3166 = vmatprep.subr.mxu0 0.0
    %3167 = vmatpush1.msra.mxu0 0.0
    %3168 = vmatprep.subr.mxu0 0.0
    %3169 = vmatpush1.msra.mxu0 0.0
    %3170 = vmatprep.subr.mxu0 0.0
    %3171 = vmatpush1.msra.mxu0 0.0
    %3172 = vmatprep.subr.mxu0 0.0
    %3173 = vmatpush1.msra.mxu0 0.0
    %3174 = vmatprep.subr.mxu0 0.0
    %3175 = vmatpush1.msra.mxu0 0.0
    %3176 = vmatprep.subr.mxu0 0.0
    %3177 = vmatpush1.msra.mxu0 0.0
    %3178 = vmatprep.subr.mxu0 0.0
    %3179 = vmatpush1.msra.mxu0 0.0
    %3180 = vmatprep.subr.mxu0 0.0
    %3181 = vmatpush1.msra.mxu0 0.0
    %3182 = vmatprep.subr.mxu0 0.0
    %3183 = vmatpush1.msra.mxu0 0.0
    %3184 = vmatprep.subr.mxu0 0.0
    %3185 = vmatpush1.msra.mxu0 0.0
    %3186 = vmatprep.subr.mxu0 0.0
    %3187 = vmatpush1.msra.mxu0 0.0
    %3188 = vmatprep.subr.mxu0 0.0
    %3189 = vmatpush1.msra.mxu0 0.0
    %3190 = vmatprep.subr.mxu0 0.0
    %3191 = vmatpush1.msra.mxu0 0.0
    %3192 = vmatprep.subr.mxu0 0.0
    %3193 = vmatpush1.msra.mxu0 0.0
    %3194 = vmatprep.subr.mxu0 0.0
    %3195 = vmatpush1.msra.mxu0 0.0
    %3196 = vmatprep.mubr.f32.mxu0 0.0
    %3197 = vmatmul.mubr.f32.gmra.mrb[0].mxu0 %v3121
    %v3198 = vpop.f32.mrb[0].mxu0
    %v3199 = vadd.f32 %v3098, %v3198
    %v3200 = vpop.f32.mrb[0].mxu0
    %v3201 = vadd.f32 %v3100, %v3200
    %3202 = vmatprep.mubr.f32.mxu0 0.0
    %3203 = vmatmul.mubr.f32.gmra.mrb[0].mxu0 %v3124
    %v3204 = vpop.f32.mrb[0].mxu0
    %v3205 = vadd.f32 %v3104, %v3204
    %v3206 = vpop.f32.mrb[0].mxu0
    %v3207 = vadd.f32 %v3106, %v3206
    %3208 = vmatprep.mubr.f32.mxu0 0.0
    %3209 = vmatmul.mubr.f32.gmra.mrb[0].mxu0 %v3127
    %v3210 = vpop.f32.mrb[0].mxu0
    %v3211 = vadd.f32 %v3110, %v3210
    %v3212 = vpop.f32.mrb[0].mxu0
    %v3213 = vadd.f32 %v3112, %v3212
    %3214 = vmatprep.mubr.f32.mxu0 0.0
    %3215 = vmatmul.mubr.f32.gmra.mrb[0].mxu0 %v3130
    %v3216 = vpop.f32.mrb[0].mxu0
    %v3217 = vadd.f32 %v3116, %v3216
    %v3218 = vpop.f32.mrb[0].mxu0
    %v3219 = vadd.f32 %v3118, %v3218
    %3220 = vdwg.mxu0
    %v3221 = vld [vmem:[%s3010 + $0x2] sm:$0xff]
    %v3222 = vld [vmem:[%s3010 + $0xa] sm:$0xff]
    %v3223 = vld [vmem:[%s3010 + $0x12] sm:$0xff]
    %v3224 = vld [vmem:[%s3010 + $0x1a] sm:$0xf]
    %v3226 = vsel %vm96, %v3221, 0
    %v3229 = vsel %vm96, %v3222, 0
    %v3232 = vsel %vm96, %v3223, 0
    %v3235 = vsel %vm96, %v3224, 0
    %3237 = vmatprep.subr.mxu0 %v305
    %3238 = vmatpush1.msra.mxu0 %v304
    %3239 = vmatprep.subr.mxu0 %v307
    %3240 = vmatpush1.msra.mxu0 %v306
    %3241 = vmatprep.subr.mxu0 %v309
    %3242 = vmatpush1.msra.mxu0 %v308
    %3243 = vmatprep.subr.mxu0 %v311
    %3244 = vmatpush1.msra.mxu0 %v310
    %3245 = vmatprep.subr.mxu0 %v313
    %3246 = vmatpush1.msra.mxu0 %v312
    %3247 = vmatprep.subr.mxu0 %v315
    %3248 = vmatpush1.msra.mxu0 %v314
    %3249 = vmatprep.subr.mxu0 %v317
    %3250 = vmatpush1.msra.mxu0 %v316
    %3251 = vmatprep.subr.mxu0 %v319
    %3252 = vmatpush1.msra.mxu0 %v318
    %3253 = vmatprep.subr.mxu0 %v321
    %3254 = vmatpush1.msra.mxu0 %v320
    %3255 = vmatprep.subr.mxu0 %v323
    %3256 = vmatpush1.msra.mxu0 %v322
    %3257 = vmatprep.subr.mxu0 %v325
    %3258 = vmatpush1.msra.mxu0 %v324
    %3259 = vmatprep.subr.mxu0 %v327
    %3260 = vmatpush1.msra.mxu0 %v326
    %3261 = vmatprep.subr.mxu0 0.0
    %3262 = vmatpush1.msra.mxu0 0.0
    %3263 = vmatprep.subr.mxu0 0.0
    %3264 = vmatpush1.msra.mxu0 0.0
    %3265 = vmatprep.subr.mxu0 0.0
    %3266 = vmatpush1.msra.mxu0 0.0
    %3267 = vmatprep.subr.mxu0 0.0
    %3268 = vmatpush1.msra.mxu0 0.0
    %3269 = vmatprep.subr.mxu0 0.0
    %3270 = vmatpush1.msra.mxu0 0.0
    %3271 = vmatprep.subr.mxu0 0.0
    %3272 = vmatpush1.msra.mxu0 0.0
    %3273 = vmatprep.subr.mxu0 0.0
    %3274 = vmatpush1.msra.mxu0 0.0
    %3275 = vmatprep.subr.mxu0 0.0
    %3276 = vmatpush1.msra.mxu0 0.0
    %3277 = vmatprep.subr.mxu0 0.0
    %3278 = vmatpush1.msra.mxu0 0.0
    %3279 = vmatprep.subr.mxu0 0.0
    %3280 = vmatpush1.msra.mxu0 0.0
    %3281 = vmatprep.subr.mxu0 0.0
    %3282 = vmatpush1.msra.mxu0 0.0
    %3283 = vmatprep.subr.mxu0 0.0
    %3284 = vmatpush1.msra.mxu0 0.0
    %3285 = vmatprep.subr.mxu0 0.0
    %3286 = vmatpush1.msra.mxu0 0.0
    %3287 = vmatprep.subr.mxu0 0.0
    %3288 = vmatpush1.msra.mxu0 0.0
    %3289 = vmatprep.subr.mxu0 0.0
    %3290 = vmatpush1.msra.mxu0 0.0
    %3291 = vmatprep.subr.mxu0 0.0
    %3292 = vmatpush1.msra.mxu0 0.0
    %3293 = vmatprep.subr.mxu0 0.0
    %3294 = vmatpush1.msra.mxu0 0.0
    %3295 = vmatprep.subr.mxu0 0.0
    %3296 = vmatpush1.msra.mxu0 0.0
    %3297 = vmatprep.subr.mxu0 0.0
    %3298 = vmatpush1.msra.mxu0 0.0
    %3299 = vmatprep.subr.mxu0 0.0
    %3300 = vmatpush1.msra.mxu0 0.0
    %3301 = vmatprep.mubr.f32.mxu0 0.0
    %3302 = vmatmul.mubr.f32.gmra.mrb[0].mxu0 %v3226
    %v3303 = vpop.f32.mrb[0].mxu0
    %v3304 = vadd.f32 0.0, %v3303
    %v3305 = vpop.f32.mrb[0].mxu0
    %v3306 = vadd.f32 0.0, %v3305
    %3307 = vmatprep.mubr.f32.mxu0 0.0
    %3308 = vmatmul.mubr.f32.gmra.mrb[0].mxu0 %v3229
    %v3309 = vpop.f32.mrb[0].mxu0
    %v3310 = vadd.f32 0.0, %v3309
    %v3311 = vpop.f32.mrb[0].mxu0
    %v3312 = vadd.f32 0.0, %v3311
    %3313 = vmatprep.mubr.f32.mxu0 0.0
    %3314 = vmatmul.mubr.f32.gmra.mrb[0].mxu0 %v3232
    %v3315 = vpop.f32.mrb[0].mxu0
    %v3316 = vadd.f32 0.0, %v3315
    %v3317 = vpop.f32.mrb[0].mxu0
    %v3318 = vadd.f32 0.0, %v3317
    %3319 = vmatprep.mubr.f32.mxu0 0.0
    %3320 = vmatmul.mubr.f32.gmra.mrb[0].mxu0 %v3235
    %v3321 = vpop.f32.mrb[0].mxu0
    %v3322 = vadd.f32 0.0, %v3321
    %v3323 = vpop.f32.mrb[0].mxu0
    %v3324 = vadd.f32 0.0, %v3323
    %3325 = vdwg.mxu0
    %v3326 = vadd.f32 %v3199, %v3304
    %v3327 = vadd.f32 %v3201, %v3306
    %v3328 = vadd.f32 %v3205, %v3310
    %v3329 = vadd.f32 %v3207, %v3312
    %v3330 = vadd.f32 %v3211, %v3316
    %v3331 = vadd.f32 %v3213, %v3318
    %v3332 = vadd.f32 %v3217, %v3322
    %v3333 = vadd.f32 %v3219, %v3324
    %v3334 = vld [vmem:[%s3010 + $0x3] sm:$0xff]
    %v3335 = vld [vmem:[%s3010 + $0xb] sm:$0xff]
    %v3336 = vld [vmem:[%s3010 + $0x13] sm:$0xff]
    %v3337 = vld [vmem:[%s3010 + $0x1b] sm:$0xf]
    %v3339 = vsel %vm96, %v3334, 0
    %v3342 = vsel %vm96, %v3335, 0
    %v3345 = vsel %vm96, %v3336, 0
    %v3348 = vsel %vm96, %v3337, 0
    %3350 = vmatprep.subr.mxu0 %v443
    %3351 = vmatpush1.msra.mxu0 %v442
    %3352 = vmatprep.subr.mxu0 %v445
    %3353 = vmatpush1.msra.mxu0 %v444
    %3354 = vmatprep.subr.mxu0 %v447
    %3355 = vmatpush1.msra.mxu0 %v446
    %3356 = vmatprep.subr.mxu0 %v449
    %3357 = vmatpush1.msra.mxu0 %v448
    %3358 = vmatprep.subr.mxu0 %v451
    %3359 = vmatpush1.msra.mxu0 %v450
    %3360 = vmatprep.subr.mxu0 %v453
    %3361 = vmatpush1.msra.mxu0 %v452
    %3362 = vmatprep.subr.mxu0 %v455
    %3363 = vmatpush1.msra.mxu0 %v454
    %3364 = vmatprep.subr.mxu0 %v457
    %3365 = vmatpush1.msra.mxu0 %v456
    %3366 = vmatprep.subr.mxu0 %v459
    %3367 = vmatpush1.msra.mxu0 %v458
    %3368 = vmatprep.subr.mxu0 %v461
    %3369 = vmatpush1.msra.mxu0 %v460
    %3370 = vmatprep.subr.mxu0 %v463
    %3371 = vmatpush1.msra.mxu0 %v462
    %3372 = vmatprep.subr.mxu0 %v465
    %3373 = vmatpush1.msra.mxu0 %v464
    %3374 = vmatprep.subr.mxu0 0.0
    %3375 = vmatpush1.msra.mxu0 0.0
    %3376 = vmatprep.subr.mxu0 0.0
    %3377 = vmatpush1.msra.mxu0 0.0
    %3378 = vmatprep.subr.mxu0 0.0
    %3379 = vmatpush1.msra.mxu0 0.0
    %3380 = vmatprep.subr.mxu0 0.0
    %3381 = vmatpush1.msra.mxu0 0.0
    %3382 = vmatprep.subr.mxu0 0.0
    %3383 = vmatpush1.msra.mxu0 0.0
    %3384 = vmatprep.subr.mxu0 0.0
    %3385 = vmatpush1.msra.mxu0 0.0
    %3386 = vmatprep.subr.mxu0 0.0
    %3387 = vmatpush1.msra.mxu0 0.0
    %3388 = vmatprep.subr.mxu0 0.0
    %3389 = vmatpush1.msra.mxu0 0.0
    %3390 = vmatprep.subr.mxu0 0.0
    %3391 = vmatpush1.msra.mxu0 0.0
    %3392 = vmatprep.subr.mxu0 0.0
    %3393 = vmatpush1.msra.mxu0 0.0
    %3394 = vmatprep.subr.mxu0 0.0
    %3395 = vmatpush1.msra.mxu0 0.0
    %3396 = vmatprep.subr.mxu0 0.0
    %3397 = vmatpush1.msra.mxu0 0.0
    %3398 = vmatprep.subr.mxu0 0.0
    %3399 = vmatpush1.msra.mxu0 0.0
    %3400 = vmatprep.subr.mxu0 0.0
    %3401 = vmatpush1.msra.mxu0 0.0
    %3402 = vmatprep.subr.mxu0 0.0
    %3403 = vmatpush1.msra.mxu0 0.0
    %3404 = vmatprep.subr.mxu0 0.0
    %3405 = vmatpush1.msra.mxu0 0.0
    %3406 = vmatprep.subr.mxu0 0.0
    %3407 = vmatpush1.msra.mxu0 0.0
    %3408 = vmatprep.subr.mxu0 0.0
    %3409 = vmatpush1.msra.mxu0 0.0
    %3410 = vmatprep.subr.mxu0 0.0
    %3411 = vmatpush1.msra.mxu0 0.0
    %3412 = vmatprep.subr.mxu0 0.0
    %3413 = vmatpush1.msra.mxu0 0.0
    %3414 = vmatprep.mubr.f32.mxu0 0.0
    %3415 = vmatmul.mubr.f32.gmra.mrb[0].mxu0 %v3339
    %v3416 = vpop.f32.mrb[0].mxu0
    %v3417 = vadd.f32 0.0, %v3416
    %v3418 = vpop.f32.mrb[0].mxu0
    %v3419 = vadd.f32 0.0, %v3418
    %3420 = vmatprep.mubr.f32.mxu0 0.0
    %3421 = vmatmul.mubr.f32.gmra.mrb[0].mxu0 %v3342
    %v3422 = vpop.f32.mrb[0].mxu0
    %v3423 = vadd.f32 0.0, %v3422
    %v3424 = vpop.f32.mrb[0].mxu0
    %v3425 = vadd.f32 0.0, %v3424
    %3426 = vmatprep.mubr.f32.mxu0 0.0
    %3427 = vmatmul.mubr.f32.gmra.mrb[0].mxu0 %v3345
    %v3428 = vpop.f32.mrb[0].mxu0
    %v3429 = vadd.f32 0.0, %v3428
    %v3430 = vpop.f32.mrb[0].mxu0
    %v3431 = vadd.f32 0.0, %v3430
    %3432 = vmatprep.mubr.f32.mxu0 0.0
    %3433 = vmatmul.mubr.f32.gmra.mrb[0].mxu0 %v3348
    %v3434 = vpop.f32.mrb[0].mxu0
    %v3435 = vadd.f32 0.0, %v3434
    %v3436 = vpop.f32.mrb[0].mxu0
    %v3437 = vadd.f32 0.0, %v3436
    %3438 = vdwg.mxu0
    %v3439 = vadd.f32 %v3326, %v3417
    %v3440 = vadd.f32 %v3327, %v3419
    %v3441 = vadd.f32 %v3328, %v3423
    %v3442 = vadd.f32 %v3329, %v3425
    %v3443 = vadd.f32 %v3330, %v3429
    %v3444 = vadd.f32 %v3331, %v3431
    %v3445 = vadd.f32 %v3332, %v3435
    %v3446 = vadd.f32 %v3333, %v3437
    %v3447 = vld [vmem:[%s3010 + $0x4] sm:$0xff]
    %v3448 = vld [vmem:[%s3010 + $0xc] sm:$0xff]
    %v3449 = vld [vmem:[%s3010 + $0x14] sm:$0xff]
    %v3450 = vld [vmem:[%s3010 + $0x1c] sm:$0xf]
    %v3452 = vsel %vm96, %v3447, 0
    %v3455 = vsel %vm96, %v3448, 0
    %v3458 = vsel %vm96, %v3449, 0
    %v3461 = vsel %vm96, %v3450, 0
    %3463 = vmatprep.subr.mxu0 %v581
    %3464 = vmatpush1.msra.mxu0 %v580
    %3465 = vmatprep.subr.mxu0 %v583
    %3466 = vmatpush1.msra.mxu0 %v582
    %3467 = vmatprep.subr.mxu0 %v585
    %3468 = vmatpush1.msra.mxu0 %v584
    %3469 = vmatprep.subr.mxu0 %v587
    %3470 = vmatpush1.msra.mxu0 %v586
    %3471 = vmatprep.subr.mxu0 %v589
    %3472 = vmatpush1.msra.mxu0 %v588
    %3473 = vmatprep.subr.mxu0 %v591
    %3474 = vmatpush1.msra.mxu0 %v590
    %3475 = vmatprep.subr.mxu0 %v593
    %3476 = vmatpush1.msra.mxu0 %v592
    %3477 = vmatprep.subr.mxu0 %v595
    %3478 = vmatpush1.msra.mxu0 %v594
    %3479 = vmatprep.subr.mxu0 %v597
    %3480 = vmatpush1.msra.mxu0 %v596
    %3481 = vmatprep.subr.mxu0 %v599
    %3482 = vmatpush1.msra.mxu0 %v598
    %3483 = vmatprep.subr.mxu0 %v601
    %3484 = vmatpush1.msra.mxu0 %v600
    %3485 = vmatprep.subr.mxu0 %v603
    %3486 = vmatpush1.msra.mxu0 %v602
    %3487 = vmatprep.subr.mxu0 0.0
    %3488 = vmatpush1.msra.mxu0 0.0
    %3489 = vmatprep.subr.mxu0 0.0
    %3490 = vmatpush1.msra.mxu0 0.0
    %3491 = vmatprep.subr.mxu0 0.0
    %3492 = vmatpush1.msra.mxu0 0.0
    %3493 = vmatprep.subr.mxu0 0.0
    %3494 = vmatpush1.msra.mxu0 0.0
    %3495 = vmatprep.subr.mxu0 0.0
    %3496 = vmatpush1.msra.mxu0 0.0
    %3497 = vmatprep.subr.mxu0 0.0
    %3498 = vmatpush1.msra.mxu0 0.0
    %3499 = vmatprep.subr.mxu0 0.0
    %3500 = vmatpush1.msra.mxu0 0.0
    %3501 = vmatprep.subr.mxu0 0.0
    %3502 = vmatpush1.msra.mxu0 0.0
    %3503 = vmatprep.subr.mxu0 0.0
    %3504 = vmatpush1.msra.mxu0 0.0
    %3505 = vmatprep.subr.mxu0 0.0
    %3506 = vmatpush1.msra.mxu0 0.0
    %3507 = vmatprep.subr.mxu0 0.0
    %3508 = vmatpush1.msra.mxu0 0.0
    %3509 = vmatprep.subr.mxu0 0.0
    %3510 = vmatpush1.msra.mxu0 0.0
    %3511 = vmatprep.subr.mxu0 0.0
    %3512 = vmatpush1.msra.mxu0 0.0
    %3513 = vmatprep.subr.mxu0 0.0
    %3514 = vmatpush1.msra.mxu0 0.0
    %3515 = vmatprep.subr.mxu0 0.0
    %3516 = vmatpush1.msra.mxu0 0.0
    %3517 = vmatprep.subr.mxu0 0.0
    %3518 = vmatpush1.msra.mxu0 0.0
    %3519 = vmatprep.subr.mxu0 0.0
    %3520 = vmatpush1.msra.mxu0 0.0
    %3521 = vmatprep.subr.mxu0 0.0
    %3522 = vmatpush1.msra.mxu0 0.0
    %3523 = vmatprep.subr.mxu0 0.0
    %3524 = vmatpush1.msra.mxu0 0.0
    %3525 = vmatprep.subr.mxu0 0.0
    %3526 = vmatpush1.msra.mxu0 0.0
    %3527 = vmatprep.mubr.f32.mxu0 0.0
    %3528 = vmatmul.mubr.f32.gmra.mrb[0].mxu0 %v3452
    %v3529 = vpop.f32.mrb[0].mxu0
    %v3530 = vadd.f32 0.0, %v3529
    %v3531 = vpop.f32.mrb[0].mxu0
    %v3532 = vadd.f32 0.0, %v3531
    %3533 = vmatprep.mubr.f32.mxu0 0.0
    %3534 = vmatmul.mubr.f32.gmra.mrb[0].mxu0 %v3455
    %v3535 = vpop.f32.mrb[0].mxu0
    %v3536 = vadd.f32 0.0, %v3535
    %v3537 = vpop.f32.mrb[0].mxu0
    %v3538 = vadd.f32 0.0, %v3537
    %3539 = vmatprep.mubr.f32.mxu0 0.0
    %3540 = vmatmul.mubr.f32.gmra.mrb[0].mxu0 %v3458
    %v3541 = vpop.f32.mrb[0].mxu0
    %v3542 = vadd.f32 0.0, %v3541
    %v3543 = vpop.f32.mrb[0].mxu0
    %v3544 = vadd.f32 0.0, %v3543
    %3545 = vmatprep.mubr.f32.mxu0 0.0
    %3546 = vmatmul.mubr.f32.gmra.mrb[0].mxu0 %v3461
    %v3547 = vpop.f32.mrb[0].mxu0
    %v3548 = vadd.f32 0.0, %v3547
    %v3549 = vpop.f32.mrb[0].mxu0
    %v3550 = vadd.f32 0.0, %v3549
    %3551 = vdwg.mxu0
    %v3552 = vadd.f32 %v3439, %v3530
    %v3553 = vadd.f32 %v3440, %v3532
    %v3554 = vadd.f32 %v3441, %v3536
    %v3555 = vadd.f32 %v3442, %v3538
    %v3556 = vadd.f32 %v3443, %v3542
    %v3557 = vadd.f32 %v3444, %v3544
    %v3558 = vadd.f32 %v3445, %v3548
    %v3559 = vadd.f32 %v3446, %v3550
    %v3560 = vadd.f32 %v3552, %v718
    %v3561 = vadd.f32 %v3553, %v722
    %v3562 = vadd.f32 %v3554, %v718
    %v3563 = vadd.f32 %v3555, %v722
    %v3564 = vadd.f32 %v3556, %v718
    %v3565 = vadd.f32 %v3557, %v722
    %v3566 = vadd.f32 %v3558, %v718
    %v3567 = vadd.f32 %v3559, %v722
    %v3568 = vmax.f32 %v3560, 0.0
    %v3569 = vmax.f32 %v3561, 0.0
    %v3570 = vmax.f32 %v3562, 0.0
    %v3571 = vmax.f32 %v3563, 0.0
    %v3572 = vmax.f32 %v3564, 0.0
    %v3573 = vmax.f32 %v3565, 0.0
    %v3574 = vmax.f32 %v3566, 0.0
    %v3575 = vmax.f32 %v3567, 0.0
    %v3584 = vcombine.low %v3568, %v3569
    %v3585 = vcombine.high %v3568, %v3569
    %v3587 = vunpack.c.l.s4 1983009808
    %v3588 = vunpack.c.0.s8 %v3587
    %v3589 = vlaneseq
    %v3590 = vshrl.u32 %v3589, 7
    %v3591 = vsub.s32 %v3588, %v3590
    %v3592 = vrot.slane %v3584, %v3591
    %v3594 = vunpack.c.l.s4 1983009808
    %v3595 = vunpack.c.0.s8 %v3594
    %v3596 = vlaneseq
    %v3597 = vshrl.u32 %v3596, 7
    %v3598 = vsub.s32 %v3595, %v3597
    %v3599 = vrot.slane %v3585, %v3598
    %v3600 = vcombine.high %v3592, %v3592
    %v3601 = vcombine.high %v3599, %v3599
    %v3602 = vcombine.low %v3570, %v3571
    %v3603 = vcombine.high %v3570, %v3571
    %v3605 = vunpack.c.l.s4 1983009808
    %v3606 = vunpack.c.0.s8 %v3605
    %v3607 = vlaneseq
    %v3608 = vshrl.u32 %v3607, 7
    %v3609 = vsub.s32 %v3606, %v3608
    %v3610 = vrot.slane %v3602, %v3609
    %v3612 = vunpack.c.l.s4 1983009808
    %v3613 = vunpack.c.0.s8 %v3612
    %v3614 = vlaneseq
    %v3615 = vshrl.u32 %v3614, 7
    %v3616 = vsub.s32 %v3613, %v3615
    %v3617 = vrot.slane %v3603, %v3616
    %v3618 = vcombine.high %v3610, %v3610
    %v3619 = vcombine.high %v3617, %v3617
    %v3620 = vcombine.low %v3572, %v3573
    %v3621 = vcombine.high %v3572, %v3573
    %v3623 = vunpack.c.l.s4 1983009808
    %v3624 = vunpack.c.0.s8 %v3623
    %v3625 = vlaneseq
    %v3626 = vshrl.u32 %v3625, 7
    %v3627 = vsub.s32 %v3624, %v3626
    %v3628 = vrot.slane %v3620, %v3627
    %v3630 = vunpack.c.l.s4 1983009808
    %v3631 = vunpack.c.0.s8 %v3630
    %v3632 = vlaneseq
    %v3633 = vshrl.u32 %v3632, 7
    %v3634 = vsub.s32 %v3631, %v3633
    %v3635 = vrot.slane %v3621, %v3634
    %v3636 = vcombine.high %v3628, %v3628
    %v3637 = vcombine.high %v3635, %v3635
    %v3638 = vcombine.low %v3574, %v3575
    %v3640 = vunpack.c.l.s4 1983009808
    %v3641 = vunpack.c.0.s8 %v3640
    %v3642 = vlaneseq
    %v3643 = vshrl.u32 %v3642, 7
    %v3644 = vsub.s32 %v3641, %v3643
    %v3645 = vrot.slane %v3638, %v3644
    %v3646 = vcombine.high %v3645, %v3645
    %v3648 = vunpack.c.l.s4 1983009808
    %v3649 = vunpack.c.0.s8 %v3648
    %v3650 = vlaneseq
    %v3651 = vshrl.u32 %v3650, 7
    %v3652 = vsub.s32 %v3649, %v3651
    %v3653 = vrot.slane %v3592, %v3652
    %v3654 = vcombine.high %v3653, %v3653
    %v3656 = vunpack.c.l.s4 1983009808
    %v3657 = vunpack.c.0.s8 %v3656
    %v3658 = vlaneseq
    %v3659 = vshrl.u32 %v3658, 7
    %v3660 = vsub.s32 %v3657, %v3659
    %v3661 = vrot.slane %v3600, %v3660
    %v3662 = vcombine.high %v3661, %v3661
    %v3664 = vunpack.c.l.s4 1983009808
    %v3665 = vunpack.c.0.s8 %v3664
    %v3666 = vlaneseq
    %v3667 = vshrl.u32 %v3666, 7
    %v3668 = vsub.s32 %v3665, %v3667
    %v3669 = vrot.slane %v3599, %v3668
    %v3670 = vcombine.high %v3669, %v3669
    %v3672 = vunpack.c.l.s4 1983009808
    %v3673 = vunpack.c.0.s8 %v3672
    %v3674 = vlaneseq
    %v3675 = vshrl.u32 %v3674, 7
    %v3676 = vsub.s32 %v3673, %v3675
    %v3677 = vrot.slane %v3601, %v3676
    %v3678 = vcombine.high %v3677, %v3677
    %v3680 = vunpack.c.l.s4 1983009808
    %v3681 = vunpack.c.0.s8 %v3680
    %v3682 = vlaneseq
    %v3683 = vshrl.u32 %v3682, 7
    %v3684 = vsub.s32 %v3681, %v3683
    %v3685 = vrot.slane %v3610, %v3684
    %v3686 = vcombine.high %v3685, %v3685
    %v3688 = vunpack.c.l.s4 1983009808
    %v3689 = vunpack.c.0.s8 %v3688
    %v3690 = vlaneseq
    %v3691 = vshrl.u32 %v3690, 7
    %v3692 = vsub.s32 %v3689, %v3691
    %v3693 = vrot.slane %v3618, %v3692
    %v3694 = vcombine.high %v3693, %v3693
    %v3696 = vunpack.c.l.s4 1983009808
    %v3697 = vunpack.c.0.s8 %v3696
    %v3698 = vlaneseq
    %v3699 = vshrl.u32 %v3698, 7
    %v3700 = vsub.s32 %v3697, %v3699
    %v3701 = vrot.slane %v3617, %v3700
    %v3702 = vcombine.high %v3701, %v3701
    %v3704 = vunpack.c.l.s4 1983009808
    %v3705 = vunpack.c.0.s8 %v3704
    %v3706 = vlaneseq
    %v3707 = vshrl.u32 %v3706, 7
    %v3708 = vsub.s32 %v3705, %v3707
    %v3709 = vrot.slane %v3619, %v3708
    %v3710 = vcombine.high %v3709, %v3709
    %v3712 = vunpack.c.l.s4 1983009808
    %v3713 = vunpack.c.0.s8 %v3712
    %v3714 = vlaneseq
    %v3715 = vshrl.u32 %v3714, 7
    %v3716 = vsub.s32 %v3713, %v3715
    %v3717 = vrot.slane %v3628, %v3716
    %v3718 = vcombine.high %v3717, %v3717
    %v3720 = vunpack.c.l.s4 1983009808
    %v3721 = vunpack.c.0.s8 %v3720
    %v3722 = vlaneseq
    %v3723 = vshrl.u32 %v3722, 7
    %v3724 = vsub.s32 %v3721, %v3723
    %v3725 = vrot.slane %v3636, %v3724
    %v3726 = vcombine.high %v3725, %v3725
    %v3728 = vunpack.c.l.s4 1983009808
    %v3729 = vunpack.c.0.s8 %v3728
    %v3730 = vlaneseq
    %v3731 = vshrl.u32 %v3730, 7
    %v3732 = vsub.s32 %v3729, %v3731
    %v3733 = vrot.slane %v3635, %v3732
    %v3734 = vcombine.high %v3733, %v3733
    %v3736 = vunpack.c.l.s4 1983009808
    %v3737 = vunpack.c.0.s8 %v3736
    %v3738 = vlaneseq
    %v3739 = vshrl.u32 %v3738, 7
    %v3740 = vsub.s32 %v3737, %v3739
    %v3741 = vrot.slane %v3637, %v3740
    %v3742 = vcombine.high %v3741, %v3741
    %v3744 = vunpack.c.l.s4 1983009808
    %v3745 = vunpack.c.0.s8 %v3744
    %v3746 = vlaneseq
    %v3747 = vshrl.u32 %v3746, 7
    %v3748 = vsub.s32 %v3745, %v3747
    %v3749 = vrot.slane %v3645, %v3748
    %v3750 = vcombine.high %v3749, %v3749
    %v3752 = vunpack.c.l.s4 1983009808
    %v3753 = vunpack.c.0.s8 %v3752
    %v3754 = vlaneseq
    %v3755 = vshrl.u32 %v3754, 7
    %v3756 = vsub.s32 %v3753, %v3755
    %v3757 = vrot.slane %v3646, %v3756
    %v3758 = vcombine.high %v3757, %v3757
    %v3787 = vsel %vm952, %v3653, -inf
    %v3788 = vrot.slane %v3787, 4
    %v3789 = vmax.f32 %v3787, %v3788
    %v3790 = vrot.slane %v3789, 2
    %v3791 = vmax.f32 %v3789, %v3790
    %v3792 = vrot.slane %v3791, 1
    %v3793 = vmax.f32 %v3791, %v3792
    %v3794 = vsel %vm960, %v3654, -inf
    %v3795 = vrot.slane %v3794, 4
    %v3796 = vmax.f32 %v3794, %v3795
    %v3797 = vrot.slane %v3796, 2
    %v3798 = vmax.f32 %v3796, %v3797
    %v3799 = vrot.slane %v3798, 1
    %v3800 = vmax.f32 %v3798, %v3799
    %v3801 = vsel %vm952, %v3661, -inf
    %v3802 = vrot.slane %v3801, 4
    %v3803 = vmax.f32 %v3801, %v3802
    %v3804 = vrot.slane %v3803, 2
    %v3805 = vmax.f32 %v3803, %v3804
    %v3806 = vrot.slane %v3805, 1
    %v3807 = vmax.f32 %v3805, %v3806
    %v3808 = vsel %vm960, %v3662, -inf
    %v3809 = vrot.slane %v3808, 4
    %v3810 = vmax.f32 %v3808, %v3809
    %v3811 = vrot.slane %v3810, 2
    %v3812 = vmax.f32 %v3810, %v3811
    %v3813 = vrot.slane %v3812, 1
    %v3814 = vmax.f32 %v3812, %v3813
    %v3815 = vsel %vm952, %v3669, -inf
    %v3816 = vrot.slane %v3815, 4
    %v3817 = vmax.f32 %v3815, %v3816
    %v3818 = vrot.slane %v3817, 2
    %v3819 = vmax.f32 %v3817, %v3818
    %v3820 = vrot.slane %v3819, 1
    %v3821 = vmax.f32 %v3819, %v3820
    %v3822 = vsel %vm960, %v3670, -inf
    %v3823 = vrot.slane %v3822, 4
    %v3824 = vmax.f32 %v3822, %v3823
    %v3825 = vrot.slane %v3824, 2
    %v3826 = vmax.f32 %v3824, %v3825
    %v3827 = vrot.slane %v3826, 1
    %v3828 = vmax.f32 %v3826, %v3827
    %v3829 = vsel %vm952, %v3677, -inf
    %v3830 = vrot.slane %v3829, 4
    %v3831 = vmax.f32 %v3829, %v3830
    %v3832 = vrot.slane %v3831, 2
    %v3833 = vmax.f32 %v3831, %v3832
    %v3834 = vrot.slane %v3833, 1
    %v3835 = vmax.f32 %v3833, %v3834
    %v3836 = vsel %vm960, %v3678, -inf
    %v3837 = vrot.slane %v3836, 4
    %v3838 = vmax.f32 %v3836, %v3837
    %v3839 = vrot.slane %v3838, 2
    %v3840 = vmax.f32 %v3838, %v3839
    %v3841 = vrot.slane %v3840, 1
    %v3842 = vmax.f32 %v3840, %v3841
    %v3843 = vsel %vm952, %v3685, -inf
    %v3844 = vrot.slane %v3843, 4
    %v3845 = vmax.f32 %v3843, %v3844
    %v3846 = vrot.slane %v3845, 2
    %v3847 = vmax.f32 %v3845, %v3846
    %v3848 = vrot.slane %v3847, 1
    %v3849 = vmax.f32 %v3847, %v3848
    %v3850 = vsel %vm960, %v3686, -inf
    %v3851 = vrot.slane %v3850, 4
    %v3852 = vmax.f32 %v3850, %v3851
    %v3853 = vrot.slane %v3852, 2
    %v3854 = vmax.f32 %v3852, %v3853
    %v3855 = vrot.slane %v3854, 1
    %v3856 = vmax.f32 %v3854, %v3855
    %v3857 = vsel %vm952, %v3693, -inf
    %v3858 = vrot.slane %v3857, 4
    %v3859 = vmax.f32 %v3857, %v3858
    %v3860 = vrot.slane %v3859, 2
    %v3861 = vmax.f32 %v3859, %v3860
    %v3862 = vrot.slane %v3861, 1
    %v3863 = vmax.f32 %v3861, %v3862
    %v3864 = vsel %vm960, %v3694, -inf
    %v3865 = vrot.slane %v3864, 4
    %v3866 = vmax.f32 %v3864, %v3865
    %v3867 = vrot.slane %v3866, 2
    %v3868 = vmax.f32 %v3866, %v3867
    %v3869 = vrot.slane %v3868, 1
    %v3870 = vmax.f32 %v3868, %v3869
    %v3871 = vsel %vm952, %v3701, -inf
    %v3872 = vrot.slane %v3871, 4
    %v3873 = vmax.f32 %v3871, %v3872
    %v3874 = vrot.slane %v3873, 2
    %v3875 = vmax.f32 %v3873, %v3874
    %v3876 = vrot.slane %v3875, 1
    %v3877 = vmax.f32 %v3875, %v3876
    %v3878 = vsel %vm960, %v3702, -inf
    %v3879 = vrot.slane %v3878, 4
    %v3880 = vmax.f32 %v3878, %v3879
    %v3881 = vrot.slane %v3880, 2
    %v3882 = vmax.f32 %v3880, %v3881
    %v3883 = vrot.slane %v3882, 1
    %v3884 = vmax.f32 %v3882, %v3883
    %v3885 = vsel %vm952, %v3709, -inf
    %v3886 = vrot.slane %v3885, 4
    %v3887 = vmax.f32 %v3885, %v3886
    %v3888 = vrot.slane %v3887, 2
    %v3889 = vmax.f32 %v3887, %v3888
    %v3890 = vrot.slane %v3889, 1
    %v3891 = vmax.f32 %v3889, %v3890
    %v3892 = vsel %vm960, %v3710, -inf
    %v3893 = vrot.slane %v3892, 4
    %v3894 = vmax.f32 %v3892, %v3893
    %v3895 = vrot.slane %v3894, 2
    %v3896 = vmax.f32 %v3894, %v3895
    %v3897 = vrot.slane %v3896, 1
    %v3898 = vmax.f32 %v3896, %v3897
    %v3899 = vsel %vm952, %v3717, -inf
    %v3900 = vrot.slane %v3899, 4
    %v3901 = vmax.f32 %v3899, %v3900
    %v3902 = vrot.slane %v3901, 2
    %v3903 = vmax.f32 %v3901, %v3902
    %v3904 = vrot.slane %v3903, 1
    %v3905 = vmax.f32 %v3903, %v3904
    %v3906 = vsel %vm960, %v3718, -inf
    %v3907 = vrot.slane %v3906, 4
    %v3908 = vmax.f32 %v3906, %v3907
    %v3909 = vrot.slane %v3908, 2
    %v3910 = vmax.f32 %v3908, %v3909
    %v3911 = vrot.slane %v3910, 1
    %v3912 = vmax.f32 %v3910, %v3911
    %v3913 = vsel %vm952, %v3725, -inf
    %v3914 = vrot.slane %v3913, 4
    %v3915 = vmax.f32 %v3913, %v3914
    %v3916 = vrot.slane %v3915, 2
    %v3917 = vmax.f32 %v3915, %v3916
    %v3918 = vrot.slane %v3917, 1
    %v3919 = vmax.f32 %v3917, %v3918
    %v3920 = vsel %vm960, %v3726, -inf
    %v3921 = vrot.slane %v3920, 4
    %v3922 = vmax.f32 %v3920, %v3921
    %v3923 = vrot.slane %v3922, 2
    %v3924 = vmax.f32 %v3922, %v3923
    %v3925 = vrot.slane %v3924, 1
    %v3926 = vmax.f32 %v3924, %v3925
    %v3927 = vsel %vm952, %v3733, -inf
    %v3928 = vrot.slane %v3927, 4
    %v3929 = vmax.f32 %v3927, %v3928
    %v3930 = vrot.slane %v3929, 2
    %v3931 = vmax.f32 %v3929, %v3930
    %v3932 = vrot.slane %v3931, 1
    %v3933 = vmax.f32 %v3931, %v3932
    %v3934 = vsel %vm960, %v3734, -inf
    %v3935 = vrot.slane %v3934, 4
    %v3936 = vmax.f32 %v3934, %v3935
    %v3937 = vrot.slane %v3936, 2
    %v3938 = vmax.f32 %v3936, %v3937
    %v3939 = vrot.slane %v3938, 1
    %v3940 = vmax.f32 %v3938, %v3939
    %v3941 = vsel %vm952, %v3741, -inf
    %v3942 = vrot.slane %v3941, 4
    %v3943 = vmax.f32 %v3941, %v3942
    %v3944 = vrot.slane %v3943, 2
    %v3945 = vmax.f32 %v3943, %v3944
    %v3946 = vrot.slane %v3945, 1
    %v3947 = vmax.f32 %v3945, %v3946
    %v3948 = vsel %vm960, %v3742, -inf
    %v3949 = vrot.slane %v3948, 4
    %v3950 = vmax.f32 %v3948, %v3949
    %v3951 = vrot.slane %v3950, 2
    %v3952 = vmax.f32 %v3950, %v3951
    %v3953 = vrot.slane %v3952, 1
    %v3954 = vmax.f32 %v3952, %v3953
    %v3955 = vsel %vm952, %v3749, -inf
    %v3956 = vrot.slane %v3955, 4
    %v3957 = vmax.f32 %v3955, %v3956
    %v3958 = vrot.slane %v3957, 2
    %v3959 = vmax.f32 %v3957, %v3958
    %v3960 = vrot.slane %v3959, 1
    %v3961 = vmax.f32 %v3959, %v3960
    %v3962 = vsel %vm960, %v3750, -inf
    %v3963 = vrot.slane %v3962, 4
    %v3964 = vmax.f32 %v3962, %v3963
    %v3965 = vrot.slane %v3964, 2
    %v3966 = vmax.f32 %v3964, %v3965
    %v3967 = vrot.slane %v3966, 1
    %v3968 = vmax.f32 %v3966, %v3967
    %v3969 = vsel %vm952, %v3757, -inf
    %v3970 = vrot.slane %v3969, 4
    %v3971 = vmax.f32 %v3969, %v3970
    %v3972 = vrot.slane %v3971, 2
    %v3973 = vmax.f32 %v3971, %v3972
    %v3974 = vrot.slane %v3973, 1
    %v3975 = vmax.f32 %v3973, %v3974
    %v3976 = vsel %vm960, %v3758, -inf
    %v3977 = vrot.slane %v3976, 4
    %v3978 = vmax.f32 %v3976, %v3977
    %v3979 = vrot.slane %v3978, 2
    %v3980 = vmax.f32 %v3978, %v3979
    %v3981 = vrot.slane %v3980, 1
    %v3982 = vmax.f32 %v3980, %v3981
    %4011 = vrot.lane.b32.xlu0 %v3793, 127
    %v4012 = vpop.permute.xlu0 %4011
    %4013 = vrot.lane.b32.xlu0 %v3800, 127
    %v4014 = vpop.permute.xlu0 %4013
    %4015 = vrot.lane.b32.xlu0 %v3807, 127
    %v4016 = vpop.permute.xlu0 %4015
    %4017 = vrot.lane.b32.xlu0 %v3814, 127
    %v4018 = vpop.permute.xlu0 %4017
    %4019 = vrot.lane.b32.xlu0 %v3821, 127
    %v4020 = vpop.permute.xlu0 %4019
    %4021 = vrot.lane.b32.xlu0 %v3828, 127
    %v4022 = vpop.permute.xlu0 %4021
    %4023 = vrot.lane.b32.xlu0 %v3835, 127
    %v4024 = vpop.permute.xlu0 %4023
    %4025 = vrot.lane.b32.xlu0 %v3842, 127
    %v4026 = vpop.permute.xlu0 %4025
    %4027 = vrot.lane.b32.xlu0 %v3849, 127
    %v4028 = vpop.permute.xlu0 %4027
    %4029 = vrot.lane.b32.xlu0 %v3856, 127
    %v4030 = vpop.permute.xlu0 %4029
    %4031 = vrot.lane.b32.xlu0 %v3863, 127
    %v4032 = vpop.permute.xlu0 %4031
    %4033 = vrot.lane.b32.xlu0 %v3870, 127
    %v4034 = vpop.permute.xlu0 %4033
    %4035 = vrot.lane.b32.xlu0 %v3877, 127
    %v4036 = vpop.permute.xlu0 %4035
    %4037 = vrot.lane.b32.xlu0 %v3884, 127
    %v4038 = vpop.permute.xlu0 %4037
    %4039 = vrot.lane.b32.xlu0 %v3891, 127
    %v4040 = vpop.permute.xlu0 %4039
    %4041 = vrot.lane.b32.xlu0 %v3898, 127
    %v4042 = vpop.permute.xlu0 %4041
    %4043 = vrot.lane.b32.xlu0 %v3905, 127
    %v4044 = vpop.permute.xlu0 %4043
    %4045 = vrot.lane.b32.xlu0 %v3912, 127
    %v4046 = vpop.permute.xlu0 %4045
    %4047 = vrot.lane.b32.xlu0 %v3919, 127
    %v4048 = vpop.permute.xlu0 %4047
    %4049 = vrot.lane.b32.xlu0 %v3926, 127
    %v4050 = vpop.permute.xlu0 %4049
    %4051 = vrot.lane.b32.xlu0 %v3933, 127
    %v4052 = vpop.permute.xlu0 %4051
    %4053 = vrot.lane.b32.xlu0 %v3940, 127
    %v4054 = vpop.permute.xlu0 %4053
    %4055 = vrot.lane.b32.xlu0 %v3947, 127
    %v4056 = vpop.permute.xlu0 %4055
    %4057 = vrot.lane.b32.xlu0 %v3954, 127
    %v4058 = vpop.permute.xlu0 %4057
    %4059 = vrot.lane.b32.xlu0 %v3961, 127
    %v4060 = vpop.permute.xlu0 %4059
    %4061 = vrot.lane.b32.xlu0 %v3968, 127
    %v4062 = vpop.permute.xlu0 %4061
    %4063 = vrot.lane.b32.xlu0 %v3975, 127
    %v4064 = vpop.permute.xlu0 %4063
    %4065 = vrot.lane.b32.xlu0 %v3982, 127
    %v4066 = vpop.permute.xlu0 %4065
    %v4067 = vsel %vm1234, %v4012, %v4014
    %v4068 = vsel %vm1234, %v4016, %v4018
    %v4069 = vsel %vm1234, %v4020, %v4022
    %v4070 = vsel %vm1234, %v4024, %v4026
    %v4071 = vsel %vm1234, %v4028, %v4030
    %v4072 = vsel %vm1234, %v4032, %v4034
    %v4073 = vsel %vm1234, %v4036, %v4038
    %v4074 = vsel %vm1234, %v4040, %v4042
    %v4075 = vsel %vm1234, %v4044, %v4046
    %v4076 = vsel %vm1234, %v4048, %v4050
    %v4077 = vsel %vm1234, %v4052, %v4054
    %v4078 = vsel %vm1234, %v4056, %v4058
    %v4079 = vsel %vm1234, %v4060, %v4062
    %v4080 = vsel %vm1234, %v4064, %v4066
    %v4109 = vmax.f32 %v3793, %v4067
    %v4110 = vmax.f32 %v3800, %v4014
    %v4111 = vmax.f32 %v3807, %v4068
    %v4112 = vmax.f32 %v3814, %v4018
    %v4113 = vmax.f32 %v3821, %v4069
    %v4114 = vmax.f32 %v3828, %v4022
    %v4115 = vmax.f32 %v3835, %v4070
    %v4116 = vmax.f32 %v3842, %v4026
    %v4117 = vmax.f32 %v3849, %v4071
    %v4118 = vmax.f32 %v3856, %v4030
    %v4119 = vmax.f32 %v3863, %v4072
    %v4120 = vmax.f32 %v3870, %v4034
    %v4121 = vmax.f32 %v3877, %v4073
    %v4122 = vmax.f32 %v3884, %v4038
    %v4123 = vmax.f32 %v3891, %v4074
    %v4124 = vmax.f32 %v3898, %v4042
    %v4125 = vmax.f32 %v3905, %v4075
    %v4126 = vmax.f32 %v3912, %v4046
    %v4127 = vmax.f32 %v3919, %v4076
    %v4128 = vmax.f32 %v3926, %v4050
    %v4129 = vmax.f32 %v3933, %v4077
    %v4130 = vmax.f32 %v3940, %v4054
    %v4131 = vmax.f32 %v3947, %v4078
    %v4132 = vmax.f32 %v3954, %v4058
    %v4133 = vmax.f32 %v3961, %v4079
    %v4134 = vmax.f32 %v3968, %v4062
    %v4135 = vmax.f32 %v3975, %v4080
    %v4136 = vmax.f32 %v3982, %v4066
    %v4157 = vrot.slane %v4113, 7
    %v4158 = vsel %vm1411, %v4157, %v4111
    %v4159 = vrot.slane %v4115, 6
    %v4160 = vsel %vm1414, %v4159, %v4158
    %v4161 = vrot.slane %v4117, 5
    %v4162 = vsel %vm1417, %v4161, %v4160
    %v4163 = vrot.slane %v4119, 4
    %v4164 = vsel %vm1420, %v4163, %v4162
    %v4165 = vrot.slane %v4121, 3
    %v4166 = vsel %vm1423, %v4165, %v4164
    %v4167 = vrot.slane %v4123, 2
    %v4168 = vsel %vm1426, %v4167, %v4166
    %v4169 = vrot.slane %v4125, 1
    %v4170 = vsel %vm1429, %v4169, %v4168
    %v4171 = vrot.slane %v4114, 7
    %v4172 = vsel %vm1411, %v4171, %v4112
    %v4173 = vrot.slane %v4116, 6
    %v4174 = vsel %vm1414, %v4173, %v4172
    %v4175 = vrot.slane %v4118, 5
    %v4176 = vsel %vm1417, %v4175, %v4174
    %v4177 = vrot.slane %v4120, 4
    %v4178 = vsel %vm1420, %v4177, %v4176
    %v4179 = vrot.slane %v4122, 3
    %v4180 = vsel %vm1423, %v4179, %v4178
    %v4181 = vrot.slane %v4124, 2
    %v4182 = vsel %vm1426, %v4181, %v4180
    %v4183 = vrot.slane %v4126, 1
    %v4184 = vsel %vm1429, %v4183, %v4182
    %v4185 = vrot.slane %v4129, 7
    %v4186 = vsel %vm1411, %v4185, %v4127
    %v4187 = vrot.slane %v4130, 7
    %v4188 = vsel %vm1411, %v4187, %v4128
    %v4191 = vsel %vm1451, %v4184, 0
    %v4193 = vsel %vm1451, %v4188, 0
    %4195 = vmatprep.subr.mxu0 %v1349
    %4196 = vmatpush1.msra.mxu0 %v1348
    %4197 = vmatprep.subr.mxu0 %v1351
    %4198 = vmatpush1.msra.mxu0 %v1350
    %4199 = vmatprep.subr.mxu0 %v1353
    %4200 = vmatpush1.msra.mxu0 %v1352
    %4201 = vmatprep.subr.mxu0 %v1355
    %4202 = vmatpush1.msra.mxu0 %v1354
    %4203 = vmatprep.subr.mxu0 %v1357
    %4204 = vmatpush1.msra.mxu0 %v1356
    %4205 = vmatprep.subr.mxu0 %v1359
    %4206 = vmatpush1.msra.mxu0 %v1358
    %4207 = vmatprep.subr.mxu0 %v1361
    %4208 = vmatpush1.msra.mxu0 %v1360
    %4209 = vmatprep.subr.mxu0 %v1363
    %4210 = vmatpush1.msra.mxu0 %v1362
    %4211 = vmatprep.subr.mxu0 %v1365
    %4212 = vmatpush1.msra.mxu0 %v1364
    %4213 = vmatprep.subr.mxu0 %v1367
    %4214 = vmatpush1.msra.mxu0 %v1366
    %4215 = vmatprep.subr.mxu0 %v1369
    %4216 = vmatpush1.msra.mxu0 %v1368
    %4217 = vmatprep.subr.mxu0 %v1371
    %4218 = vmatpush1.msra.mxu0 %v1370
    %4219 = vmatprep.subr.mxu0 %v1373
    %4220 = vmatpush1.msra.mxu0 %v1372
    %4221 = vmatprep.subr.mxu0 %v1375
    %4222 = vmatpush1.msra.mxu0 %v1374
    %4223 = vmatprep.subr.mxu0 %v1377
    %4224 = vmatpush1.msra.mxu0 %v1376
    %4225 = vmatprep.subr.mxu0 %v1379
    %4226 = vmatpush1.msra.mxu0 %v1378
    %4227 = vmatprep.subr.mxu0 %v1381
    %4228 = vmatpush1.msra.mxu0 %v1380
    %4229 = vmatprep.subr.mxu0 %v1383
    %4230 = vmatpush1.msra.mxu0 %v1382
    %4231 = vmatprep.subr.mxu0 %v1385
    %4232 = vmatpush1.msra.mxu0 %v1384
    %4233 = vmatprep.subr.mxu0 %v1387
    %4234 = vmatpush1.msra.mxu0 %v1386
    %4235 = vmatprep.subr.mxu0 %v1461
    %4236 = vmatpush1.msra.mxu0 %v1458
    %4237 = vmatprep.subr.mxu0 0.0
    %4238 = vmatpush1.msra.mxu0 0.0
    %4239 = vmatprep.subr.mxu0 0.0
    %4240 = vmatpush1.msra.mxu0 0.0
    %4241 = vmatprep.subr.mxu0 0.0
    %4242 = vmatpush1.msra.mxu0 0.0
    %4243 = vmatprep.subr.mxu0 0.0
    %4244 = vmatpush1.msra.mxu0 0.0
    %4245 = vmatprep.subr.mxu0 0.0
    %4246 = vmatpush1.msra.mxu0 0.0
    %4247 = vmatprep.subr.mxu0 0.0
    %4248 = vmatpush1.msra.mxu0 0.0
    %4249 = vmatprep.subr.mxu0 0.0
    %4250 = vmatpush1.msra.mxu0 0.0
    %4251 = vmatprep.subr.mxu0 0.0
    %4252 = vmatpush1.msra.mxu0 0.0
    %4253 = vmatprep.subr.mxu0 0.0
    %4254 = vmatpush1.msra.mxu0 0.0
    %4255 = vmatprep.subr.mxu0 0.0
    %4256 = vmatpush1.msra.mxu0 0.0
    %4257 = vmatprep.subr.mxu0 0.0
    %4258 = vmatpush1.msra.mxu0 0.0
    %4259 = vmatprep.mubr.f32.mxu0 %v4191
    %4260 = vmatmul.mubr.f32.gmra.mrb[0].mxu0 %v4170
    %v4261 = vpop.f32.mrb[0].mxu0
    %v4262 = vadd.f32 0.0, %v4261
    %v4263 = vpop.f32.mrb[0].mxu0
    %v4264 = vadd.f32 0.0, %v4263
    %4265 = vmatprep.mubr.f32.mxu0 %v4193
    %4266 = vmatmul.mubr.f32.gmra.mrb[0].mxu0 %v4186
    %v4267 = vpop.f32.mrb[0].mxu0
    %v4268 = vadd.f32 0.0, %v4267
    %v4269 = vpop.f32.mrb[0].mxu0
    %v4270 = vadd.f32 0.0, %v4269
    %4271 = vdwg.mxu0
    %v4274 = vrot.slane %v4111, 7
    %v4275 = vsel %vm1411, %v4274, %v4109
    %v4276 = vrot.slane %v4113, 6
    %v4277 = vsel %vm1414, %v4276, %v4275
    %v4278 = vrot.slane %v4115, 5
    %v4279 = vsel %vm1417, %v4278, %v4277
    %v4280 = vrot.slane %v4117, 4
    %v4281 = vsel %vm1420, %v4280, %v4279
    %v4282 = vrot.slane %v4119, 3
    %v4283 = vsel %vm1423, %v4282, %v4281
    %v4284 = vrot.slane %v4121, 2
    %v4285 = vsel %vm1426, %v4284, %v4283
    %v4286 = vrot.slane %v4123, 1
    %v4287 = vsel %vm1429, %v4286, %v4285
    %v4288 = vrot.slane %v4112, 7
    %v4289 = vsel %vm1411, %v4288, %v4110
    %v4290 = vrot.slane %v4114, 6
    %v4291 = vsel %vm1414, %v4290, %v4289
    %v4292 = vrot.slane %v4116, 5
    %v4293 = vsel %vm1417, %v4292, %v4291
    %v4294 = vrot.slane %v4118, 4
    %v4295 = vsel %vm1420, %v4294, %v4293
    %v4296 = vrot.slane %v4120, 3
    %v4297 = vsel %vm1423, %v4296, %v4295
    %v4298 = vrot.slane %v4122, 2
    %v4299 = vsel %vm1426, %v4298, %v4297
    %v4300 = vrot.slane %v4124, 1
    %v4301 = vsel %vm1429, %v4300, %v4299
    %v4302 = vrot.slane %v4127, 7
    %v4303 = vsel %vm1411, %v4302, %v4125
    %v4304 = vrot.slane %v4128, 7
    %v4305 = vsel %vm1411, %v4304, %v4126
    %v4308 = vsel %vm1451, %v4301, 0
    %v4310 = vsel %vm1451, %v4305, 0
    %4312 = vmatprep.subr.mxu0 %v1306
    %4313 = vmatpush1.msra.mxu0 %v1305
    %4314 = vmatprep.subr.mxu0 %v1308
    %4315 = vmatpush1.msra.mxu0 %v1307
    %4316 = vmatprep.subr.mxu0 %v1310
    %4317 = vmatpush1.msra.mxu0 %v1309
    %4318 = vmatprep.subr.mxu0 %v1312
    %4319 = vmatpush1.msra.mxu0 %v1311
    %4320 = vmatprep.subr.mxu0 %v1314
    %4321 = vmatpush1.msra.mxu0 %v1313
    %4322 = vmatprep.subr.mxu0 %v1316
    %4323 = vmatpush1.msra.mxu0 %v1315
    %4324 = vmatprep.subr.mxu0 %v1318
    %4325 = vmatpush1.msra.mxu0 %v1317
    %4326 = vmatprep.subr.mxu0 %v1320
    %4327 = vmatpush1.msra.mxu0 %v1319
    %4328 = vmatprep.subr.mxu0 %v1322
    %4329 = vmatpush1.msra.mxu0 %v1321
    %4330 = vmatprep.subr.mxu0 %v1324
    %4331 = vmatpush1.msra.mxu0 %v1323
    %4332 = vmatprep.subr.mxu0 %v1326
    %4333 = vmatpush1.msra.mxu0 %v1325
    %4334 = vmatprep.subr.mxu0 %v1328
    %4335 = vmatpush1.msra.mxu0 %v1327
    %4336 = vmatprep.subr.mxu0 %v1330
    %4337 = vmatpush1.msra.mxu0 %v1329
    %4338 = vmatprep.subr.mxu0 %v1332
    %4339 = vmatpush1.msra.mxu0 %v1331
    %4340 = vmatprep.subr.mxu0 %v1334
    %4341 = vmatpush1.msra.mxu0 %v1333
    %4342 = vmatprep.subr.mxu0 %v1336
    %4343 = vmatpush1.msra.mxu0 %v1335
    %4344 = vmatprep.subr.mxu0 %v1338
    %4345 = vmatpush1.msra.mxu0 %v1337
    %4346 = vmatprep.subr.mxu0 %v1340
    %4347 = vmatpush1.msra.mxu0 %v1339
    %4348 = vmatprep.subr.mxu0 %v1342
    %4349 = vmatpush1.msra.mxu0 %v1341
    %4350 = vmatprep.subr.mxu0 %v1344
    %4351 = vmatpush1.msra.mxu0 %v1343
    %4352 = vmatprep.subr.mxu0 %v1584
    %4353 = vmatpush1.msra.mxu0 %v1581
    %4354 = vmatprep.subr.mxu0 0.0
    %4355 = vmatpush1.msra.mxu0 0.0
    %4356 = vmatprep.subr.mxu0 0.0
    %4357 = vmatpush1.msra.mxu0 0.0
    %4358 = vmatprep.subr.mxu0 0.0
    %4359 = vmatpush1.msra.mxu0 0.0
    %4360 = vmatprep.subr.mxu0 0.0
    %4361 = vmatpush1.msra.mxu0 0.0
    %4362 = vmatprep.subr.mxu0 0.0
    %4363 = vmatpush1.msra.mxu0 0.0
    %4364 = vmatprep.subr.mxu0 0.0
    %4365 = vmatpush1.msra.mxu0 0.0
    %4366 = vmatprep.subr.mxu0 0.0
    %4367 = vmatpush1.msra.mxu0 0.0
    %4368 = vmatprep.subr.mxu0 0.0
    %4369 = vmatpush1.msra.mxu0 0.0
    %4370 = vmatprep.subr.mxu0 0.0
    %4371 = vmatpush1.msra.mxu0 0.0
    %4372 = vmatprep.subr.mxu0 0.0
    %4373 = vmatpush1.msra.mxu0 0.0
    %4374 = vmatprep.subr.mxu0 0.0
    %4375 = vmatpush1.msra.mxu0 0.0
    %4376 = vmatprep.mubr.f32.mxu0 %v4308
    %4377 = vmatmul.mubr.f32.gmra.mrb[0].mxu0 %v4287
    %v4378 = vpop.f32.mrb[0].mxu0
    %v4379 = vadd.f32 %v4262, %v4378
    %v4380 = vpop.f32.mrb[0].mxu0
    %v4381 = vadd.f32 %v4264, %v4380
    %4382 = vmatprep.mubr.f32.mxu0 %v4310
    %4383 = vmatmul.mubr.f32.gmra.mrb[0].mxu0 %v4303
    %v4384 = vpop.f32.mrb[0].mxu0
    %v4385 = vadd.f32 %v4268, %v4384
    %v4386 = vpop.f32.mrb[0].mxu0
    %v4387 = vadd.f32 %v4270, %v4386
    %4388 = vdwg.mxu0
    %v4391 = vrot.slane %v4115, 7
    %v4392 = vsel %vm1411, %v4391, %v4113
    %v4393 = vrot.slane %v4117, 6
    %v4394 = vsel %vm1414, %v4393, %v4392
    %v4395 = vrot.slane %v4119, 5
    %v4396 = vsel %vm1417, %v4395, %v4394
    %v4397 = vrot.slane %v4121, 4
    %v4398 = vsel %vm1420, %v4397, %v4396
    %v4399 = vrot.slane %v4123, 3
    %v4400 = vsel %vm1423, %v4399, %v4398
    %v4401 = vrot.slane %v4125, 2
    %v4402 = vsel %vm1426, %v4401, %v4400
    %v4403 = vrot.slane %v4127, 1
    %v4404 = vsel %vm1429, %v4403, %v4402
    %v4405 = vrot.slane %v4116, 7
    %v4406 = vsel %vm1411, %v4405, %v4114
    %v4407 = vrot.slane %v4118, 6
    %v4408 = vsel %vm1414, %v4407, %v4406
    %v4409 = vrot.slane %v4120, 5
    %v4410 = vsel %vm1417, %v4409, %v4408
    %v4411 = vrot.slane %v4122, 4
    %v4412 = vsel %vm1420, %v4411, %v4410
    %v4413 = vrot.slane %v4124, 3
    %v4414 = vsel %vm1423, %v4413, %v4412
    %v4415 = vrot.slane %v4126, 2
    %v4416 = vsel %vm1426, %v4415, %v4414
    %v4417 = vrot.slane %v4128, 1
    %v4418 = vsel %vm1429, %v4417, %v4416
    %v4419 = vrot.slane %v4131, 7
    %v4420 = vsel %vm1411, %v4419, %v4129
    %v4421 = vrot.slane %v4132, 7
    %v4422 = vsel %vm1411, %v4421, %v4130
    %v4425 = vsel %vm1451, %v4418, 0
    %v4427 = vsel %vm1451, %v4422, 0
    %4429 = vmatprep.subr.mxu0 %v1665
    %4430 = vmatpush1.msra.mxu0 %v1664
    %4431 = vmatprep.subr.mxu0 %v1667
    %4432 = vmatpush1.msra.mxu0 %v1666
    %4433 = vmatprep.subr.mxu0 %v1669
    %4434 = vmatpush1.msra.mxu0 %v1668
    %4435 = vmatprep.subr.mxu0 %v1671
    %4436 = vmatpush1.msra.mxu0 %v1670
    %4437 = vmatprep.subr.mxu0 %v1673
    %4438 = vmatpush1.msra.mxu0 %v1672
    %4439 = vmatprep.subr.mxu0 %v1675
    %4440 = vmatpush1.msra.mxu0 %v1674
    %4441 = vmatprep.subr.mxu0 %v1677
    %4442 = vmatpush1.msra.mxu0 %v1676
    %4443 = vmatprep.subr.mxu0 %v1679
    %4444 = vmatpush1.msra.mxu0 %v1678
    %4445 = vmatprep.subr.mxu0 %v1681
    %4446 = vmatpush1.msra.mxu0 %v1680
    %4447 = vmatprep.subr.mxu0 %v1683
    %4448 = vmatpush1.msra.mxu0 %v1682
    %4449 = vmatprep.subr.mxu0 %v1685
    %4450 = vmatpush1.msra.mxu0 %v1684
    %4451 = vmatprep.subr.mxu0 %v1687
    %4452 = vmatpush1.msra.mxu0 %v1686
    %4453 = vmatprep.subr.mxu0 %v1689
    %4454 = vmatpush1.msra.mxu0 %v1688
    %4455 = vmatprep.subr.mxu0 %v1691
    %4456 = vmatpush1.msra.mxu0 %v1690
    %4457 = vmatprep.subr.mxu0 %v1693
    %4458 = vmatpush1.msra.mxu0 %v1692
    %4459 = vmatprep.subr.mxu0 %v1695
    %4460 = vmatpush1.msra.mxu0 %v1694
    %4461 = vmatprep.subr.mxu0 %v1697
    %4462 = vmatpush1.msra.mxu0 %v1696
    %4463 = vmatprep.subr.mxu0 %v1699
    %4464 = vmatpush1.msra.mxu0 %v1698
    %4465 = vmatprep.subr.mxu0 %v1701
    %4466 = vmatpush1.msra.mxu0 %v1700
    %4467 = vmatprep.subr.mxu0 %v1703
    %4468 = vmatpush1.msra.mxu0 %v1702
    %4469 = vmatprep.subr.mxu0 %v1750
    %4470 = vmatpush1.msra.mxu0 %v1747
    %4471 = vmatprep.subr.mxu0 0.0
    %4472 = vmatpush1.msra.mxu0 0.0
    %4473 = vmatprep.subr.mxu0 0.0
    %4474 = vmatpush1.msra.mxu0 0.0
    %4475 = vmatprep.subr.mxu0 0.0
    %4476 = vmatpush1.msra.mxu0 0.0
    %4477 = vmatprep.subr.mxu0 0.0
    %4478 = vmatpush1.msra.mxu0 0.0
    %4479 = vmatprep.subr.mxu0 0.0
    %4480 = vmatpush1.msra.mxu0 0.0
    %4481 = vmatprep.subr.mxu0 0.0
    %4482 = vmatpush1.msra.mxu0 0.0
    %4483 = vmatprep.subr.mxu0 0.0
    %4484 = vmatpush1.msra.mxu0 0.0
    %4485 = vmatprep.subr.mxu0 0.0
    %4486 = vmatpush1.msra.mxu0 0.0
    %4487 = vmatprep.subr.mxu0 0.0
    %4488 = vmatpush1.msra.mxu0 0.0
    %4489 = vmatprep.subr.mxu0 0.0
    %4490 = vmatpush1.msra.mxu0 0.0
    %4491 = vmatprep.subr.mxu0 0.0
    %4492 = vmatpush1.msra.mxu0 0.0
    %4493 = vmatprep.mubr.f32.mxu0 %v4425
    %4494 = vmatmul.mubr.f32.gmra.mrb[0].mxu0 %v4404
    %v4495 = vpop.f32.mrb[0].mxu0
    %v4496 = vadd.f32 0.0, %v4495
    %v4497 = vpop.f32.mrb[0].mxu0
    %v4498 = vadd.f32 0.0, %v4497
    %4499 = vmatprep.mubr.f32.mxu0 %v4427
    %4500 = vmatmul.mubr.f32.gmra.mrb[0].mxu0 %v4420
    %v4501 = vpop.f32.mrb[0].mxu0
    %v4502 = vadd.f32 0.0, %v4501
    %v4503 = vpop.f32.mrb[0].mxu0
    %v4504 = vadd.f32 0.0, %v4503
    %4505 = vdwg.mxu0
    %v4506 = vadd.f32 %v4379, %v4496
    %v4507 = vadd.f32 %v4381, %v4498
    %v4508 = vadd.f32 %v4385, %v4502
    %v4509 = vadd.f32 %v4387, %v4504
    %v4512 = vrot.slane %v4117, 7
    %v4513 = vsel %vm1411, %v4512, %v4115
    %v4514 = vrot.slane %v4119, 6
    %v4515 = vsel %vm1414, %v4514, %v4513
    %v4516 = vrot.slane %v4121, 5
    %v4517 = vsel %vm1417, %v4516, %v4515
    %v4518 = vrot.slane %v4123, 4
    %v4519 = vsel %vm1420, %v4518, %v4517
    %v4520 = vrot.slane %v4125, 3
    %v4521 = vsel %vm1423, %v4520, %v4519
    %v4522 = vrot.slane %v4127, 2
    %v4523 = vsel %vm1426, %v4522, %v4521
    %v4524 = vrot.slane %v4129, 1
    %v4525 = vsel %vm1429, %v4524, %v4523
    %v4526 = vrot.slane %v4118, 7
    %v4527 = vsel %vm1411, %v4526, %v4116
    %v4528 = vrot.slane %v4120, 6
    %v4529 = vsel %vm1414, %v4528, %v4527
    %v4530 = vrot.slane %v4122, 5
    %v4531 = vsel %vm1417, %v4530, %v4529
    %v4532 = vrot.slane %v4124, 4
    %v4533 = vsel %vm1420, %v4532, %v4531
    %v4534 = vrot.slane %v4126, 3
    %v4535 = vsel %vm1423, %v4534, %v4533
    %v4536 = vrot.slane %v4128, 2
    %v4537 = vsel %vm1426, %v4536, %v4535
    %v4538 = vrot.slane %v4130, 1
    %v4539 = vsel %vm1429, %v4538, %v4537
    %v4540 = vrot.slane %v4133, 7
    %v4541 = vsel %vm1411, %v4540, %v4131
    %v4542 = vrot.slane %v4134, 7
    %v4543 = vsel %vm1411, %v4542, %v4132
    %v4546 = vsel %vm1451, %v4539, 0
    %v4548 = vsel %vm1451, %v4543, 0
    %4550 = vmatprep.subr.mxu0 %v1835
    %4551 = vmatpush1.msra.mxu0 %v1834
    %4552 = vmatprep.subr.mxu0 %v1837
    %4553 = vmatpush1.msra.mxu0 %v1836
    %4554 = vmatprep.subr.mxu0 %v1839
    %4555 = vmatpush1.msra.mxu0 %v1838
    %4556 = vmatprep.subr.mxu0 %v1841
    %4557 = vmatpush1.msra.mxu0 %v1840
    %4558 = vmatprep.subr.mxu0 %v1843
    %4559 = vmatpush1.msra.mxu0 %v1842
    %4560 = vmatprep.subr.mxu0 %v1845
    %4561 = vmatpush1.msra.mxu0 %v1844
    %4562 = vmatprep.subr.mxu0 %v1847
    %4563 = vmatpush1.msra.mxu0 %v1846
    %4564 = vmatprep.subr.mxu0 %v1849
    %4565 = vmatpush1.msra.mxu0 %v1848
    %4566 = vmatprep.subr.mxu0 %v1851
    %4567 = vmatpush1.msra.mxu0 %v1850
    %4568 = vmatprep.subr.mxu0 %v1853
    %4569 = vmatpush1.msra.mxu0 %v1852
    %4570 = vmatprep.subr.mxu0 %v1855
    %4571 = vmatpush1.msra.mxu0 %v1854
    %4572 = vmatprep.subr.mxu0 %v1857
    %4573 = vmatpush1.msra.mxu0 %v1856
    %4574 = vmatprep.subr.mxu0 %v1859
    %4575 = vmatpush1.msra.mxu0 %v1858
    %4576 = vmatprep.subr.mxu0 %v1861
    %4577 = vmatpush1.msra.mxu0 %v1860
    %4578 = vmatprep.subr.mxu0 %v1863
    %4579 = vmatpush1.msra.mxu0 %v1862
    %4580 = vmatprep.subr.mxu0 %v1865
    %4581 = vmatpush1.msra.mxu0 %v1864
    %4582 = vmatprep.subr.mxu0 %v1867
    %4583 = vmatpush1.msra.mxu0 %v1866
    %4584 = vmatprep.subr.mxu0 %v1869
    %4585 = vmatpush1.msra.mxu0 %v1868
    %4586 = vmatprep.subr.mxu0 %v1871
    %4587 = vmatpush1.msra.mxu0 %v1870
    %4588 = vmatprep.subr.mxu0 %v1873
    %4589 = vmatpush1.msra.mxu0 %v1872
    %4590 = vmatprep.subr.mxu0 %v1920
    %4591 = vmatpush1.msra.mxu0 %v1917
    %4592 = vmatprep.subr.mxu0 0.0
    %4593 = vmatpush1.msra.mxu0 0.0
    %4594 = vmatprep.subr.mxu0 0.0
    %4595 = vmatpush1.msra.mxu0 0.0
    %4596 = vmatprep.subr.mxu0 0.0
    %4597 = vmatpush1.msra.mxu0 0.0
    %4598 = vmatprep.subr.mxu0 0.0
    %4599 = vmatpush1.msra.mxu0 0.0
    %4600 = vmatprep.subr.mxu0 0.0
    %4601 = vmatpush1.msra.mxu0 0.0
    %4602 = vmatprep.subr.mxu0 0.0
    %4603 = vmatpush1.msra.mxu0 0.0
    %4604 = vmatprep.subr.mxu0 0.0
    %4605 = vmatpush1.msra.mxu0 0.0
    %4606 = vmatprep.subr.mxu0 0.0
    %4607 = vmatpush1.msra.mxu0 0.0
    %4608 = vmatprep.subr.mxu0 0.0
    %4609 = vmatpush1.msra.mxu0 0.0
    %4610 = vmatprep.subr.mxu0 0.0
    %4611 = vmatpush1.msra.mxu0 0.0
    %4612 = vmatprep.subr.mxu0 0.0
    %4613 = vmatpush1.msra.mxu0 0.0
    %4614 = vmatprep.mubr.f32.mxu0 %v4546
    %4615 = vmatmul.mubr.f32.gmra.mrb[0].mxu0 %v4525
    %v4616 = vpop.f32.mrb[0].mxu0
    %v4617 = vadd.f32 0.0, %v4616
    %v4618 = vpop.f32.mrb[0].mxu0
    %v4619 = vadd.f32 0.0, %v4618
    %4620 = vmatprep.mubr.f32.mxu0 %v4548
    %4621 = vmatmul.mubr.f32.gmra.mrb[0].mxu0 %v4541
    %v4622 = vpop.f32.mrb[0].mxu0
    %v4623 = vadd.f32 0.0, %v4622
    %v4624 = vpop.f32.mrb[0].mxu0
    %v4625 = vadd.f32 0.0, %v4624
    %4626 = vdwg.mxu0
    %v4627 = vadd.f32 %v4506, %v4617
    %v4628 = vadd.f32 %v4507, %v4619
    %v4629 = vadd.f32 %v4508, %v4623
    %v4630 = vadd.f32 %v4509, %v4625
    %v4633 = vrot.slane %v4119, 7
    %v4634 = vsel %vm1411, %v4633, %v4117
    %v4635 = vrot.slane %v4121, 6
    %v4636 = vsel %vm1414, %v4635, %v4634
    %v4637 = vrot.slane %v4123, 5
    %v4638 = vsel %vm1417, %v4637, %v4636
    %v4639 = vrot.slane %v4125, 4
    %v4640 = vsel %vm1420, %v4639, %v4638
    %v4641 = vrot.slane %v4127, 3
    %v4642 = vsel %vm1423, %v4641, %v4640
    %v4643 = vrot.slane %v4129, 2
    %v4644 = vsel %vm1426, %v4643, %v4642
    %v4645 = vrot.slane %v4131, 1
    %v4646 = vsel %vm1429, %v4645, %v4644
    %v4647 = vrot.slane %v4120, 7
    %v4648 = vsel %vm1411, %v4647, %v4118
    %v4649 = vrot.slane %v4122, 6
    %v4650 = vsel %vm1414, %v4649, %v4648
    %v4651 = vrot.slane %v4124, 5
    %v4652 = vsel %vm1417, %v4651, %v4650
    %v4653 = vrot.slane %v4126, 4
    %v4654 = vsel %vm1420, %v4653, %v4652
    %v4655 = vrot.slane %v4128, 3
    %v4656 = vsel %vm1423, %v4655, %v4654
    %v4657 = vrot.slane %v4130, 2
    %v4658 = vsel %vm1426, %v4657, %v4656
    %v4659 = vrot.slane %v4132, 1
    %v4660 = vsel %vm1429, %v4659, %v4658
    %v4661 = vrot.slane %v4135, 7
    %v4662 = vsel %vm1411, %v4661, %v4133
    %v4663 = vrot.slane %v4136, 7
    %v4664 = vsel %vm1411, %v4663, %v4134
    %v4667 = vsel %vm1451, %v4660, 0
    %v4669 = vsel %vm1451, %v4664, 0
    %4671 = vmatprep.subr.mxu0 %v2005
    %4672 = vmatpush1.msra.mxu0 %v2004
    %4673 = vmatprep.subr.mxu0 %v2007
    %4674 = vmatpush1.msra.mxu0 %v2006
    %4675 = vmatprep.subr.mxu0 %v2009
    %4676 = vmatpush1.msra.mxu0 %v2008
    %4677 = vmatprep.subr.mxu0 %v2011
    %4678 = vmatpush1.msra.mxu0 %v2010
    %4679 = vmatprep.subr.mxu0 %v2013
    %4680 = vmatpush1.msra.mxu0 %v2012
    %4681 = vmatprep.subr.mxu0 %v2015
    %4682 = vmatpush1.msra.mxu0 %v2014
    %4683 = vmatprep.subr.mxu0 %v2017
    %4684 = vmatpush1.msra.mxu0 %v2016
    %4685 = vmatprep.subr.mxu0 %v2019
    %4686 = vmatpush1.msra.mxu0 %v2018
    %4687 = vmatprep.subr.mxu0 %v2021
    %4688 = vmatpush1.msra.mxu0 %v2020
    %4689 = vmatprep.subr.mxu0 %v2023
    %4690 = vmatpush1.msra.mxu0 %v2022
    %4691 = vmatprep.subr.mxu0 %v2025
    %4692 = vmatpush1.msra.mxu0 %v2024
    %4693 = vmatprep.subr.mxu0 %v2027
    %4694 = vmatpush1.msra.mxu0 %v2026
    %4695 = vmatprep.subr.mxu0 %v2029
    %4696 = vmatpush1.msra.mxu0 %v2028
    %4697 = vmatprep.subr.mxu0 %v2031
    %4698 = vmatpush1.msra.mxu0 %v2030
    %4699 = vmatprep.subr.mxu0 %v2033
    %4700 = vmatpush1.msra.mxu0 %v2032
    %4701 = vmatprep.subr.mxu0 %v2035
    %4702 = vmatpush1.msra.mxu0 %v2034
    %4703 = vmatprep.subr.mxu0 %v2037
    %4704 = vmatpush1.msra.mxu0 %v2036
    %4705 = vmatprep.subr.mxu0 %v2039
    %4706 = vmatpush1.msra.mxu0 %v2038
    %4707 = vmatprep.subr.mxu0 %v2041
    %4708 = vmatpush1.msra.mxu0 %v2040
    %4709 = vmatprep.subr.mxu0 %v2043
    %4710 = vmatpush1.msra.mxu0 %v2042
    %4711 = vmatprep.subr.mxu0 %v2090
    %4712 = vmatpush1.msra.mxu0 %v2087
    %4713 = vmatprep.subr.mxu0 0.0
    %4714 = vmatpush1.msra.mxu0 0.0
    %4715 = vmatprep.subr.mxu0 0.0
    %4716 = vmatpush1.msra.mxu0 0.0
    %4717 = vmatprep.subr.mxu0 0.0
    %4718 = vmatpush1.msra.mxu0 0.0
    %4719 = vmatprep.subr.mxu0 0.0
    %4720 = vmatpush1.msra.mxu0 0.0
    %4721 = vmatprep.subr.mxu0 0.0
    %4722 = vmatpush1.msra.mxu0 0.0
    %4723 = vmatprep.subr.mxu0 0.0
    %4724 = vmatpush1.msra.mxu0 0.0
    %4725 = vmatprep.subr.mxu0 0.0
    %4726 = vmatpush1.msra.mxu0 0.0
    %4727 = vmatprep.subr.mxu0 0.0
    %4728 = vmatpush1.msra.mxu0 0.0
    %4729 = vmatprep.subr.mxu0 0.0
    %4730 = vmatpush1.msra.mxu0 0.0
    %4731 = vmatprep.subr.mxu0 0.0
    %4732 = vmatpush1.msra.mxu0 0.0
    %4733 = vmatprep.subr.mxu0 0.0
    %4734 = vmatpush1.msra.mxu0 0.0
    %4735 = vmatprep.mubr.f32.mxu0 %v4667
    %4736 = vmatmul.mubr.f32.gmra.mrb[0].mxu0 %v4646
    %v4737 = vpop.f32.mrb[0].mxu0
    %v4738 = vadd.f32 0.0, %v4737
    %v4739 = vpop.f32.mrb[0].mxu0
    %v4740 = vadd.f32 0.0, %v4739
    %4741 = vmatprep.mubr.f32.mxu0 %v4669
    %4742 = vmatmul.mubr.f32.gmra.mrb[0].mxu0 %v4662
    %v4743 = vpop.f32.mrb[0].mxu0
    %v4744 = vadd.f32 0.0, %v4743
    %v4745 = vpop.f32.mrb[0].mxu0
    %v4746 = vadd.f32 0.0, %v4745
    %4747 = vdwg.mxu0
    %v4748 = vadd.f32 %v4627, %v4738
    %v4749 = vadd.f32 %v4628, %v4740
    %v4750 = vadd.f32 %v4629, %v4744
    %v4751 = vadd.f32 %v4630, %v4746
    %v4752 = vadd.f32 %v4748, %v2178
    %v4753 = vadd.f32 %v4749, %v2182
    %v4754 = vadd.f32 %v4750, %v2178
    %v4755 = vadd.f32 %v4751, %v2182
    %v4756 = vmax.f32 %v4752, 0.0
    %v4757 = vmax.f32 %v4753, 0.0
    %v4758 = vmax.f32 %v4754, 0.0
    %v4759 = vmax.f32 %v4755, 0.0
    %v4764 = vcombine.low %v4756, %v4757
    %v4765 = vcombine.high %v4756, %v4757
    %v4767 = vunpack.c.l.s4 1983009808
    %v4768 = vunpack.c.0.s8 %v4767
    %v4769 = vlaneseq
    %v4770 = vshrl.u32 %v4769, 7
    %v4771 = vsub.s32 %v4768, %v4770
    %v4772 = vrot.slane %v4764, %v4771
    %v4774 = vunpack.c.l.s4 1983009808
    %v4775 = vunpack.c.0.s8 %v4774
    %v4776 = vlaneseq
    %v4777 = vshrl.u32 %v4776, 7
    %v4778 = vsub.s32 %v4775, %v4777
    %v4779 = vrot.slane %v4765, %v4778
    %v4780 = vcombine.high %v4772, %v4772
    %v4781 = vcombine.high %v4779, %v4779
    %v4782 = vcombine.low %v4758, %v4759
    %v4784 = vunpack.c.l.s4 1983009808
    %v4785 = vunpack.c.0.s8 %v4784
    %v4786 = vlaneseq
    %v4787 = vshrl.u32 %v4786, 7
    %v4788 = vsub.s32 %v4785, %v4787
    %v4789 = vrot.slane %v4782, %v4788
    %v4791 = vunpack.c.l.s4 1983009808
    %v4792 = vunpack.c.0.s8 %v4791
    %v4793 = vlaneseq
    %v4794 = vshrl.u32 %v4793, 7
    %v4795 = vsub.s32 %v4792, %v4794
    %v4796 = vrot.slane %v4772, %v4795
    %v4797 = vcombine.high %v4796, %v4796
    %v4799 = vunpack.c.l.s4 1983009808
    %v4800 = vunpack.c.0.s8 %v4799
    %v4801 = vlaneseq
    %v4802 = vshrl.u32 %v4801, 7
    %v4803 = vsub.s32 %v4800, %v4802
    %v4804 = vrot.slane %v4780, %v4803
    %v4805 = vcombine.high %v4804, %v4804
    %v4807 = vunpack.c.l.s4 1983009808
    %v4808 = vunpack.c.0.s8 %v4807
    %v4809 = vlaneseq
    %v4810 = vshrl.u32 %v4809, 7
    %v4811 = vsub.s32 %v4808, %v4810
    %v4812 = vrot.slane %v4779, %v4811
    %v4813 = vcombine.high %v4812, %v4812
    %v4815 = vunpack.c.l.s4 1983009808
    %v4816 = vunpack.c.0.s8 %v4815
    %v4817 = vlaneseq
    %v4818 = vshrl.u32 %v4817, 7
    %v4819 = vsub.s32 %v4816, %v4818
    %v4820 = vrot.slane %v4781, %v4819
    %v4821 = vcombine.high %v4820, %v4820
    %v4823 = vunpack.c.l.s4 1983009808
    %v4824 = vunpack.c.0.s8 %v4823
    %v4825 = vlaneseq
    %v4826 = vshrl.u32 %v4825, 7
    %v4827 = vsub.s32 %v4824, %v4826
    %v4828 = vrot.slane %v4789, %v4827
    %v4829 = vcombine.high %v4828, %v4828
    %v4840 = vsel %vm952, %v4796, -inf
    %v4841 = vrot.slane %v4840, 4
    %v4842 = vmax.f32 %v4840, %v4841
    %v4843 = vrot.slane %v4842, 2
    %v4844 = vmax.f32 %v4842, %v4843
    %v4845 = vrot.slane %v4844, 1
    %v4846 = vmax.f32 %v4844, %v4845
    %v4847 = vsel %vm2280, %v4797, -inf
    %v4848 = vrot.slane %v4847, 4
    %v4849 = vmax.f32 %v4847, %v4848
    %v4850 = vrot.slane %v4849, 2
    %v4851 = vmax.f32 %v4849, %v4850
    %v4852 = vrot.slane %v4851, 1
    %v4853 = vmax.f32 %v4851, %v4852
    %v4854 = vsel %vm952, %v4804, -inf
    %v4855 = vrot.slane %v4854, 4
    %v4856 = vmax.f32 %v4854, %v4855
    %v4857 = vrot.slane %v4856, 2
    %v4858 = vmax.f32 %v4856, %v4857
    %v4859 = vrot.slane %v4858, 1
    %v4860 = vmax.f32 %v4858, %v4859
    %v4861 = vsel %vm2280, %v4805, -inf
    %v4862 = vrot.slane %v4861, 4
    %v4863 = vmax.f32 %v4861, %v4862
    %v4864 = vrot.slane %v4863, 2
    %v4865 = vmax.f32 %v4863, %v4864
    %v4866 = vrot.slane %v4865, 1
    %v4867 = vmax.f32 %v4865, %v4866
    %v4868 = vsel %vm952, %v4812, -inf
    %v4869 = vrot.slane %v4868, 4
    %v4870 = vmax.f32 %v4868, %v4869
    %v4871 = vrot.slane %v4870, 2
    %v4872 = vmax.f32 %v4870, %v4871
    %v4873 = vrot.slane %v4872, 1
    %v4874 = vmax.f32 %v4872, %v4873
    %v4875 = vsel %vm2280, %v4813, -inf
    %v4876 = vrot.slane %v4875, 4
    %v4877 = vmax.f32 %v4875, %v4876
    %v4878 = vrot.slane %v4877, 2
    %v4879 = vmax.f32 %v4877, %v4878
    %v4880 = vrot.slane %v4879, 1
    %v4881 = vmax.f32 %v4879, %v4880
    %v4882 = vsel %vm952, %v4820, -inf
    %v4883 = vrot.slane %v4882, 4
    %v4884 = vmax.f32 %v4882, %v4883
    %v4885 = vrot.slane %v4884, 2
    %v4886 = vmax.f32 %v4884, %v4885
    %v4887 = vrot.slane %v4886, 1
    %v4888 = vmax.f32 %v4886, %v4887
    %v4889 = vsel %vm2280, %v4821, -inf
    %v4890 = vrot.slane %v4889, 4
    %v4891 = vmax.f32 %v4889, %v4890
    %v4892 = vrot.slane %v4891, 2
    %v4893 = vmax.f32 %v4891, %v4892
    %v4894 = vrot.slane %v4893, 1
    %v4895 = vmax.f32 %v4893, %v4894
    %v4896 = vsel %vm952, %v4828, -inf
    %v4897 = vrot.slane %v4896, 4
    %v4898 = vmax.f32 %v4896, %v4897
    %v4899 = vrot.slane %v4898, 2
    %v4900 = vmax.f32 %v4898, %v4899
    %v4901 = vrot.slane %v4900, 1
    %v4902 = vmax.f32 %v4900, %v4901
    %v4903 = vsel %vm2280, %v4829, -inf
    %v4904 = vrot.slane %v4903, 4
    %v4905 = vmax.f32 %v4903, %v4904
    %v4906 = vrot.slane %v4905, 2
    %v4907 = vmax.f32 %v4905, %v4906
    %v4908 = vrot.slane %v4907, 1
    %v4909 = vmax.f32 %v4907, %v4908
    %4920 = vrot.lane.b32.xlu0 %v4846, 127
    %v4921 = vpop.permute.xlu0 %4920
    %4922 = vrot.lane.b32.xlu0 %v4853, 127
    %v4923 = vpop.permute.xlu0 %4922
    %4924 = vrot.lane.b32.xlu0 %v4860, 127
    %v4925 = vpop.permute.xlu0 %4924
    %4926 = vrot.lane.b32.xlu0 %v4867, 127
    %v4927 = vpop.permute.xlu0 %4926
    %4928 = vrot.lane.b32.xlu0 %v4874, 127
    %v4929 = vpop.permute.xlu0 %4928
    %4930 = vrot.lane.b32.xlu0 %v4881, 127
    %v4931 = vpop.permute.xlu0 %4930
    %4932 = vrot.lane.b32.xlu0 %v4888, 127
    %v4933 = vpop.permute.xlu0 %4932
    %4934 = vrot.lane.b32.xlu0 %v4895, 127
    %v4935 = vpop.permute.xlu0 %4934
    %4936 = vrot.lane.b32.xlu0 %v4902, 127
    %v4937 = vpop.permute.xlu0 %4936
    %4938 = vrot.lane.b32.xlu0 %v4909, 127
    %v4939 = vpop.permute.xlu0 %4938
    %v4940 = vsel %vm1234, %v4921, %v4923
    %v4941 = vsel %vm1234, %v4925, %v4927
    %v4942 = vsel %vm1234, %v4929, %v4931
    %v4943 = vsel %vm1234, %v4933, %v4935
    %v4944 = vsel %vm1234, %v4937, %v4939
    %v4955 = vmax.f32 %v4846, %v4940
    %v4956 = vmax.f32 %v4853, %v4923
    %v4957 = vmax.f32 %v4860, %v4941
    %v4958 = vmax.f32 %v4867, %v4927
    %v4959 = vmax.f32 %v4874, %v4942
    %v4960 = vmax.f32 %v4881, %v4931
    %v4961 = vmax.f32 %v4888, %v4943
    %v4962 = vmax.f32 %v4895, %v4935
    %v4963 = vmax.f32 %v4902, %v4944
    %v4964 = vmax.f32 %v4909, %v4939
    %v4966 = vsel %vm2480, %v4958, 0
    %4968 = vmatprep.subr.mxu0 %v2441
    %4969 = vmatpush1.msra.mxu0 %v2440
    %4970 = vmatprep.subr.mxu0 %v2443
    %4971 = vmatpush1.msra.mxu0 %v2442
    %4972 = vmatprep.subr.mxu0 %v2445
    %4973 = vmatpush1.msra.mxu0 %v2444
    %4974 = vmatprep.subr.mxu0 %v2447
    %4975 = vmatpush1.msra.mxu0 %v2446
    %4976 = vmatprep.subr.mxu0 %v2449
    %4977 = vmatpush1.msra.mxu0 %v2448
    %4978 = vmatprep.subr.mxu0 %v2451
    %4979 = vmatpush1.msra.mxu0 %v2450
    %4980 = vmatprep.subr.mxu0 %v2453
    %4981 = vmatpush1.msra.mxu0 %v2452
    %4982 = vmatprep.subr.mxu0 %v2455
    %4983 = vmatpush1.msra.mxu0 %v2454
    %4984 = vmatprep.subr.mxu0 %v2457
    %4985 = vmatpush1.msra.mxu0 %v2456
    %4986 = vmatprep.subr.mxu0 %v2459
    %4987 = vmatpush1.msra.mxu0 %v2458
    %4988 = vmatprep.subr.mxu0 %v2461
    %4989 = vmatpush1.msra.mxu0 %v2460
    %4990 = vmatprep.subr.mxu0 %v2463
    %4991 = vmatpush1.msra.mxu0 %v2462
    %4992 = vmatprep.subr.mxu0 %v2465
    %4993 = vmatpush1.msra.mxu0 %v2464
    %4994 = vmatprep.subr.mxu0 %v2467
    %4995 = vmatpush1.msra.mxu0 %v2466
    %4996 = vmatprep.subr.mxu0 %v2469
    %4997 = vmatpush1.msra.mxu0 %v2468
    %4998 = vmatprep.subr.mxu0 %v2471
    %4999 = vmatpush1.msra.mxu0 %v2470
    %5000 = vmatprep.subr.mxu0 %v2473
    %5001 = vmatpush1.msra.mxu0 %v2472
    %5002 = vmatprep.subr.mxu0 %v2475
    %5003 = vmatpush1.msra.mxu0 %v2474
    %5004 = vmatprep.subr.mxu0 %v2477
    %5005 = vmatpush1.msra.mxu0 %v2476
    %5006 = vmatprep.subr.mxu0 %v2488
    %5007 = vmatpush1.msra.mxu0 %v2485
    %5008 = vmatprep.subr.mxu0 0.0
    %5009 = vmatpush1.msra.mxu0 0.0
    %5010 = vmatprep.subr.mxu0 0.0
    %5011 = vmatpush1.msra.mxu0 0.0
    %5012 = vmatprep.subr.mxu0 0.0
    %5013 = vmatpush1.msra.mxu0 0.0
    %5014 = vmatprep.subr.mxu0 0.0
    %5015 = vmatpush1.msra.mxu0 0.0
    %5016 = vmatprep.subr.mxu0 0.0
    %5017 = vmatpush1.msra.mxu0 0.0
    %5018 = vmatprep.subr.mxu0 0.0
    %5019 = vmatpush1.msra.mxu0 0.0
    %5020 = vmatprep.subr.mxu0 0.0
    %5021 = vmatpush1.msra.mxu0 0.0
    %5022 = vmatprep.subr.mxu0 0.0
    %5023 = vmatpush1.msra.mxu0 0.0
    %5024 = vmatprep.subr.mxu0 0.0
    %5025 = vmatpush1.msra.mxu0 0.0
    %5026 = vmatprep.subr.mxu0 0.0
    %5027 = vmatpush1.msra.mxu0 0.0
    %5028 = vmatprep.subr.mxu0 0.0
    %5029 = vmatpush1.msra.mxu0 0.0
    %5030 = vmatprep.subr.mxu0 0.0
    %5031 = vmatpush1.msra.mxu0 0.0
    %5032 = vmatprep.mubr.f32.mxu0 %v4966
    %5033 = vmatmul.mubr.f32.gmra.mrb[0].mxu0 %v4957
    %v5034 = vpop.f32.mrb[0].mxu0
    %v5035 = vadd.f32 0.0, %v5034
    %v5036 = vpop.f32.mrb[0].mxu0
    %v5037 = vadd.f32 0.0, %v5036
    %5038 = vdwg.mxu0
    %v5040 = vsel %vm2480, %v4956, 0
    %5042 = vmatprep.subr.mxu0 %v2400
    %5043 = vmatpush1.msra.mxu0 %v2399
    %5044 = vmatprep.subr.mxu0 %v2402
    %5045 = vmatpush1.msra.mxu0 %v2401
    %5046 = vmatprep.subr.mxu0 %v2404
    %5047 = vmatpush1.msra.mxu0 %v2403
    %5048 = vmatprep.subr.mxu0 %v2406
    %5049 = vmatpush1.msra.mxu0 %v2405
    %5050 = vmatprep.subr.mxu0 %v2408
    %5051 = vmatpush1.msra.mxu0 %v2407
    %5052 = vmatprep.subr.mxu0 %v2410
    %5053 = vmatpush1.msra.mxu0 %v2409
    %5054 = vmatprep.subr.mxu0 %v2412
    %5055 = vmatpush1.msra.mxu0 %v2411
    %5056 = vmatprep.subr.mxu0 %v2414
    %5057 = vmatpush1.msra.mxu0 %v2413
    %5058 = vmatprep.subr.mxu0 %v2416
    %5059 = vmatpush1.msra.mxu0 %v2415
    %5060 = vmatprep.subr.mxu0 %v2418
    %5061 = vmatpush1.msra.mxu0 %v2417
    %5062 = vmatprep.subr.mxu0 %v2420
    %5063 = vmatpush1.msra.mxu0 %v2419
    %5064 = vmatprep.subr.mxu0 %v2422
    %5065 = vmatpush1.msra.mxu0 %v2421
    %5066 = vmatprep.subr.mxu0 %v2424
    %5067 = vmatpush1.msra.mxu0 %v2423
    %5068 = vmatprep.subr.mxu0 %v2426
    %5069 = vmatpush1.msra.mxu0 %v2425
    %5070 = vmatprep.subr.mxu0 %v2428
    %5071 = vmatpush1.msra.mxu0 %v2427
    %5072 = vmatprep.subr.mxu0 %v2430
    %5073 = vmatpush1.msra.mxu0 %v2429
    %5074 = vmatprep.subr.mxu0 %v2432
    %5075 = vmatpush1.msra.mxu0 %v2431
    %5076 = vmatprep.subr.mxu0 %v2434
    %5077 = vmatpush1.msra.mxu0 %v2433
    %5078 = vmatprep.subr.mxu0 %v2436
    %5079 = vmatpush1.msra.mxu0 %v2435
    %5080 = vmatprep.subr.mxu0 %v2568
    %5081 = vmatpush1.msra.mxu0 %v2565
    %5082 = vmatprep.subr.mxu0 0.0
    %5083 = vmatpush1.msra.mxu0 0.0
    %5084 = vmatprep.subr.mxu0 0.0
    %5085 = vmatpush1.msra.mxu0 0.0
    %5086 = vmatprep.subr.mxu0 0.0
    %5087 = vmatpush1.msra.mxu0 0.0
    %5088 = vmatprep.subr.mxu0 0.0
    %5089 = vmatpush1.msra.mxu0 0.0
    %5090 = vmatprep.subr.mxu0 0.0
    %5091 = vmatpush1.msra.mxu0 0.0
    %5092 = vmatprep.subr.mxu0 0.0
    %5093 = vmatpush1.msra.mxu0 0.0
    %5094 = vmatprep.subr.mxu0 0.0
    %5095 = vmatpush1.msra.mxu0 0.0
    %5096 = vmatprep.subr.mxu0 0.0
    %5097 = vmatpush1.msra.mxu0 0.0
    %5098 = vmatprep.subr.mxu0 0.0
    %5099 = vmatpush1.msra.mxu0 0.0
    %5100 = vmatprep.subr.mxu0 0.0
    %5101 = vmatpush1.msra.mxu0 0.0
    %5102 = vmatprep.subr.mxu0 0.0
    %5103 = vmatpush1.msra.mxu0 0.0
    %5104 = vmatprep.subr.mxu0 0.0
    %5105 = vmatpush1.msra.mxu0 0.0
    %5106 = vmatprep.mubr.f32.mxu0 %v5040
    %5107 = vmatmul.mubr.f32.gmra.mrb[0].mxu0 %v4955
    %v5108 = vpop.f32.mrb[0].mxu0
    %v5109 = vadd.f32 %v5035, %v5108
    %v5110 = vpop.f32.mrb[0].mxu0
    %v5111 = vadd.f32 %v5037, %v5110
    %5112 = vdwg.mxu0
    %v5114 = vsel %vm2480, %v4960, 0
    %5116 = vmatprep.subr.mxu0 %v2643
    %5117 = vmatpush1.msra.mxu0 %v2642
    %5118 = vmatprep.subr.mxu0 %v2645
    %5119 = vmatpush1.msra.mxu0 %v2644
    %5120 = vmatprep.subr.mxu0 %v2647
    %5121 = vmatpush1.msra.mxu0 %v2646
    %5122 = vmatprep.subr.mxu0 %v2649
    %5123 = vmatpush1.msra.mxu0 %v2648
    %5124 = vmatprep.subr.mxu0 %v2651
    %5125 = vmatpush1.msra.mxu0 %v2650
    %5126 = vmatprep.subr.mxu0 %v2653
    %5127 = vmatpush1.msra.mxu0 %v2652
    %5128 = vmatprep.subr.mxu0 %v2655
    %5129 = vmatpush1.msra.mxu0 %v2654
    %5130 = vmatprep.subr.mxu0 %v2657
    %5131 = vmatpush1.msra.mxu0 %v2656
    %5132 = vmatprep.subr.mxu0 %v2659
    %5133 = vmatpush1.msra.mxu0 %v2658
    %5134 = vmatprep.subr.mxu0 %v2661
    %5135 = vmatpush1.msra.mxu0 %v2660
    %5136 = vmatprep.subr.mxu0 %v2663
    %5137 = vmatpush1.msra.mxu0 %v2662
    %5138 = vmatprep.subr.mxu0 %v2665
    %5139 = vmatpush1.msra.mxu0 %v2664
    %5140 = vmatprep.subr.mxu0 %v2667
    %5141 = vmatpush1.msra.mxu0 %v2666
    %5142 = vmatprep.subr.mxu0 %v2669
    %5143 = vmatpush1.msra.mxu0 %v2668
    %5144 = vmatprep.subr.mxu0 %v2671
    %5145 = vmatpush1.msra.mxu0 %v2670
    %5146 = vmatprep.subr.mxu0 %v2673
    %5147 = vmatpush1.msra.mxu0 %v2672
    %5148 = vmatprep.subr.mxu0 %v2675
    %5149 = vmatpush1.msra.mxu0 %v2674
    %5150 = vmatprep.subr.mxu0 %v2677
    %5151 = vmatpush1.msra.mxu0 %v2676
    %5152 = vmatprep.subr.mxu0 %v2679
    %5153 = vmatpush1.msra.mxu0 %v2678
    %5154 = vmatprep.subr.mxu0 %v2689
    %5155 = vmatpush1.msra.mxu0 %v2686
    %5156 = vmatprep.subr.mxu0 0.0
    %5157 = vmatpush1.msra.mxu0 0.0
    %5158 = vmatprep.subr.mxu0 0.0
    %5159 = vmatpush1.msra.mxu0 0.0
    %5160 = vmatprep.subr.mxu0 0.0
    %5161 = vmatpush1.msra.mxu0 0.0
    %5162 = vmatprep.subr.mxu0 0.0
    %5163 = vmatpush1.msra.mxu0 0.0
    %5164 = vmatprep.subr.mxu0 0.0
    %5165 = vmatpush1.msra.mxu0 0.0
    %5166 = vmatprep.subr.mxu0 0.0
    %5167 = vmatpush1.msra.mxu0 0.0
    %5168 = vmatprep.subr.mxu0 0.0
    %5169 = vmatpush1.msra.mxu0 0.0
    %5170 = vmatprep.subr.mxu0 0.0
    %5171 = vmatpush1.msra.mxu0 0.0
    %5172 = vmatprep.subr.mxu0 0.0
    %5173 = vmatpush1.msra.mxu0 0.0
    %5174 = vmatprep.subr.mxu0 0.0
    %5175 = vmatpush1.msra.mxu0 0.0
    %5176 = vmatprep.subr.mxu0 0.0
    %5177 = vmatpush1.msra.mxu0 0.0
    %5178 = vmatprep.subr.mxu0 0.0
    %5179 = vmatpush1.msra.mxu0 0.0
    %5180 = vmatprep.mubr.f32.mxu0 %v5114
    %5181 = vmatmul.mubr.f32.gmra.mrb[0].mxu0 %v4959
    %v5182 = vpop.f32.mrb[0].mxu0
    %v5183 = vadd.f32 0.0, %v5182
    %v5184 = vpop.f32.mrb[0].mxu0
    %v5185 = vadd.f32 0.0, %v5184
    %5186 = vdwg.mxu0
    %v5187 = vadd.f32 %v5109, %v5183
    %v5188 = vadd.f32 %v5111, %v5185
    %v5190 = vsel %vm2480, %v4962, 0
    %5192 = vmatprep.subr.mxu0 %v2766
    %5193 = vmatpush1.msra.mxu0 %v2765
    %5194 = vmatprep.subr.mxu0 %v2768
    %5195 = vmatpush1.msra.mxu0 %v2767
    %5196 = vmatprep.subr.mxu0 %v2770
    %5197 = vmatpush1.msra.mxu0 %v2769
    %5198 = vmatprep.subr.mxu0 %v2772
    %5199 = vmatpush1.msra.mxu0 %v2771
    %5200 = vmatprep.subr.mxu0 %v2774
    %5201 = vmatpush1.msra.mxu0 %v2773
    %5202 = vmatprep.subr.mxu0 %v2776
    %5203 = vmatpush1.msra.mxu0 %v2775
    %5204 = vmatprep.subr.mxu0 %v2778
    %5205 = vmatpush1.msra.mxu0 %v2777
    %5206 = vmatprep.subr.mxu0 %v2780
    %5207 = vmatpush1.msra.mxu0 %v2779
    %5208 = vmatprep.subr.mxu0 %v2782
    %5209 = vmatpush1.msra.mxu0 %v2781
    %5210 = vmatprep.subr.mxu0 %v2784
    %5211 = vmatpush1.msra.mxu0 %v2783
    %5212 = vmatprep.subr.mxu0 %v2786
    %5213 = vmatpush1.msra.mxu0 %v2785
    %5214 = vmatprep.subr.mxu0 %v2788
    %5215 = vmatpush1.msra.mxu0 %v2787
    %5216 = vmatprep.subr.mxu0 %v2790
    %5217 = vmatpush1.msra.mxu0 %v2789
    %5218 = vmatprep.subr.mxu0 %v2792
    %5219 = vmatpush1.msra.mxu0 %v2791
    %5220 = vmatprep.subr.mxu0 %v2794
    %5221 = vmatpush1.msra.mxu0 %v2793
    %5222 = vmatprep.subr.mxu0 %v2796
    %5223 = vmatpush1.msra.mxu0 %v2795
    %5224 = vmatprep.subr.mxu0 %v2798
    %5225 = vmatpush1.msra.mxu0 %v2797
    %5226 = vmatprep.subr.mxu0 %v2800
    %5227 = vmatpush1.msra.mxu0 %v2799
    %5228 = vmatprep.subr.mxu0 %v2802
    %5229 = vmatpush1.msra.mxu0 %v2801
    %5230 = vmatprep.subr.mxu0 %v2812
    %5231 = vmatpush1.msra.mxu0 %v2809
    %5232 = vmatprep.subr.mxu0 0.0
    %5233 = vmatpush1.msra.mxu0 0.0
    %5234 = vmatprep.subr.mxu0 0.0
    %5235 = vmatpush1.msra.mxu0 0.0
    %5236 = vmatprep.subr.mxu0 0.0
    %5237 = vmatpush1.msra.mxu0 0.0
    %5238 = vmatprep.subr.mxu0 0.0
    %5239 = vmatpush1.msra.mxu0 0.0
    %5240 = vmatprep.subr.mxu0 0.0
    %5241 = vmatpush1.msra.mxu0 0.0
    %5242 = vmatprep.subr.mxu0 0.0
    %5243 = vmatpush1.msra.mxu0 0.0
    %5244 = vmatprep.subr.mxu0 0.0
    %5245 = vmatpush1.msra.mxu0 0.0
    %5246 = vmatprep.subr.mxu0 0.0
    %5247 = vmatpush1.msra.mxu0 0.0
    %5248 = vmatprep.subr.mxu0 0.0
    %5249 = vmatpush1.msra.mxu0 0.0
    %5250 = vmatprep.subr.mxu0 0.0
    %5251 = vmatpush1.msra.mxu0 0.0
    %5252 = vmatprep.subr.mxu0 0.0
    %5253 = vmatpush1.msra.mxu0 0.0
    %5254 = vmatprep.subr.mxu0 0.0
    %5255 = vmatpush1.msra.mxu0 0.0
    %5256 = vmatprep.mubr.f32.mxu0 %v5190
    %5257 = vmatmul.mubr.f32.gmra.mrb[0].mxu0 %v4961
    %v5258 = vpop.f32.mrb[0].mxu0
    %v5259 = vadd.f32 0.0, %v5258
    %v5260 = vpop.f32.mrb[0].mxu0
    %v5261 = vadd.f32 0.0, %v5260
    %5262 = vdwg.mxu0
    %v5263 = vadd.f32 %v5187, %v5259
    %v5264 = vadd.f32 %v5188, %v5261
    %v5266 = vsel %vm2480, %v4964, 0
    %5268 = vmatprep.subr.mxu0 %v2889
    %5269 = vmatpush1.msra.mxu0 %v2888
    %5270 = vmatprep.subr.mxu0 %v2891
    %5271 = vmatpush1.msra.mxu0 %v2890
    %5272 = vmatprep.subr.mxu0 %v2893
    %5273 = vmatpush1.msra.mxu0 %v2892
    %5274 = vmatprep.subr.mxu0 %v2895
    %5275 = vmatpush1.msra.mxu0 %v2894
    %5276 = vmatprep.subr.mxu0 %v2897
    %5277 = vmatpush1.msra.mxu0 %v2896
    %5278 = vmatprep.subr.mxu0 %v2899
    %5279 = vmatpush1.msra.mxu0 %v2898
    %5280 = vmatprep.subr.mxu0 %v2901
    %5281 = vmatpush1.msra.mxu0 %v2900
    %5282 = vmatprep.subr.mxu0 %v2903
    %5283 = vmatpush1.msra.mxu0 %v2902
    %5284 = vmatprep.subr.mxu0 %v2905
    %5285 = vmatpush1.msra.mxu0 %v2904
    %5286 = vmatprep.subr.mxu0 %v2907
    %5287 = vmatpush1.msra.mxu0 %v2906
    %5288 = vmatprep.subr.mxu0 %v2909
    %5289 = vmatpush1.msra.mxu0 %v2908
    %5290 = vmatprep.subr.mxu0 %v2911
    %5291 = vmatpush1.msra.mxu0 %v2910
    %5292 = vmatprep.subr.mxu0 %v2913
    %5293 = vmatpush1.msra.mxu0 %v2912
    %5294 = vmatprep.subr.mxu0 %v2915
    %5295 = vmatpush1.msra.mxu0 %v2914
    %5296 = vmatprep.subr.mxu0 %v2917
    %5297 = vmatpush1.msra.mxu0 %v2916
    %5298 = vmatprep.subr.mxu0 %v2919
    %5299 = vmatpush1.msra.mxu0 %v2918
    %5300 = vmatprep.subr.mxu0 %v2921
    %5301 = vmatpush1.msra.mxu0 %v2920
    %5302 = vmatprep.subr.mxu0 %v2923
    %5303 = vmatpush1.msra.mxu0 %v2922
    %5304 = vmatprep.subr.mxu0 %v2925
    %5305 = vmatpush1.msra.mxu0 %v2924
    %5306 = vmatprep.subr.mxu0 %v2935
    %5307 = vmatpush1.msra.mxu0 %v2932
    %5308 = vmatprep.subr.mxu0 0.0
    %5309 = vmatpush1.msra.mxu0 0.0
    %5310 = vmatprep.subr.mxu0 0.0
    %5311 = vmatpush1.msra.mxu0 0.0
    %5312 = vmatprep.subr.mxu0 0.0
    %5313 = vmatpush1.msra.mxu0 0.0
    %5314 = vmatprep.subr.mxu0 0.0
    %5315 = vmatpush1.msra.mxu0 0.0
    %5316 = vmatprep.subr.mxu0 0.0
    %5317 = vmatpush1.msra.mxu0 0.0
    %5318 = vmatprep.subr.mxu0 0.0
    %5319 = vmatpush1.msra.mxu0 0.0
    %5320 = vmatprep.subr.mxu0 0.0
    %5321 = vmatpush1.msra.mxu0 0.0
    %5322 = vmatprep.subr.mxu0 0.0
    %5323 = vmatpush1.msra.mxu0 0.0
    %5324 = vmatprep.subr.mxu0 0.0
    %5325 = vmatpush1.msra.mxu0 0.0
    %5326 = vmatprep.subr.mxu0 0.0
    %5327 = vmatpush1.msra.mxu0 0.0
    %5328 = vmatprep.subr.mxu0 0.0
    %5329 = vmatpush1.msra.mxu0 0.0
    %5330 = vmatprep.subr.mxu0 0.0
    %5331 = vmatpush1.msra.mxu0 0.0
    %5332 = vmatprep.mubr.f32.mxu0 %v5266
    %5333 = vmatmul.mubr.f32.gmra.mrb[0].mxu0 %v4963
    %v5334 = vpop.f32.mrb[0].mxu0
    %v5335 = vadd.f32 0.0, %v5334
    %v5336 = vpop.f32.mrb[0].mxu0
    %v5337 = vadd.f32 0.0, %v5336
    %5338 = vdwg.mxu0
    %v5339 = vadd.f32 %v5263, %v5335
    %v5340 = vadd.f32 %v5264, %v5337
    %v5343 = vrot.slane %v5339, 7
    %v5344 = vrot.slane %v5340, 7
    %vm5347 = vcmask 1040384
    %v5348 = vsel %vm5347, %v3008, %v5343
    %v5349 = vsel %vm5347, %v3009, %v5344
    %v5350 = vld [vmem:[%s6] sm:$0x3]
    %v5352 = vlaneseq
    %v5353 = vshrl.u32 %v5352, 7
    %v5354 = vsub.s32 0, %v5353
    %v5355 = vrot.slane %v5350, %v5354
    %v5356 = vlaneseq
    %v5357 = vshrl.u32 %v5356, 7
    %v5358 = vsub.s32 1, %v5357
    %v5359 = vrot.slane %v5350, %v5358
    %v5362 = vadd.f32 %v5348, %v5355
    %v5363 = vadd.f32 %v5349, %v5359
    %v5364 = vmax.f32 %v5362, 0.0
    %v5365 = vmax.f32 %v5363, 0.0
    %v5366 = vld [vmem:[%s7] sm:$0xff]
    %v5367 = vld [vmem:[%s7 + $0x8] sm:$0xff]
    %v5368 = vld [vmem:[%s7 + $0x10] sm:$0xff]
    %v5369 = vld [vmem:[%s7 + $0x18] sm:$0xff]
    %v5370 = vld [vmem:[%s7 + $0x20] sm:$0xff]
    %v5371 = vld [vmem:[%s7 + $0x28] sm:$0xff]
    %v5372 = vld [vmem:[%s7 + $0x30] sm:$0xff]
    %v5373 = vld [vmem:[%s7 + $0x38] sm:$0xff]
    %v5374 = vld [vmem:[%s7 + $0x40] sm:$0xff]
    %v5375 = vld [vmem:[%s7 + $0x48] sm:$0xff]
    %v5376 = vld [vmem:[%s7 + $0x50] sm:$0xff]
    %v5377 = vld [vmem:[%s7 + $0x58] sm:$0xff]
    %v5378 = vld [vmem:[%s7 + $0x60] sm:$0xff]
    %v5379 = vld [vmem:[%s7 + $0x68] sm:$0xff]
    %v5380 = vld [vmem:[%s7 + $0x70] sm:$0xff]
    %v5381 = vld [vmem:[%s7 + $0x78] sm:$0xff]
    %v5382 = vld [vmem:[%s7 + $0x80] sm:$0xff]
    %v5383 = vld [vmem:[%s7 + $0x88] sm:$0xff]
    %v5384 = vld [vmem:[%s7 + $0x90] sm:$0xff]
    %v5385 = vld [vmem:[%s7 + $0x98] sm:$0xff]
    %v5386 = vld [vmem:[%s7 + $0xa0] sm:$0xff]
    %v5387 = vld [vmem:[%s7 + $0xa8] sm:$0xff]
    %v5388 = vld [vmem:[%s7 + $0xb0] sm:$0xff]
    %v5389 = vld [vmem:[%s7 + $0xb8] sm:$0xff]
    %v5390 = vld [vmem:[%s7 + $0xc0] sm:$0xff]
    %v5391 = vld [vmem:[%s7 + $0xc8] sm:$0xff]
    %v5392 = vld [vmem:[%s7 + $0xd0] sm:$0xff]
    %v5393 = vld [vmem:[%s7 + $0xd8] sm:$0xff]
    %v5394 = vld [vmem:[%s7 + $0xe0] sm:$0xff]
    %v5395 = vld [vmem:[%s7 + $0xe8] sm:$0xff]
    %v5396 = vld [vmem:[%s7 + $0xf0] sm:$0xff]
    %v5397 = vld [vmem:[%s7 + $0xf8] sm:$0xff]
    %v5398 = vld [vmem:[%s8] sm:$0x1]
    %v5400 = vlaneseq
    %v5401 = vshrl.u32 %v5400, 7
    %v5402 = vsub.s32 0, %v5401
    %v5403 = vrot.slane %v5398, %v5402
    %5405 = vmatprep.subr.mxu0 0.0
    %5406 = vmatpush1.msra.mxu0 %v5366
    %5407 = vmatprep.subr.mxu0 0.0
    %5408 = vmatpush1.msra.mxu0 %v5367
    %5409 = vmatprep.subr.mxu0 0.0
    %5410 = vmatpush1.msra.mxu0 %v5368
    %5411 = vmatprep.subr.mxu0 0.0
    %5412 = vmatpush1.msra.mxu0 %v5369
    %5413 = vmatprep.subr.mxu0 0.0
    %5414 = vmatpush1.msra.mxu0 %v5370
    %5415 = vmatprep.subr.mxu0 0.0
    %5416 = vmatpush1.msra.mxu0 %v5371
    %5417 = vmatprep.subr.mxu0 0.0
    %5418 = vmatpush1.msra.mxu0 %v5372
    %5419 = vmatprep.subr.mxu0 0.0
    %5420 = vmatpush1.msra.mxu0 %v5373
    %5421 = vmatprep.subr.mxu0 0.0
    %5422 = vmatpush1.msra.mxu0 %v5374
    %5423 = vmatprep.subr.mxu0 0.0
    %5424 = vmatpush1.msra.mxu0 %v5375
    %5425 = vmatprep.subr.mxu0 0.0
    %5426 = vmatpush1.msra.mxu0 %v5376
    %5427 = vmatprep.subr.mxu0 0.0
    %5428 = vmatpush1.msra.mxu0 %v5377
    %5429 = vmatprep.subr.mxu0 0.0
    %5430 = vmatpush1.msra.mxu0 %v5378
    %5431 = vmatprep.subr.mxu0 0.0
    %5432 = vmatpush1.msra.mxu0 %v5379
    %5433 = vmatprep.subr.mxu0 0.0
    %5434 = vmatpush1.msra.mxu0 %v5380
    %5435 = vmatprep.subr.mxu0 0.0
    %5436 = vmatpush1.msra.mxu0 %v5381
    %5437 = vmatprep.subr.mxu0 0.0
    %5438 = vmatpush1.msra.mxu0 %v5382
    %5439 = vmatprep.subr.mxu0 0.0
    %5440 = vmatpush1.msra.mxu0 %v5383
    %5441 = vmatprep.subr.mxu0 0.0
    %5442 = vmatpush1.msra.mxu0 %v5384
    %5443 = vmatprep.subr.mxu0 0.0
    %5444 = vmatpush1.msra.mxu0 %v5385
    %5445 = vmatprep.subr.mxu0 0.0
    %5446 = vmatpush1.msra.mxu0 %v5386
    %5447 = vmatprep.subr.mxu0 0.0
    %5448 = vmatpush1.msra.mxu0 %v5387
    %5449 = vmatprep.subr.mxu0 0.0
    %5450 = vmatpush1.msra.mxu0 %v5388
    %5451 = vmatprep.subr.mxu0 0.0
    %5452 = vmatpush1.msra.mxu0 %v5389
    %5453 = vmatprep.subr.mxu0 0.0
    %5454 = vmatpush1.msra.mxu0 %v5390
    %5455 = vmatprep.subr.mxu0 0.0
    %5456 = vmatpush1.msra.mxu0 %v5391
    %5457 = vmatprep.subr.mxu0 0.0
    %5458 = vmatpush1.msra.mxu0 %v5392
    %5459 = vmatprep.subr.mxu0 0.0
    %5460 = vmatpush1.msra.mxu0 %v5393
    %5461 = vmatprep.subr.mxu0 0.0
    %5462 = vmatpush1.msra.mxu0 %v5394
    %5463 = vmatprep.subr.mxu0 0.0
    %5464 = vmatpush1.msra.mxu0 %v5395
    %5465 = vmatprep.subr.mxu0 0.0
    %5466 = vmatpush1.msra.mxu0 %v5396
    %5467 = vmatprep.subr.mxu0 0.0
    %5468 = vmatpush1.msra.mxu0 %v5397
    %5469 = vmatprep.mubr.f32.mxu0 %v5365
    %5470 = vmatmul.mubr.f32.gmra.mrb[0].mxu0 %v5364
    %v5471 = vpop.f32.mrb[0].mxu0
    %v5472 = vadd.f32 %v5403, %v5471
    %v5473 = vpop.f32.mrb[0].mxu0
    %5474 = vdwg.mxu0
    %v5475 = vmax.f32 %v5472, 0.0
    %v5476 = vld [vmem:[%s9] sm:$0xff]
    %v5477 = vld [vmem:[%s9 + $0x8] sm:$0xff]
    %v5478 = vld [vmem:[%s9 + $0x10] sm:$0xff]
    %v5479 = vld [vmem:[%s9 + $0x18] sm:$0xff]
    %v5480 = vld [vmem:[%s9 + $0x20] sm:$0xff]
    %v5481 = vld [vmem:[%s9 + $0x28] sm:$0xff]
    %v5482 = vld [vmem:[%s9 + $0x30] sm:$0xff]
    %v5483 = vld [vmem:[%s9 + $0x38] sm:$0xff]
    %v5484 = vld [vmem:[%s10] sm:$0x1]
    %v5486 = vlaneseq
    %v5487 = vshrl.u32 %v5486, 7
    %v5488 = vsub.s32 0, %v5487
    %v5489 = vrot.slane %v5484, %v5488
    %vm5491 = vcmask 523264
    %v5493 = vsel %vm5491, %v5475, 0
    %5495 = vmatprep.subr.mxu0 0.0
    %5496 = vmatpush1.msra.mxu0 %v5476
    %5497 = vmatprep.subr.mxu0 0.0
    %5498 = vmatpush1.msra.mxu0 %v5477
    %5499 = vmatprep.subr.mxu0 0.0
    %5500 = vmatpush1.msra.mxu0 %v5478
    %5501 = vmatprep.subr.mxu0 0.0
    %5502 = vmatpush1.msra.mxu0 %v5479
    %5503 = vmatprep.subr.mxu0 0.0
    %5504 = vmatpush1.msra.mxu0 %v5480
    %5505 = vmatprep.subr.mxu0 0.0
    %5506 = vmatpush1.msra.mxu0 %v5481
    %5507 = vmatprep.subr.mxu0 0.0
    %5508 = vmatpush1.msra.mxu0 %v5482
    %5509 = vmatprep.subr.mxu0 0.0
    %5510 = vmatpush1.msra.mxu0 %v5483
    %5511 = vmatprep.subr.mxu0 0.0
    %5512 = vmatpush1.msra.mxu0 0.0
    %5513 = vmatprep.subr.mxu0 0.0
    %5514 = vmatpush1.msra.mxu0 0.0
    %5515 = vmatprep.subr.mxu0 0.0
    %5516 = vmatpush1.msra.mxu0 0.0
    %5517 = vmatprep.subr.mxu0 0.0
    %5518 = vmatpush1.msra.mxu0 0.0
    %5519 = vmatprep.subr.mxu0 0.0
    %5520 = vmatpush1.msra.mxu0 0.0
    %5521 = vmatprep.subr.mxu0 0.0
    %5522 = vmatpush1.msra.mxu0 0.0
    %5523 = vmatprep.subr.mxu0 0.0
    %5524 = vmatpush1.msra.mxu0 0.0
    %5525 = vmatprep.subr.mxu0 0.0
    %5526 = vmatpush1.msra.mxu0 0.0
    %5527 = vmatprep.subr.mxu0 0.0
    %5528 = vmatpush1.msra.mxu0 0.0
    %5529 = vmatprep.subr.mxu0 0.0
    %5530 = vmatpush1.msra.mxu0 0.0
    %5531 = vmatprep.subr.mxu0 0.0
    %5532 = vmatpush1.msra.mxu0 0.0
    %5533 = vmatprep.subr.mxu0 0.0
    %5534 = vmatpush1.msra.mxu0 0.0
    %5535 = vmatprep.subr.mxu0 0.0
    %5536 = vmatpush1.msra.mxu0 0.0
    %5537 = vmatprep.subr.mxu0 0.0
    %5538 = vmatpush1.msra.mxu0 0.0
    %5539 = vmatprep.subr.mxu0 0.0
    %5540 = vmatpush1.msra.mxu0 0.0
    %5541 = vmatprep.subr.mxu0 0.0
    %5542 = vmatpush1.msra.mxu0 0.0
    %5543 = vmatprep.subr.mxu0 0.0
    %5544 = vmatpush1.msra.mxu0 0.0
    %5545 = vmatprep.subr.mxu0 0.0
    %5546 = vmatpush1.msra.mxu0 0.0
    %5547 = vmatprep.subr.mxu0 0.0
    %5548 = vmatpush1.msra.mxu0 0.0
    %5549 = vmatprep.subr.mxu0 0.0
    %5550 = vmatpush1.msra.mxu0 0.0
    %5551 = vmatprep.subr.mxu0 0.0
    %5552 = vmatpush1.msra.mxu0 0.0
    %5553 = vmatprep.subr.mxu0 0.0
    %5554 = vmatpush1.msra.mxu0 0.0
    %5555 = vmatprep.subr.mxu0 0.0
    %5556 = vmatpush1.msra.mxu0 0.0
    %5557 = vmatprep.subr.mxu0 0.0
    %5558 = vmatpush1.msra.mxu0 0.0
    %5559 = vmatprep.mubr.f32.mxu0 0.0
    %5560 = vmatmul.mubr.f32.gmra.mrb[0].mxu0 %v5493
    %v5561 = vpop.f32.mrb[0].mxu0
    %v5562 = vadd.f32 %v5489, %v5561
    %v5563 = vpop.f32.mrb[0].mxu0
    %5564 = vdwg.mxu0
    %vm5565 = vcmask 74752
    %5566 = vst.msk [vmem:[#allocation2] sm:$0x3] %vm5565, %v5562
    // Predicated region
    $region46: #{net_forward.1} parent=1 // pred_check
      _
    $region47: #{net_forward.1} parent=1 // pred_check_branch
      %5568 = sbr.rel (0) target = $region49
    $region48: #{net_forward.1} parent=1 // pred_region
      %s5570 = ssub.s32 32, 32
      %5571 = vsyncadd [#allocation3], %s5570
      %s5573 = sshll.u32 [#allocation2], 4
      %s5574 = int_to_ptr.vmem [resolvable:$true] %s5573
      %5576 = dma.vmem_to_hbm [thread:$0]  %s5574, 32, %s11, [#allocation3]
    $region49: #{net_forward.1} parent=1 // pred_fallthru
      _
    // Predicated region
    $region50: #{net_forward.1} parent=1 // pred_check
      _
    $region51: #{net_forward.1} parent=1 // pred_check_branch
      %5578 = sbr.rel (0) target = $region53
    $region52: #{net_forward.1} parent=1 // pred_region
      %5579 = dma.done [#allocation3], 32
    $region53: #{net_forward.1} parent=1 // pred_fallthru
      _
    %5580 = vsyncpa [#allocation3], 1

</llo_original>
